<compile_context>
chip_gen: v5e
topology: v5e:2x2
jax: 0.10.0
libtpu: 0.0.40
codegen_flags: <defaults>
</compile_context>

<pallas_src>
import jax
import jax.numpy as jnp
from jax import lax
from jax.experimental import pallas as pl
from jax.experimental.pallas import tpu as pltpu


def _round_up(a, m):
    return (a + m - 1) // m * m


# ----------------------------------------------------------------------------------- kernel
def make_lstm_kernel(num_layers, T, TB, HP, mxu_dtype, use_zin_scratch, unroll):
    """Kernel signature:
         kernel(x, (w_ih, w_hh, b) * L, w_out, b_out, out, seq_scratch[, zin_scratch])
       x is time-major (T, TB, D); weights pre-transposed; gate order [i, f, o, g] with each
       gate padded to HP (multiple of 128) lanes so gate slicing is tile-aligned."""
    G3 = 3 * HP

    def cell(z, c):
        # z: (TB, 4*HP) f32 pre-activation; c: (TB, HP) f32 cell state.
        sig = jax.nn.sigmoid(z[:, :G3])               # one EUP pass over [i | f | o]
        i_g = sig[:, 0:HP]
        f_g = sig[:, HP:2 * HP]
        o_g = sig[:, 2 * HP:G3]
        g_g = jnp.tanh(z[:, G3:])
        c_new = f_g * c + i_g * g_g
        h_new = o_g * jnp.tanh(c_new)
        return h_new, c_new

    def kernel(*refs):
        x_ref = refs[0]                                  # (T, TB, D)
        layer_refs = refs[1:1 + 3 * num_layers]          # per layer: (Din,4HP),(HP,4HP),(1,4HP)
        w_out_ref = refs[1 + 3 * num_layers]             # (HP, Cp)
        b_out_ref = refs[2 + 3 * num_layers]             # (1, Cp)
        out_ref = refs[3 + 3 * num_layers]               # (TB, Cp)
        seq_ref = refs[4 + 3 * num_layers]               # scratch (T, TB, HP) mxu_dtype
        zin_ref = refs[5 + 3 * num_layers] if use_zin_scratch else None

        h_top = None
        for l in range(num_layers):                      # static Python loop over layers
            w_ih = layer_refs[3 * l][...]                # (Din, 4HP)
            w_hh = layer_refs[3 * l + 1][...]            # (HP, 4HP)
            b = layer_refs[3 * l + 2][...]               # (1, 4HP) f32  (= b_ih + b_hh)
            last_layer = (l == num_layers - 1)

            # Hoisted input projection for the whole tile (bias folded in).  Only the small
            # h @ W_hh matmul stays on the serial dependency chain.  Reading the full
            # previous-layer sequence here (before any seq_ref[t] writes) avoids aliasing.
            in_seq = x_ref[...] if l == 0 else seq_ref[...]          # (T, TB, Din)
            din = in_seq.shape[-1]
            z_all = (jnp.dot(in_seq.reshape(T * TB, din), w_ih,
                             preferred_element_type=jnp.float32) + b
                     ).reshape(T, TB, 4 * HP)

            h = jnp.zeros((TB, HP), jnp.float32)
            c = jnp.zeros((TB, HP), jnp.float32)

            if use_zin_scratch:
                # Large tile: stage the projected sequence in VMEM scratch and loop.
                zin_ref[...] = z_all

                def step(t, carry, w_hh=w_hh, last_layer=last_layer):
                    h, c = carry
                    z = zin_ref[t] + jnp.dot(h.astype(mxu_dtype), w_hh,
                                             preferred_element_type=jnp.float32)
                    h_new, c_new = cell(z, c)
                    if not last_layer:
                        seq_ref[t] = h_new.astype(mxu_dtype)
                    return h_new, c_new

                h, c = lax.fori_loop(0, T, step, (h, c), unroll=unroll)
            else:
                # Small tile: static per-step slice of the in-register projection — no
                # per-timestep (TB,4HP) vst+vld round-trip through VMEM scratch.
                for t in range(T):
                    z = z_all[t] + jnp.dot(h.astype(mxu_dtype), w_hh,
                                           preferred_element_type=jnp.float32)
                    h, c = cell(z, c)
                    if not last_layer:
                        seq_ref[t] = h.astype(mxu_dtype)

            h_top = h

        # ReLU on the top-layer output at the last timestep, then the Linear head.
        out_ref[...] = (jnp.dot(jnp.maximum(h_top, 0.0).astype(mxu_dtype), w_out_ref[...],
                                preferred_element_type=jnp.float32) + b_out_ref[...])

    return kernel


# -------------------------------------------------------------------------- weight packing
def _pack_gate_matrix(w, H, HP, d_in, d_in_pad, dtype):
    """w: (4H, d_in), PyTorch row blocks [i, f, g, o].  Returns (d_in_pad, 4*HP) with gate
    order [i, f, o, g]; each gate's H columns sit at a 128-aligned offset, zeros elsewhere."""
    gates = (w[0:H], w[H:2 * H], w[3 * H:4 * H], w[2 * H:3 * H])     # i, f, o, g
    out = jnp.zeros((d_in_pad, 4 * HP), jnp.float32)
    for gi, g in enumerate(gates):
        out = out.at[:d_in, gi * HP:gi * HP + H].set(g.T)
    return out.astype(dtype)


def _pack_gate_bias(b_ih, b_hh, H, HP):
    b = (b_ih + b_hh).astype(jnp.float32)
    gates = (b[0:H], b[H:2 * H], b[3 * H:4 * H], b[2 * H:3 * H])     # i, f, o, g
    out = jnp.zeros((1, 4 * HP), jnp.float32)
    for gi, g in enumerate(gates):
        out = out.at[0, gi * HP:gi * HP + H].set(g)
    return out


# --------------------------------------------------------------------------------- wrapper
def lstm_forward(x, params, hidden_size, num_layers, *, batch_tile=None,
                 mxu_dtype=jnp.float32, use_zin_scratch=None):
    """x: (B, T, D) float32 (batch_first). Returns (B, num_class) float32."""
    B, T, D = x.shape
    H = hidden_size
    HP = _round_up(H, 128)                      # lane-padded hidden / per-gate width
    w_out, b_out = params["linear"]
    C = w_out.shape[0]
    Cp = _round_up(C, 128)                      # lane-dense output store

    # ---- batch tiling ----------------------------------------------------------------
    B8 = _round_up(B, 8)
    if batch_tile is None:
        TB = min(B8, 128)                       # big tile = primary throughput knob
        if TB == B8 and B8 >= 16:
            # >=2 tiles so the "parallel" axis can shard across v7x's two TensorCores.
            TB = _round_up(pl.cdiv(B8, 2), 8)
    else:
        TB = _round_up(min(batch_tile, B8), 8)
    B_pad = _round_up(B8, TB)
    n_tiles = B_pad // TB

    # ---- zin staging / unroll policy ---------------------------------------------------
    if use_zin_scratch is None:
        use_zin_scratch = (T * TB * 4 * HP * 4) > (256 * 1024)
    unroll = True if T <= 32 else 8             # guard full unroll (vreg live-range cliff)

    # ---- pack inputs -------------------------------------------------------------------
    x_tm = jnp.zeros((T, B_pad, D), mxu_dtype)
    x_tm = x_tm.at[:, :B, :].set(jnp.transpose(x, (1, 0, 2)).astype(mxu_dtype))

    inputs = [x_tm]
    in_specs = [pl.BlockSpec((T, TB, D), lambda bi: (0, bi, 0))]
    weight_mode = pl.Buffered(1)                # constant blocks: no double-buffering
    for l in range(num_layers):
        w_ih, w_hh, b_ih, b_hh = params["layers"][l]
        d_in = D if l == 0 else H
        d_in_pad = D if l == 0 else HP
        w_ih_p = _pack_gate_matrix(w_ih, H, HP, d_in, d_in_pad, mxu_dtype)
        w_hh_p = _pack_gate_matrix(w_hh, H, HP, H, HP, mxu_dtype)
        b_p = _pack_gate_bias(b_ih, b_hh, H, HP)
        for w in (w_ih_p, w_hh_p, b_p):
            inputs.append(w)
            in_specs.append(pl.BlockSpec(w.shape, lambda bi: (0, 0),
                                         pipeline_mode=weight_mode))

    w_out_p = jnp.zeros((HP, Cp), jnp.float32).at[:H, :C].set(w_out.T).astype(mxu_dtype)
    b_out_p = jnp.zeros((1, Cp), jnp.float32).at[0, :C].set(b_out)
    for w in (w_out_p, b_out_p):
        inputs.append(w)
        in_specs.append(pl.BlockSpec(w.shape, lambda bi: (0, 0), pipeline_mode=weight_mode))

    scratch_shapes = [pltpu.VMEM((T, TB, HP), mxu_dtype)]
    if use_zin_scratch:
        scratch_shapes.append(pltpu.VMEM((T, TB, 4 * HP), jnp.float32))

    # ---- VMEM budget: derive the limit from the actual tile footprint ------------------
    def padded_bytes(shape, dtype, nbuf=1):
        s = list(shape)
        s[-1] = _round_up(s[-1], 128)
        if len(s) >= 2:
            s[-2] = _round_up(s[-2], 8)
        n = 1
        for d in s:
            n *= d
        return nbuf * n * jnp.dtype(dtype).itemsize

    est = padded_bytes((T, TB, D), mxu_dtype, nbuf=2)            # x block, double-buffered
    est += sum(padded_bytes(w.shape, w.dtype) for w in inputs[1:])   # single-buffered weights
    est += padded_bytes((TB, Cp), jnp.float32, nbuf=2)           # out block
    est += padded_bytes((T, TB, HP), mxu_dtype)
    if use_zin_scratch:
        est += padded_bytes((T, TB, 4 * HP), jnp.float32)
    vmem_limit = int(min(max(32 * 1024 * 1024, 2 * est), 96 * 1024 * 1024))

    kernel = make_lstm_kernel(num_layers, T, TB, HP, mxu_dtype, use_zin_scratch, unroll)
    out = pl.pallas_call(
        kernel,
        out_shape=jax.ShapeDtypeStruct((B_pad, Cp), jnp.float32),
        grid=(n_tiles,),
        in_specs=in_specs,
        out_specs=pl.BlockSpec((TB, Cp), lambda bi: (bi, 0)),
        scratch_shapes=scratch_shapes,
        compiler_params=pltpu.CompilerParams(
            dimension_semantics=("parallel",),
            vmem_limit_bytes=vmem_limit),
    )(*inputs)
    return out[:B, :C]


# ------------------------------------------------------------------------------- reference
def lstm_ref(x, params, H, num_layers):
    """Pure-JAX reference matching torch.nn.LSTM(batch_first) + ReLU + Linear."""
    B, T, _ = x.shape
    seq = x
    for l in range(num_layers):
        w_ih, w_hh, b_ih, b_hh = params["layers"][l]
        h = jnp.zeros((B, H), jnp.float32)
        c = jnp.zeros((B, H), jnp.float32)
        outs = []
        for t in range(T):
            z = seq[:, t, :] @ w_ih.T + h @ w_hh.T + b_ih + b_hh
            i = jax.nn.sigmoid(z[:, :H])
            f = jax.nn.sigmoid(z[:, H:2 * H])
            g = jnp.tanh(z[:, 2 * H:3 * H])
            o = jax.nn.sigmoid(z[:, 3 * H:])
            c = f * c + i * g
            h = o * jnp.tanh(c)
            outs.append(h)
        seq = jnp.stack(outs, axis=1)
    w_out, b_out = params["linear"]
    return jnp.maximum(seq[:, -1, :], 0.0) @ w_out.T + b_out


def init_params(key, input_size, hidden_size, num_class, num_layers):
    """Deterministic synthetic params with PyTorch-like uniform(-1/sqrt(H), 1/sqrt(H))."""
    H = hidden_size
    k = 1.0 / jnp.sqrt(jnp.float32(H))
    params = {"layers": []}
    for l in range(num_layers):
        d_in = input_size if l == 0 else H
        key, k1, k2, k3, k4 = jax.random.split(key, 5)
        w_ih = jax.random.uniform(k1, (4 * H, d_in), jnp.float32, -k, k)
        w_hh = jax.random.uniform(k2, (4 * H, H), jnp.float32, -k, k)
        b_ih = jax.random.uniform(k3, (4 * H,), jnp.float32, -k, k)
        b_hh = jax.random.uniform(k4, (4 * H,), jnp.float32, -k, k)
        params["layers"].append((w_ih, w_hh, b_ih, b_hh))
    key, k1, k2 = jax.random.split(key, 3)
    w_out = jax.random.uniform(k1, (num_class, H), jnp.float32, -k, k)
    b_out = jax.random.uniform(k2, (num_class,), jnp.float32, -k, k)
    params["linear"] = (w_out, b_out)
    return params


if __name__ == "__main__":
    B, T, D = 2, 8, 16          # batch, seq_len, input_size
    H, C, L = 32, 5, 2          # hidden_size, num_class, num_layers

    key = jax.random.PRNGKey(0)
    key, kx, kp = jax.random.split(key, 3)
    x = jax.random.normal(kx, (B, T, D), jnp.float32)
    params = init_params(kp, D, H, C, L)
    ref = lstm_ref(x, params, H, L)

    # 1) f32 MXU operands (bit-faithful path; matches reference tightly).
    out_f32 = jax.block_until_ready(lstm_forward(x, params, H, L, mxu_dtype=jnp.float32))
    assert out_f32.shape == (B, C)
    assert jnp.allclose(out_f32, ref, atol=2e-5, rtol=2e-5), (out_f32, ref)

    # 2) bf16 MXU operands (v6e/v7x fast path; state math stays f32) — looser tolerance.
    out_bf16 = jax.block_until_ready(lstm_forward(x, params, H, L, mxu_dtype=jnp.bfloat16))
    assert jnp.allclose(out_bf16, ref, atol=1e-1, rtol=1e-1), (out_bf16, ref)

    # 3) larger batch: exercises the multi-tile grid + zin-scratch + fori_loop path.
    key, kx2 = jax.random.split(key)
    x2 = jax.random.normal(kx2, (16, T, D), jnp.float32)
    out2 = jax.block_until_ready(
        lstm_forward(x2, params, H, L, mxu_dtype=jnp.float32, use_zin_scratch=True))
    ref2 = lstm_ref(x2, params, H, L)
    assert out2.shape == (16, C)
    assert jnp.allclose(out2, ref2, atol=2e-5, rtol=2e-5), (out2, ref2)

    print("KERNEL_OK")
</pallas_src>

<mosaic_0001>
module attributes {stable_mosaic.version = 11 : i64} {
  func.func @kernel(%arg0: i32, %arg1: memref<8x8x16xf32, #tpu.memory_space<vmem>>, %arg2: memref<16x512xf32, #tpu.memory_space<vmem>>, %arg3: memref<128x512xf32, #tpu.memory_space<vmem>>, %arg4: memref<1x512xf32, #tpu.memory_space<vmem>>, %arg5: memref<128x512xf32, #tpu.memory_space<vmem>>, %arg6: memref<128x512xf32, #tpu.memory_space<vmem>>, %arg7: memref<1x512xf32, #tpu.memory_space<vmem>>, %arg8: memref<128x128xf32, #tpu.memory_space<vmem>>, %arg9: memref<1x128xf32, #tpu.memory_space<vmem>>, %arg10: memref<8x128xf32, #tpu.memory_space<vmem>>, %arg11: memref<8x8x128xf32, #tpu.memory_space<vmem>>) attributes {dimension_semantics = [#tpu.dimension_semantics<parallel>], iteration_bounds = array<i64: 1>, scalar_prefetch = 0 : i64, scratch_operands = 1 : i64, tpu.core_type = #tpu.core_type<tc>, window_params = [{transform_indices = @transform_0, window_bounds = array<i64: 8, 8, 16>}, {pipeline_mode = #tpu.pipeline_mode<synchronous>, transform_indices = @transform_1, window_bounds = array<i64: 16, 512>}, {pipeline_mode = #tpu.pipeline_mode<synchronous>, transform_indices = @transform_2, window_bounds = array<i64: 128, 512>}, {pipeline_mode = #tpu.pipeline_mode<synchronous>, transform_indices = @transform_3, window_bounds = array<i64: 1, 512>}, {pipeline_mode = #tpu.pipeline_mode<synchronous>, transform_indices = @transform_4, window_bounds = array<i64: 128, 512>}, {pipeline_mode = #tpu.pipeline_mode<synchronous>, transform_indices = @transform_5, window_bounds = array<i64: 128, 512>}, {pipeline_mode = #tpu.pipeline_mode<synchronous>, transform_indices = @transform_6, window_bounds = array<i64: 1, 512>}, {pipeline_mode = #tpu.pipeline_mode<synchronous>, transform_indices = @transform_7, window_bounds = array<i64: 128, 128>}, {pipeline_mode = #tpu.pipeline_mode<synchronous>, transform_indices = @transform_8, window_bounds = array<i64: 1, 128>}, {transform_indices = @transform_9, window_bounds = array<i64: 8, 128>}]} {
    %c0 = arith.constant 0 : index
    %c0_0 = arith.constant 0 : index
    %0 = vector.load %arg2[%c0, %c0_0] : memref<16x512xf32, #tpu.memory_space<vmem>>, vector<16x512xf32>
    %c0_1 = arith.constant 0 : index
    %c0_2 = arith.constant 0 : index
    %1 = vector.load %arg3[%c0_1, %c0_2] : memref<128x512xf32, #tpu.memory_space<vmem>>, vector<128x512xf32>
    %c0_3 = arith.constant 0 : index
    %c0_4 = arith.constant 0 : index
    %2 = vector.load %arg4[%c0_3, %c0_4] : memref<1x512xf32, #tpu.memory_space<vmem>>, vector<1x512xf32>
    %c0_5 = arith.constant 0 : index
    %c0_6 = arith.constant 0 : index
    %c0_7 = arith.constant 0 : index
    %3 = vector.load %arg1[%c0_5, %c0_6, %c0_7] : memref<8x8x16xf32, #tpu.memory_space<vmem>>, vector<8x8x16xf32>
    %4 = vector.shape_cast %3 : vector<8x8x16xf32> to vector<64x16xf32>
    %cst = arith.constant dense<0.000000e+00> : vector<64x512xf32>
    %5 = tpu.matmul %4, %0, %cst {dimension_numbers = #tpu.dot_dimension_numbers<[1], [0], [0], [1], [0, 0, 1, 1], [], []>} : vector<64x16xf32>, vector<16x512xf32>, vector<64x512xf32> -> vector<64x512xf32>
    %6 = vector.broadcast %2 : vector<1x512xf32> to vector<64x512xf32>
    %7 = arith.addf %5, %6 : vector<64x512xf32>
    %8 = vector.shape_cast %7 : vector<64x512xf32> to vector<8x8x512xf32>
    %cst_8 = arith.constant 0.000000e+00 : f32
    %9 = vector.broadcast %cst_8 : f32 to vector<8x128xf32>
    %cst_9 = arith.constant 0.000000e+00 : f32
    %10 = vector.broadcast %cst_9 : f32 to vector<8x128xf32>
    %11 = vector.extract_strided_slice %8 {offsets = [0, 0, 0], sizes = [1, 8, 512], strides = [1, 1, 1]} : vector<8x8x512xf32> to vector<1x8x512xf32>
    %12 = vector.shape_cast %11 : vector<1x8x512xf32> to vector<8x512xf32>
    %cst_10 = arith.constant dense<0.000000e+00> : vector<8x512xf32>
    %13 = tpu.matmul %9, %1, %cst_10 {dimension_numbers = #tpu.dot_dimension_numbers<[1], [0], [0], [1], [0, 0, 1, 1], [], []>} : vector<8x128xf32>, vector<128x512xf32>, vector<8x512xf32> -> vector<8x512xf32>
    %14 = arith.addf %12, %13 : vector<8x512xf32>
    %15 = vector.extract_strided_slice %14 {offsets = [0, 0], sizes = [8, 384], strides = [1, 1]} : vector<8x512xf32> to vector<8x384xf32>
    %16 = arith.negf %15 : vector<8x384xf32>
    %17 = math.exp %16 : vector<8x384xf32>
    %cst_11 = arith.constant 1.000000e+00 : f32
    %18 = vector.broadcast %cst_11 : f32 to vector<8x384xf32>
    %19 = arith.addf %18, %17 : vector<8x384xf32>
    %20 = arith.divf %18, %19 : vector<8x384xf32>
    %21 = vector.extract_strided_slice %20 {offsets = [0, 0], sizes = [8, 128], strides = [1, 1]} : vector<8x384xf32> to vector<8x128xf32>
    %22 = vector.extract_strided_slice %20 {offsets = [0, 128], sizes = [8, 128], strides = [1, 1]} : vector<8x384xf32> to vector<8x128xf32>
    %23 = vector.extract_strided_slice %20 {offsets = [0, 256], sizes = [8, 128], strides = [1, 1]} : vector<8x384xf32> to vector<8x128xf32>
    %24 = vector.extract_strided_slice %14 {offsets = [0, 384], sizes = [8, 128], strides = [1, 1]} : vector<8x512xf32> to vector<8x128xf32>
    %25 = math.tanh %24 : vector<8x128xf32>
    %26 = arith.mulf %22, %10 : vector<8x128xf32>
    %27 = arith.mulf %21, %25 : vector<8x128xf32>
    %28 = arith.addf %26, %27 : vector<8x128xf32>
    %29 = math.tanh %28 : vector<8x128xf32>
    %30 = arith.mulf %23, %29 : vector<8x128xf32>
    %c0_12 = arith.constant 0 : index
    %c0_13 = arith.constant 0 : index
    %c0_14 = arith.constant 0 : index
    %31 = vector.load %arg11[%c0_12, %c0_13, %c0_14] : memref<8x8x128xf32, #tpu.memory_space<vmem>>, vector<1x8x128xf32>
    %32 = vector.shape_cast %31 : vector<1x8x128xf32> to vector<8x128xf32>
    %33 = vector.shape_cast %30 : vector<8x128xf32> to vector<1x8x128xf32>
    tpu.vector_store %arg11[%c0_12, %c0_13, %c0_14], %33 {strides = array<i32>} : memref<8x8x128xf32, #tpu.memory_space<vmem>>, vector<1x8x128xf32>,
    %34 = vector.extract_strided_slice %8 {offsets = [1, 0, 0], sizes = [1, 8, 512], strides = [1, 1, 1]} : vector<8x8x512xf32> to vector<1x8x512xf32>
    %35 = vector.shape_cast %34 : vector<1x8x512xf32> to vector<8x512xf32>
    %cst_15 = arith.constant dense<0.000000e+00> : vector<8x512xf32>
    %36 = tpu.matmul %30, %1, %cst_15 {dimension_numbers = #tpu.dot_dimension_numbers<[1], [0], [0], [1], [0, 0, 1, 1], [], []>} : vector<8x128xf32>, vector<128x512xf32>, vector<8x512xf32> -> vector<8x512xf32>
    %37 = arith.addf %35, %36 : vector<8x512xf32>
    %38 = vector.extract_strided_slice %37 {offsets = [0, 0], sizes = [8, 384], strides = [1, 1]} : vector<8x512xf32> to vector<8x384xf32>
    %39 = arith.negf %38 : vector<8x384xf32>
    %40 = math.exp %39 : vector<8x384xf32>
    %cst_16 = arith.constant 1.000000e+00 : f32
    %41 = vector.broadcast %cst_16 : f32 to vector<8x384xf32>
    %42 = arith.addf %41, %40 : vector<8x384xf32>
    %43 = arith.divf %41, %42 : vector<8x384xf32>
    %44 = vector.extract_strided_slice %43 {offsets = [0, 0], sizes = [8, 128], strides = [1, 1]} : vector<8x384xf32> to vector<8x128xf32>
    %45 = vector.extract_strided_slice %43 {offsets = [0, 128], sizes = [8, 128], strides = [1, 1]} : vector<8x384xf32> to vector<8x128xf32>
    %46 = vector.extract_strided_slice %43 {offsets = [0, 256], sizes = [8, 128], strides = [1, 1]} : vector<8x384xf32> to vector<8x128xf32>
    %47 = vector.extract_strided_slice %37 {offsets = [0, 384], sizes = [8, 128], strides = [1, 1]} : vector<8x512xf32> to vector<8x128xf32>
    %48 = math.tanh %47 : vector<8x128xf32>
    %49 = arith.mulf %45, %28 : vector<8x128xf32>
    %50 = arith.mulf %44, %48 : vector<8x128xf32>
    %51 = arith.addf %49, %50 : vector<8x128xf32>
    %52 = math.tanh %51 : vector<8x128xf32>
    %53 = arith.mulf %46, %52 : vector<8x128xf32>
    %c1 = arith.constant 1 : index
    %c0_17 = arith.constant 0 : index
    %c0_18 = arith.constant 0 : index
    %54 = vector.load %arg11[%c1, %c0_17, %c0_18] : memref<8x8x128xf32, #tpu.memory_space<vmem>>, vector<1x8x128xf32>
    %55 = vector.shape_cast %54 : vector<1x8x128xf32> to vector<8x128xf32>
    %56 = vector.shape_cast %53 : vector<8x128xf32> to vector<1x8x128xf32>
    tpu.vector_store %arg11[%c1, %c0_17, %c0_18], %56 {strides = array<i32>} : memref<8x8x128xf32, #tpu.memory_space<vmem>>, vector<1x8x128xf32>,
    %57 = vector.extract_strided_slice %8 {offsets = [2, 0, 0], sizes = [1, 8, 512], strides = [1, 1, 1]} : vector<8x8x512xf32> to vector<1x8x512xf32>
    %58 = vector.shape_cast %57 : vector<1x8x512xf32> to vector<8x512xf32>
    %cst_19 = arith.constant dense<0.000000e+00> : vector<8x512xf32>
    %59 = tpu.matmul %53, %1, %cst_19 {dimension_numbers = #tpu.dot_dimension_numbers<[1], [0], [0], [1], [0, 0, 1, 1], [], []>} : vector<8x128xf32>, vector<128x512xf32>, vector<8x512xf32> -> vector<8x512xf32>
    %60 = arith.addf %58, %59 : vector<8x512xf32>
    %61 = vector.extract_strided_slice %60 {offsets = [0, 0], sizes = [8, 384], strides = [1, 1]} : vector<8x512xf32> to vector<8x384xf32>
    %62 = arith.negf %61 : vector<8x384xf32>
    %63 = math.exp %62 : vector<8x384xf32>
    %cst_20 = arith.constant 1.000000e+00 : f32
    %64 = vector.broadcast %cst_20 : f32 to vector<8x384xf32>
    %65 = arith.addf %64, %63 : vector<8x384xf32>
    %66 = arith.divf %64, %65 : vector<8x384xf32>
    %67 = vector.extract_strided_slice %66 {offsets = [0, 0], sizes = [8, 128], strides = [1, 1]} : vector<8x384xf32> to vector<8x128xf32>
    %68 = vector.extract_strided_slice %66 {offsets = [0, 128], sizes = [8, 128], strides = [1, 1]} : vector<8x384xf32> to vector<8x128xf32>
    %69 = vector.extract_strided_slice %66 {offsets = [0, 256], sizes = [8, 128], strides = [1, 1]} : vector<8x384xf32> to vector<8x128xf32>
    %70 = vector.extract_strided_slice %60 {offsets = [0, 384], sizes = [8, 128], strides = [1, 1]} : vector<8x512xf32> to vector<8x128xf32>
    %71 = math.tanh %70 : vector<8x128xf32>
    %72 = arith.mulf %68, %51 : vector<8x128xf32>
    %73 = arith.mulf %67, %71 : vector<8x128xf32>
    %74 = arith.addf %72, %73 : vector<8x128xf32>
    %75 = math.tanh %74 : vector<8x128xf32>
    %76 = arith.mulf %69, %75 : vector<8x128xf32>
    %c2 = arith.constant 2 : index
    %c0_21 = arith.constant 0 : index
    %c0_22 = arith.constant 0 : index
    %77 = vector.load %arg11[%c2, %c0_21, %c0_22] : memref<8x8x128xf32, #tpu.memory_space<vmem>>, vector<1x8x128xf32>
    %78 = vector.shape_cast %77 : vector<1x8x128xf32> to vector<8x128xf32>
    %79 = vector.shape_cast %76 : vector<8x128xf32> to vector<1x8x128xf32>
    tpu.vector_store %arg11[%c2, %c0_21, %c0_22], %79 {strides = array<i32>} : memref<8x8x128xf32, #tpu.memory_space<vmem>>, vector<1x8x128xf32>,
    %80 = vector.extract_strided_slice %8 {offsets = [3, 0, 0], sizes = [1, 8, 512], strides = [1, 1, 1]} : vector<8x8x512xf32> to vector<1x8x512xf32>
    %81 = vector.shape_cast %80 : vector<1x8x512xf32> to vector<8x512xf32>
    %cst_23 = arith.constant dense<0.000000e+00> : vector<8x512xf32>
    %82 = tpu.matmul %76, %1, %cst_23 {dimension_numbers = #tpu.dot_dimension_numbers<[1], [0], [0], [1], [0, 0, 1, 1], [], []>} : vector<8x128xf32>, vector<128x512xf32>, vector<8x512xf32> -> vector<8x512xf32>
    %83 = arith.addf %81, %82 : vector<8x512xf32>
    %84 = vector.extract_strided_slice %83 {offsets = [0, 0], sizes = [8, 384], strides = [1, 1]} : vector<8x512xf32> to vector<8x384xf32>
    %85 = arith.negf %84 : vector<8x384xf32>
    %86 = math.exp %85 : vector<8x384xf32>
    %cst_24 = arith.constant 1.000000e+00 : f32
    %87 = vector.broadcast %cst_24 : f32 to vector<8x384xf32>
    %88 = arith.addf %87, %86 : vector<8x384xf32>
    %89 = arith.divf %87, %88 : vector<8x384xf32>
    %90 = vector.extract_strided_slice %89 {offsets = [0, 0], sizes = [8, 128], strides = [1, 1]} : vector<8x384xf32> to vector<8x128xf32>
    %91 = vector.extract_strided_slice %89 {offsets = [0, 128], sizes = [8, 128], strides = [1, 1]} : vector<8x384xf32> to vector<8x128xf32>
    %92 = vector.extract_strided_slice %89 {offsets = [0, 256], sizes = [8, 128], strides = [1, 1]} : vector<8x384xf32> to vector<8x128xf32>
    %93 = vector.extract_strided_slice %83 {offsets = [0, 384], sizes = [8, 128], strides = [1, 1]} : vector<8x512xf32> to vector<8x128xf32>
    %94 = math.tanh %93 : vector<8x128xf32>
    %95 = arith.mulf %91, %74 : vector<8x128xf32>
    %96 = arith.mulf %90, %94 : vector<8x128xf32>
    %97 = arith.addf %95, %96 : vector<8x128xf32>
    %98 = math.tanh %97 : vector<8x128xf32>
    %99 = arith.mulf %92, %98 : vector<8x128xf32>
    %c3 = arith.constant 3 : index
    %c0_25 = arith.constant 0 : index
    %c0_26 = arith.constant 0 : index
    %100 = vector.load %arg11[%c3, %c0_25, %c0_26] : memref<8x8x128xf32, #tpu.memory_space<vmem>>, vector<1x8x128xf32>
    %101 = vector.shape_cast %100 : vector<1x8x128xf32> to vector<8x128xf32>
    %102 = vector.shape_cast %99 : vector<8x128xf32> to vector<1x8x128xf32>
    tpu.vector_store %arg11[%c3, %c0_25, %c0_26], %102 {strides = array<i32>} : memref<8x8x128xf32, #tpu.memory_space<vmem>>, vector<1x8x128xf32>,
    %103 = vector.extract_strided_slice %8 {offsets = [4, 0, 0], sizes = [1, 8, 512], strides = [1, 1, 1]} : vector<8x8x512xf32> to vector<1x8x512xf32>
    %104 = vector.shape_cast %103 : vector<1x8x512xf32> to vector<8x512xf32>
    %cst_27 = arith.constant dense<0.000000e+00> : vector<8x512xf32>
    %105 = tpu.matmul %99, %1, %cst_27 {dimension_numbers = #tpu.dot_dimension_numbers<[1], [0], [0], [1], [0, 0, 1, 1], [], []>} : vector<8x128xf32>, vector<128x512xf32>, vector<8x512xf32> -> vector<8x512xf32>
    %106 = arith.addf %104, %105 : vector<8x512xf32>
    %107 = vector.extract_strided_slice %106 {offsets = [0, 0], sizes = [8, 384], strides = [1, 1]} : vector<8x512xf32> to vector<8x384xf32>
    %108 = arith.negf %107 : vector<8x384xf32>
    %109 = math.exp %108 : vector<8x384xf32>
    %cst_28 = arith.constant 1.000000e+00 : f32
    %110 = vector.broadcast %cst_28 : f32 to vector<8x384xf32>
    %111 = arith.addf %110, %109 : vector<8x384xf32>
    %112 = arith.divf %110, %111 : vector<8x384xf32>
    %113 = vector.extract_strided_slice %112 {offsets = [0, 0], sizes = [8, 128], strides = [1, 1]} : vector<8x384xf32> to vector<8x128xf32>
    %114 = vector.extract_strided_slice %112 {offsets = [0, 128], sizes = [8, 128], strides = [1, 1]} : vector<8x384xf32> to vector<8x128xf32>
    %115 = vector.extract_strided_slice %112 {offsets = [0, 256], sizes = [8, 128], strides = [1, 1]} : vector<8x384xf32> to vector<8x128xf32>
    %116 = vector.extract_strided_slice %106 {offsets = [0, 384], sizes = [8, 128], strides = [1, 1]} : vector<8x512xf32> to vector<8x128xf32>
    %117 = math.tanh %116 : vector<8x128xf32>
    %118 = arith.mulf %114, %97 : vector<8x128xf32>
    %119 = arith.mulf %113, %117 : vector<8x128xf32>
    %120 = arith.addf %118, %119 : vector<8x128xf32>
    %121 = math.tanh %120 : vector<8x128xf32>
    %122 = arith.mulf %115, %121 : vector<8x128xf32>
    %c4 = arith.constant 4 : index
    %c0_29 = arith.constant 0 : index
    %c0_30 = arith.constant 0 : index
    %123 = vector.load %arg11[%c4, %c0_29, %c0_30] : memref<8x8x128xf32, #tpu.memory_space<vmem>>, vector<1x8x128xf32>
    %124 = vector.shape_cast %123 : vector<1x8x128xf32> to vector<8x128xf32>
    %125 = vector.shape_cast %122 : vector<8x128xf32> to vector<1x8x128xf32>
    tpu.vector_store %arg11[%c4, %c0_29, %c0_30], %125 {strides = array<i32>} : memref<8x8x128xf32, #tpu.memory_space<vmem>>, vector<1x8x128xf32>,
    %126 = vector.extract_strided_slice %8 {offsets = [5, 0, 0], sizes = [1, 8, 512], strides = [1, 1, 1]} : vector<8x8x512xf32> to vector<1x8x512xf32>
    %127 = vector.shape_cast %126 : vector<1x8x512xf32> to vector<8x512xf32>
    %cst_31 = arith.constant dense<0.000000e+00> : vector<8x512xf32>
    %128 = tpu.matmul %122, %1, %cst_31 {dimension_numbers = #tpu.dot_dimension_numbers<[1], [0], [0], [1], [0, 0, 1, 1], [], []>} : vector<8x128xf32>, vector<128x512xf32>, vector<8x512xf32> -> vector<8x512xf32>
    %129 = arith.addf %127, %128 : vector<8x512xf32>
    %130 = vector.extract_strided_slice %129 {offsets = [0, 0], sizes = [8, 384], strides = [1, 1]} : vector<8x512xf32> to vector<8x384xf32>
    %131 = arith.negf %130 : vector<8x384xf32>
    %132 = math.exp %131 : vector<8x384xf32>
    %cst_32 = arith.constant 1.000000e+00 : f32
    %133 = vector.broadcast %cst_32 : f32 to vector<8x384xf32>
    %134 = arith.addf %133, %132 : vector<8x384xf32>
    %135 = arith.divf %133, %134 : vector<8x384xf32>
    %136 = vector.extract_strided_slice %135 {offsets = [0, 0], sizes = [8, 128], strides = [1, 1]} : vector<8x384xf32> to vector<8x128xf32>
    %137 = vector.extract_strided_slice %135 {offsets = [0, 128], sizes = [8, 128], strides = [1, 1]} : vector<8x384xf32> to vector<8x128xf32>
    %138 = vector.extract_strided_slice %135 {offsets = [0, 256], sizes = [8, 128], strides = [1, 1]} : vector<8x384xf32> to vector<8x128xf32>
    %139 = vector.extract_strided_slice %129 {offsets = [0, 384], sizes = [8, 128], strides = [1, 1]} : vector<8x512xf32> to vector<8x128xf32>
    %140 = math.tanh %139 : vector<8x128xf32>
    %141 = arith.mulf %137, %120 : vector<8x128xf32>
    %142 = arith.mulf %136, %140 : vector<8x128xf32>
    %143 = arith.addf %141, %142 : vector<8x128xf32>
    %144 = math.tanh %143 : vector<8x128xf32>
    %145 = arith.mulf %138, %144 : vector<8x128xf32>
    %c5 = arith.constant 5 : index
    %c0_33 = arith.constant 0 : index
    %c0_34 = arith.constant 0 : index
    %146 = vector.load %arg11[%c5, %c0_33, %c0_34] : memref<8x8x128xf32, #tpu.memory_space<vmem>>, vector<1x8x128xf32>
    %147 = vector.shape_cast %146 : vector<1x8x128xf32> to vector<8x128xf32>
    %148 = vector.shape_cast %145 : vector<8x128xf32> to vector<1x8x128xf32>
    tpu.vector_store %arg11[%c5, %c0_33, %c0_34], %148 {strides = array<i32>} : memref<8x8x128xf32, #tpu.memory_space<vmem>>, vector<1x8x128xf32>,
    %149 = vector.extract_strided_slice %8 {offsets = [6, 0, 0], sizes = [1, 8, 512], strides = [1, 1, 1]} : vector<8x8x512xf32> to vector<1x8x512xf32>
    %150 = vector.shape_cast %149 : vector<1x8x512xf32> to vector<8x512xf32>
    %cst_35 = arith.constant dense<0.000000e+00> : vector<8x512xf32>
    %151 = tpu.matmul %145, %1, %cst_35 {dimension_numbers = #tpu.dot_dimension_numbers<[1], [0], [0], [1], [0, 0, 1, 1], [], []>} : vector<8x128xf32>, vector<128x512xf32>, vector<8x512xf32> -> vector<8x512xf32>
    %152 = arith.addf %150, %151 : vector<8x512xf32>
    %153 = vector.extract_strided_slice %152 {offsets = [0, 0], sizes = [8, 384], strides = [1, 1]} : vector<8x512xf32> to vector<8x384xf32>
    %154 = arith.negf %153 : vector<8x384xf32>
    %155 = math.exp %154 : vector<8x384xf32>
    %cst_36 = arith.constant 1.000000e+00 : f32
    %156 = vector.broadcast %cst_36 : f32 to vector<8x384xf32>
    %157 = arith.addf %156, %155 : vector<8x384xf32>
    %158 = arith.divf %156, %157 : vector<8x384xf32>
    %159 = vector.extract_strided_slice %158 {offsets = [0, 0], sizes = [8, 128], strides = [1, 1]} : vector<8x384xf32> to vector<8x128xf32>
    %160 = vector.extract_strided_slice %158 {offsets = [0, 128], sizes = [8, 128], strides = [1, 1]} : vector<8x384xf32> to vector<8x128xf32>
    %161 = vector.extract_strided_slice %158 {offsets = [0, 256], sizes = [8, 128], strides = [1, 1]} : vector<8x384xf32> to vector<8x128xf32>
    %162 = vector.extract_strided_slice %152 {offsets = [0, 384], sizes = [8, 128], strides = [1, 1]} : vector<8x512xf32> to vector<8x128xf32>
    %163 = math.tanh %162 : vector<8x128xf32>
    %164 = arith.mulf %160, %143 : vector<8x128xf32>
    %165 = arith.mulf %159, %163 : vector<8x128xf32>
    %166 = arith.addf %164, %165 : vector<8x128xf32>
    %167 = math.tanh %166 : vector<8x128xf32>
    %168 = arith.mulf %161, %167 : vector<8x128xf32>
    %c6 = arith.constant 6 : index
    %c0_37 = arith.constant 0 : index
    %c0_38 = arith.constant 0 : index
    %169 = vector.load %arg11[%c6, %c0_37, %c0_38] : memref<8x8x128xf32, #tpu.memory_space<vmem>>, vector<1x8x128xf32>
    %170 = vector.shape_cast %169 : vector<1x8x128xf32> to vector<8x128xf32>
    %171 = vector.shape_cast %168 : vector<8x128xf32> to vector<1x8x128xf32>
    tpu.vector_store %arg11[%c6, %c0_37, %c0_38], %171 {strides = array<i32>} : memref<8x8x128xf32, #tpu.memory_space<vmem>>, vector<1x8x128xf32>,
    %172 = vector.extract_strided_slice %8 {offsets = [7, 0, 0], sizes = [1, 8, 512], strides = [1, 1, 1]} : vector<8x8x512xf32> to vector<1x8x512xf32>
    %173 = vector.shape_cast %172 : vector<1x8x512xf32> to vector<8x512xf32>
    %cst_39 = arith.constant dense<0.000000e+00> : vector<8x512xf32>
    %174 = tpu.matmul %168, %1, %cst_39 {dimension_numbers = #tpu.dot_dimension_numbers<[1], [0], [0], [1], [0, 0, 1, 1], [], []>} : vector<8x128xf32>, vector<128x512xf32>, vector<8x512xf32> -> vector<8x512xf32>
    %175 = arith.addf %173, %174 : vector<8x512xf32>
    %176 = vector.extract_strided_slice %175 {offsets = [0, 0], sizes = [8, 384], strides = [1, 1]} : vector<8x512xf32> to vector<8x384xf32>
    %177 = arith.negf %176 : vector<8x384xf32>
    %178 = math.exp %177 : vector<8x384xf32>
    %cst_40 = arith.constant 1.000000e+00 : f32
    %179 = vector.broadcast %cst_40 : f32 to vector<8x384xf32>
    %180 = arith.addf %179, %178 : vector<8x384xf32>
    %181 = arith.divf %179, %180 : vector<8x384xf32>
    %182 = vector.extract_strided_slice %181 {offsets = [0, 0], sizes = [8, 128], strides = [1, 1]} : vector<8x384xf32> to vector<8x128xf32>
    %183 = vector.extract_strided_slice %181 {offsets = [0, 128], sizes = [8, 128], strides = [1, 1]} : vector<8x384xf32> to vector<8x128xf32>
    %184 = vector.extract_strided_slice %181 {offsets = [0, 256], sizes = [8, 128], strides = [1, 1]} : vector<8x384xf32> to vector<8x128xf32>
    %185 = vector.extract_strided_slice %175 {offsets = [0, 384], sizes = [8, 128], strides = [1, 1]} : vector<8x512xf32> to vector<8x128xf32>
    %186 = math.tanh %185 : vector<8x128xf32>
    %187 = arith.mulf %183, %166 : vector<8x128xf32>
    %188 = arith.mulf %182, %186 : vector<8x128xf32>
    %189 = arith.addf %187, %188 : vector<8x128xf32>
    %190 = math.tanh %189 : vector<8x128xf32>
    %191 = arith.mulf %184, %190 : vector<8x128xf32>
    %c7 = arith.constant 7 : index
    %c0_41 = arith.constant 0 : index
    %c0_42 = arith.constant 0 : index
    %192 = vector.load %arg11[%c7, %c0_41, %c0_42] : memref<8x8x128xf32, #tpu.memory_space<vmem>>, vector<1x8x128xf32>
    %193 = vector.shape_cast %192 : vector<1x8x128xf32> to vector<8x128xf32>
    %194 = vector.shape_cast %191 : vector<8x128xf32> to vector<1x8x128xf32>
    tpu.vector_store %arg11[%c7, %c0_41, %c0_42], %194 {strides = array<i32>} : memref<8x8x128xf32, #tpu.memory_space<vmem>>, vector<1x8x128xf32>,
    %c0_43 = arith.constant 0 : index
    %c0_44 = arith.constant 0 : index
    %195 = vector.load %arg5[%c0_43, %c0_44] : memref<128x512xf32, #tpu.memory_space<vmem>>, vector<128x512xf32>
    %c0_45 = arith.constant 0 : index
    %c0_46 = arith.constant 0 : index
    %196 = vector.load %arg6[%c0_45, %c0_46] : memref<128x512xf32, #tpu.memory_space<vmem>>, vector<128x512xf32>
    %c0_47 = arith.constant 0 : index
    %c0_48 = arith.constant 0 : index
    %197 = vector.load %arg7[%c0_47, %c0_48] : memref<1x512xf32, #tpu.memory_space<vmem>>, vector<1x512xf32>
    %c0_49 = arith.constant 0 : index
    %c0_50 = arith.constant 0 : index
    %c0_51 = arith.constant 0 : index
    %198 = vector.load %arg11[%c0_49, %c0_50, %c0_51] : memref<8x8x128xf32, #tpu.memory_space<vmem>>, vector<8x8x128xf32>
    %199 = vector.shape_cast %198 : vector<8x8x128xf32> to vector<64x128xf32>
    %cst_52 = arith.constant dense<0.000000e+00> : vector<64x512xf32>
    %200 = tpu.matmul %199, %195, %cst_52 {dimension_numbers = #tpu.dot_dimension_numbers<[1], [0], [0], [1], [0, 0, 1, 1], [], []>} : vector<64x128xf32>, vector<128x512xf32>, vector<64x512xf32> -> vector<64x512xf32>
    %201 = vector.broadcast %197 : vector<1x512xf32> to vector<64x512xf32>
    %202 = arith.addf %200, %201 : vector<64x512xf32>
    %203 = vector.shape_cast %202 : vector<64x512xf32> to vector<8x8x512xf32>
    %cst_53 = arith.constant 0.000000e+00 : f32
    %204 = vector.broadcast %cst_53 : f32 to vector<8x128xf32>
    %cst_54 = arith.constant 0.000000e+00 : f32
    %205 = vector.broadcast %cst_54 : f32 to vector<8x128xf32>
    %206 = vector.extract_strided_slice %203 {offsets = [0, 0, 0], sizes = [1, 8, 512], strides = [1, 1, 1]} : vector<8x8x512xf32> to vector<1x8x512xf32>
    %207 = vector.shape_cast %206 : vector<1x8x512xf32> to vector<8x512xf32>
    %cst_55 = arith.constant dense<0.000000e+00> : vector<8x512xf32>
    %208 = tpu.matmul %204, %196, %cst_55 {dimension_numbers = #tpu.dot_dimension_numbers<[1], [0], [0], [1], [0, 0, 1, 1], [], []>} : vector<8x128xf32>, vector<128x512xf32>, vector<8x512xf32> -> vector<8x512xf32>
    %209 = arith.addf %207, %208 : vector<8x512xf32>
    %210 = vector.extract_strided_slice %209 {offsets = [0, 0], sizes = [8, 384], strides = [1, 1]} : vector<8x512xf32> to vector<8x384xf32>
    %211 = arith.negf %210 : vector<8x384xf32>
    %212 = math.exp %211 : vector<8x384xf32>
    %cst_56 = arith.constant 1.000000e+00 : f32
    %213 = vector.broadcast %cst_56 : f32 to vector<8x384xf32>
    %214 = arith.addf %213, %212 : vector<8x384xf32>
    %215 = arith.divf %213, %214 : vector<8x384xf32>
    %216 = vector.extract_strided_slice %215 {offsets = [0, 0], sizes = [8, 128], strides = [1, 1]} : vector<8x384xf32> to vector<8x128xf32>
    %217 = vector.extract_strided_slice %215 {offsets = [0, 128], sizes = [8, 128], strides = [1, 1]} : vector<8x384xf32> to vector<8x128xf32>
    %218 = vector.extract_strided_slice %215 {offsets = [0, 256], sizes = [8, 128], strides = [1, 1]} : vector<8x384xf32> to vector<8x128xf32>
    %219 = vector.extract_strided_slice %209 {offsets = [0, 384], sizes = [8, 128], strides = [1, 1]} : vector<8x512xf32> to vector<8x128xf32>
    %220 = math.tanh %219 : vector<8x128xf32>
    %221 = arith.mulf %217, %205 : vector<8x128xf32>
    %222 = arith.mulf %216, %220 : vector<8x128xf32>
    %223 = arith.addf %221, %222 : vector<8x128xf32>
    %224 = math.tanh %223 : vector<8x128xf32>
    %225 = arith.mulf %218, %224 : vector<8x128xf32>
    %226 = vector.extract_strided_slice %203 {offsets = [1, 0, 0], sizes = [1, 8, 512], strides = [1, 1, 1]} : vector<8x8x512xf32> to vector<1x8x512xf32>
    %227 = vector.shape_cast %226 : vector<1x8x512xf32> to vector<8x512xf32>
    %cst_57 = arith.constant dense<0.000000e+00> : vector<8x512xf32>
    %228 = tpu.matmul %225, %196, %cst_57 {dimension_numbers = #tpu.dot_dimension_numbers<[1], [0], [0], [1], [0, 0, 1, 1], [], []>} : vector<8x128xf32>, vector<128x512xf32>, vector<8x512xf32> -> vector<8x512xf32>
    %229 = arith.addf %227, %228 : vector<8x512xf32>
    %230 = vector.extract_strided_slice %229 {offsets = [0, 0], sizes = [8, 384], strides = [1, 1]} : vector<8x512xf32> to vector<8x384xf32>
    %231 = arith.negf %230 : vector<8x384xf32>
    %232 = math.exp %231 : vector<8x384xf32>
    %cst_58 = arith.constant 1.000000e+00 : f32
    %233 = vector.broadcast %cst_58 : f32 to vector<8x384xf32>
    %234 = arith.addf %233, %232 : vector<8x384xf32>
    %235 = arith.divf %233, %234 : vector<8x384xf32>
    %236 = vector.extract_strided_slice %235 {offsets = [0, 0], sizes = [8, 128], strides = [1, 1]} : vector<8x384xf32> to vector<8x128xf32>
    %237 = vector.extract_strided_slice %235 {offsets = [0, 128], sizes = [8, 128], strides = [1, 1]} : vector<8x384xf32> to vector<8x128xf32>
    %238 = vector.extract_strided_slice %235 {offsets = [0, 256], sizes = [8, 128], strides = [1, 1]} : vector<8x384xf32> to vector<8x128xf32>
    %239 = vector.extract_strided_slice %229 {offsets = [0, 384], sizes = [8, 128], strides = [1, 1]} : vector<8x512xf32> to vector<8x128xf32>
    %240 = math.tanh %239 : vector<8x128xf32>
    %241 = arith.mulf %237, %223 : vector<8x128xf32>
    %242 = arith.mulf %236, %240 : vector<8x128xf32>
    %243 = arith.addf %241, %242 : vector<8x128xf32>
    %244 = math.tanh %243 : vector<8x128xf32>
    %245 = arith.mulf %238, %244 : vector<8x128xf32>
    %246 = vector.extract_strided_slice %203 {offsets = [2, 0, 0], sizes = [1, 8, 512], strides = [1, 1, 1]} : vector<8x8x512xf32> to vector<1x8x512xf32>
    %247 = vector.shape_cast %246 : vector<1x8x512xf32> to vector<8x512xf32>
    %cst_59 = arith.constant dense<0.000000e+00> : vector<8x512xf32>
    %248 = tpu.matmul %245, %196, %cst_59 {dimension_numbers = #tpu.dot_dimension_numbers<[1], [0], [0], [1], [0, 0, 1, 1], [], []>} : vector<8x128xf32>, vector<128x512xf32>, vector<8x512xf32> -> vector<8x512xf32>
    %249 = arith.addf %247, %248 : vector<8x512xf32>
    %250 = vector.extract_strided_slice %249 {offsets = [0, 0], sizes = [8, 384], strides = [1, 1]} : vector<8x512xf32> to vector<8x384xf32>
    %251 = arith.negf %250 : vector<8x384xf32>
    %252 = math.exp %251 : vector<8x384xf32>
    %cst_60 = arith.constant 1.000000e+00 : f32
    %253 = vector.broadcast %cst_60 : f32 to vector<8x384xf32>
    %254 = arith.addf %253, %252 : vector<8x384xf32>
    %255 = arith.divf %253, %254 : vector<8x384xf32>
    %256 = vector.extract_strided_slice %255 {offsets = [0, 0], sizes = [8, 128], strides = [1, 1]} : vector<8x384xf32> to vector<8x128xf32>
    %257 = vector.extract_strided_slice %255 {offsets = [0, 128], sizes = [8, 128], strides = [1, 1]} : vector<8x384xf32> to vector<8x128xf32>
    %258 = vector.extract_strided_slice %255 {offsets = [0, 256], sizes = [8, 128], strides = [1, 1]} : vector<8x384xf32> to vector<8x128xf32>
    %259 = vector.extract_strided_slice %249 {offsets = [0, 384], sizes = [8, 128], strides = [1, 1]} : vector<8x512xf32> to vector<8x128xf32>
    %260 = math.tanh %259 : vector<8x128xf32>
    %261 = arith.mulf %257, %243 : vector<8x128xf32>
    %262 = arith.mulf %256, %260 : vector<8x128xf32>
    %263 = arith.addf %261, %262 : vector<8x128xf32>
    %264 = math.tanh %263 : vector<8x128xf32>
    %265 = arith.mulf %258, %264 : vector<8x128xf32>
    %266 = vector.extract_strided_slice %203 {offsets = [3, 0, 0], sizes = [1, 8, 512], strides = [1, 1, 1]} : vector<8x8x512xf32> to vector<1x8x512xf32>
    %267 = vector.shape_cast %266 : vector<1x8x512xf32> to vector<8x512xf32>
    %cst_61 = arith.constant dense<0.000000e+00> : vector<8x512xf32>
    %268 = tpu.matmul %265, %196, %cst_61 {dimension_numbers = #tpu.dot_dimension_numbers<[1], [0], [0], [1], [0, 0, 1, 1], [], []>} : vector<8x128xf32>, vector<128x512xf32>, vector<8x512xf32> -> vector<8x512xf32>
    %269 = arith.addf %267, %268 : vector<8x512xf32>
    %270 = vector.extract_strided_slice %269 {offsets = [0, 0], sizes = [8, 384], strides = [1, 1]} : vector<8x512xf32> to vector<8x384xf32>
    %271 = arith.negf %270 : vector<8x384xf32>
    %272 = math.exp %271 : vector<8x384xf32>
    %cst_62 = arith.constant 1.000000e+00 : f32
    %273 = vector.broadcast %cst_62 : f32 to vector<8x384xf32>
    %274 = arith.addf %273, %272 : vector<8x384xf32>
    %275 = arith.divf %273, %274 : vector<8x384xf32>
    %276 = vector.extract_strided_slice %275 {offsets = [0, 0], sizes = [8, 128], strides = [1, 1]} : vector<8x384xf32> to vector<8x128xf32>
    %277 = vector.extract_strided_slice %275 {offsets = [0, 128], sizes = [8, 128], strides = [1, 1]} : vector<8x384xf32> to vector<8x128xf32>
    %278 = vector.extract_strided_slice %275 {offsets = [0, 256], sizes = [8, 128], strides = [1, 1]} : vector<8x384xf32> to vector<8x128xf32>
    %279 = vector.extract_strided_slice %269 {offsets = [0, 384], sizes = [8, 128], strides = [1, 1]} : vector<8x512xf32> to vector<8x128xf32>
    %280 = math.tanh %279 : vector<8x128xf32>
    %281 = arith.mulf %277, %263 : vector<8x128xf32>
    %282 = arith.mulf %276, %280 : vector<8x128xf32>
    %283 = arith.addf %281, %282 : vector<8x128xf32>
    %284 = math.tanh %283 : vector<8x128xf32>
    %285 = arith.mulf %278, %284 : vector<8x128xf32>
    %286 = vector.extract_strided_slice %203 {offsets = [4, 0, 0], sizes = [1, 8, 512], strides = [1, 1, 1]} : vector<8x8x512xf32> to vector<1x8x512xf32>
    %287 = vector.shape_cast %286 : vector<1x8x512xf32> to vector<8x512xf32>
    %cst_63 = arith.constant dense<0.000000e+00> : vector<8x512xf32>
    %288 = tpu.matmul %285, %196, %cst_63 {dimension_numbers = #tpu.dot_dimension_numbers<[1], [0], [0], [1], [0, 0, 1, 1], [], []>} : vector<8x128xf32>, vector<128x512xf32>, vector<8x512xf32> -> vector<8x512xf32>
    %289 = arith.addf %287, %288 : vector<8x512xf32>
    %290 = vector.extract_strided_slice %289 {offsets = [0, 0], sizes = [8, 384], strides = [1, 1]} : vector<8x512xf32> to vector<8x384xf32>
    %291 = arith.negf %290 : vector<8x384xf32>
    %292 = math.exp %291 : vector<8x384xf32>
    %cst_64 = arith.constant 1.000000e+00 : f32
    %293 = vector.broadcast %cst_64 : f32 to vector<8x384xf32>
    %294 = arith.addf %293, %292 : vector<8x384xf32>
    %295 = arith.divf %293, %294 : vector<8x384xf32>
    %296 = vector.extract_strided_slice %295 {offsets = [0, 0], sizes = [8, 128], strides = [1, 1]} : vector<8x384xf32> to vector<8x128xf32>
    %297 = vector.extract_strided_slice %295 {offsets = [0, 128], sizes = [8, 128], strides = [1, 1]} : vector<8x384xf32> to vector<8x128xf32>
    %298 = vector.extract_strided_slice %295 {offsets = [0, 256], sizes = [8, 128], strides = [1, 1]} : vector<8x384xf32> to vector<8x128xf32>
    %299 = vector.extract_strided_slice %289 {offsets = [0, 384], sizes = [8, 128], strides = [1, 1]} : vector<8x512xf32> to vector<8x128xf32>
    %300 = math.tanh %299 : vector<8x128xf32>
    %301 = arith.mulf %297, %283 : vector<8x128xf32>
    %302 = arith.mulf %296, %300 : vector<8x128xf32>
    %303 = arith.addf %301, %302 : vector<8x128xf32>
    %304 = math.tanh %303 : vector<8x128xf32>
    %305 = arith.mulf %298, %304 : vector<8x128xf32>
    %306 = vector.extract_strided_slice %203 {offsets = [5, 0, 0], sizes = [1, 8, 512], strides = [1, 1, 1]} : vector<8x8x512xf32> to vector<1x8x512xf32>
    %307 = vector.shape_cast %306 : vector<1x8x512xf32> to vector<8x512xf32>
    %cst_65 = arith.constant dense<0.000000e+00> : vector<8x512xf32>
    %308 = tpu.matmul %305, %196, %cst_65 {dimension_numbers = #tpu.dot_dimension_numbers<[1], [0], [0], [1], [0, 0, 1, 1], [], []>} : vector<8x128xf32>, vector<128x512xf32>, vector<8x512xf32> -> vector<8x512xf32>
    %309 = arith.addf %307, %308 : vector<8x512xf32>
    %310 = vector.extract_strided_slice %309 {offsets = [0, 0], sizes = [8, 384], strides = [1, 1]} : vector<8x512xf32> to vector<8x384xf32>
    %311 = arith.negf %310 : vector<8x384xf32>
    %312 = math.exp %311 : vector<8x384xf32>
    %cst_66 = arith.constant 1.000000e+00 : f32
    %313 = vector.broadcast %cst_66 : f32 to vector<8x384xf32>
    %314 = arith.addf %313, %312 : vector<8x384xf32>
    %315 = arith.divf %313, %314 : vector<8x384xf32>
    %316 = vector.extract_strided_slice %315 {offsets = [0, 0], sizes = [8, 128], strides = [1, 1]} : vector<8x384xf32> to vector<8x128xf32>
    %317 = vector.extract_strided_slice %315 {offsets = [0, 128], sizes = [8, 128], strides = [1, 1]} : vector<8x384xf32> to vector<8x128xf32>
    %318 = vector.extract_strided_slice %315 {offsets = [0, 256], sizes = [8, 128], strides = [1, 1]} : vector<8x384xf32> to vector<8x128xf32>
    %319 = vector.extract_strided_slice %309 {offsets = [0, 384], sizes = [8, 128], strides = [1, 1]} : vector<8x512xf32> to vector<8x128xf32>
    %320 = math.tanh %319 : vector<8x128xf32>
    %321 = arith.mulf %317, %303 : vector<8x128xf32>
    %322 = arith.mulf %316, %320 : vector<8x128xf32>
    %323 = arith.addf %321, %322 : vector<8x128xf32>
    %324 = math.tanh %323 : vector<8x128xf32>
    %325 = arith.mulf %318, %324 : vector<8x128xf32>
    %326 = vector.extract_strided_slice %203 {offsets = [6, 0, 0], sizes = [1, 8, 512], strides = [1, 1, 1]} : vector<8x8x512xf32> to vector<1x8x512xf32>
    %327 = vector.shape_cast %326 : vector<1x8x512xf32> to vector<8x512xf32>
    %cst_67 = arith.constant dense<0.000000e+00> : vector<8x512xf32>
    %328 = tpu.matmul %325, %196, %cst_67 {dimension_numbers = #tpu.dot_dimension_numbers<[1], [0], [0], [1], [0, 0, 1, 1], [], []>} : vector<8x128xf32>, vector<128x512xf32>, vector<8x512xf32> -> vector<8x512xf32>
    %329 = arith.addf %327, %328 : vector<8x512xf32>
    %330 = vector.extract_strided_slice %329 {offsets = [0, 0], sizes = [8, 384], strides = [1, 1]} : vector<8x512xf32> to vector<8x384xf32>
    %331 = arith.negf %330 : vector<8x384xf32>
    %332 = math.exp %331 : vector<8x384xf32>
    %cst_68 = arith.constant 1.000000e+00 : f32
    %333 = vector.broadcast %cst_68 : f32 to vector<8x384xf32>
    %334 = arith.addf %333, %332 : vector<8x384xf32>
    %335 = arith.divf %333, %334 : vector<8x384xf32>
    %336 = vector.extract_strided_slice %335 {offsets = [0, 0], sizes = [8, 128], strides = [1, 1]} : vector<8x384xf32> to vector<8x128xf32>
    %337 = vector.extract_strided_slice %335 {offsets = [0, 128], sizes = [8, 128], strides = [1, 1]} : vector<8x384xf32> to vector<8x128xf32>
    %338 = vector.extract_strided_slice %335 {offsets = [0, 256], sizes = [8, 128], strides = [1, 1]} : vector<8x384xf32> to vector<8x128xf32>
    %339 = vector.extract_strided_slice %329 {offsets = [0, 384], sizes = [8, 128], strides = [1, 1]} : vector<8x512xf32> to vector<8x128xf32>
    %340 = math.tanh %339 : vector<8x128xf32>
    %341 = arith.mulf %337, %323 : vector<8x128xf32>
    %342 = arith.mulf %336, %340 : vector<8x128xf32>
    %343 = arith.addf %341, %342 : vector<8x128xf32>
    %344 = math.tanh %343 : vector<8x128xf32>
    %345 = arith.mulf %338, %344 : vector<8x128xf32>
    %346 = vector.extract_strided_slice %203 {offsets = [7, 0, 0], sizes = [1, 8, 512], strides = [1, 1, 1]} : vector<8x8x512xf32> to vector<1x8x512xf32>
    %347 = vector.shape_cast %346 : vector<1x8x512xf32> to vector<8x512xf32>
    %cst_69 = arith.constant dense<0.000000e+00> : vector<8x512xf32>
    %348 = tpu.matmul %345, %196, %cst_69 {dimension_numbers = #tpu.dot_dimension_numbers<[1], [0], [0], [1], [0, 0, 1, 1], [], []>} : vector<8x128xf32>, vector<128x512xf32>, vector<8x512xf32> -> vector<8x512xf32>
    %349 = arith.addf %347, %348 : vector<8x512xf32>
    %350 = vector.extract_strided_slice %349 {offsets = [0, 0], sizes = [8, 384], strides = [1, 1]} : vector<8x512xf32> to vector<8x384xf32>
    %351 = arith.negf %350 : vector<8x384xf32>
    %352 = math.exp %351 : vector<8x384xf32>
    %cst_70 = arith.constant 1.000000e+00 : f32
    %353 = vector.broadcast %cst_70 : f32 to vector<8x384xf32>
    %354 = arith.addf %353, %352 : vector<8x384xf32>
    %355 = arith.divf %353, %354 : vector<8x384xf32>
    %356 = vector.extract_strided_slice %355 {offsets = [0, 0], sizes = [8, 128], strides = [1, 1]} : vector<8x384xf32> to vector<8x128xf32>
    %357 = vector.extract_strided_slice %355 {offsets = [0, 128], sizes = [8, 128], strides = [1, 1]} : vector<8x384xf32> to vector<8x128xf32>
    %358 = vector.extract_strided_slice %355 {offsets = [0, 256], sizes = [8, 128], strides = [1, 1]} : vector<8x384xf32> to vector<8x128xf32>
    %359 = vector.extract_strided_slice %349 {offsets = [0, 384], sizes = [8, 128], strides = [1, 1]} : vector<8x512xf32> to vector<8x128xf32>
    %360 = math.tanh %359 : vector<8x128xf32>
    %361 = arith.mulf %357, %343 : vector<8x128xf32>
    %362 = arith.mulf %356, %360 : vector<8x128xf32>
    %363 = arith.addf %361, %362 : vector<8x128xf32>
    %364 = math.tanh %363 : vector<8x128xf32>
    %365 = arith.mulf %358, %364 : vector<8x128xf32>
    %cst_71 = arith.constant 0.000000e+00 : f32
    %366 = vector.broadcast %cst_71 : f32 to vector<8x128xf32>
    %367 = arith.maximumf %365, %366 : vector<8x128xf32>
    %c0_72 = arith.constant 0 : index
    %c0_73 = arith.constant 0 : index
    %368 = vector.load %arg8[%c0_72, %c0_73] : memref<128x128xf32, #tpu.memory_space<vmem>>, vector<128x128xf32>
    %cst_74 = arith.constant dense<0.000000e+00> : vector<8x128xf32>
    %369 = tpu.matmul %367, %368, %cst_74 {dimension_numbers = #tpu.dot_dimension_numbers<[1], [0], [0], [1], [0, 0, 1, 1], [], []>} : vector<8x128xf32>, vector<128x128xf32>, vector<8x128xf32> -> vector<8x128xf32>
    %c0_75 = arith.constant 0 : index
    %c0_76 = arith.constant 0 : index
    %370 = vector.load %arg9[%c0_75, %c0_76] : memref<1x128xf32, #tpu.memory_space<vmem>>, vector<1x128xf32>
    %371 = vector.broadcast %370 : vector<1x128xf32> to vector<8x128xf32>
    %372 = arith.addf %369, %371 : vector<8x128xf32>
    %c0_77 = arith.constant 0 : index
    %c0_78 = arith.constant 0 : index
    %373 = vector.load %arg10[%c0_77, %c0_78] : memref<8x128xf32, #tpu.memory_space<vmem>>, vector<8x128xf32>
    tpu.vector_store %arg10[%c0_77, %c0_78], %372 {strides = array<i32>} : memref<8x128xf32, #tpu.memory_space<vmem>>, vector<8x128xf32>,
    return
  }
  func.func @transform_0(%arg0: i32) -> (i32, i32, i32) {
    %c0_i32 = arith.constant 0 : i32
    %c0_i32_0 = arith.constant 0 : i32
    %c0_i32_1 = arith.constant 0 : i32
    return %c0_i32, %arg0, %c0_i32_0 : i32, i32, i32
  }
  func.func @transform_1(%arg0: i32) -> (i32, i32) {
    %c0_i32 = arith.constant 0 : i32
    %c0_i32_0 = arith.constant 0 : i32
    %c0_i32_1 = arith.constant 0 : i32
    return %c0_i32, %c0_i32_0 : i32, i32
  }
  func.func @transform_2(%arg0: i32) -> (i32, i32) {
    %c0_i32 = arith.constant 0 : i32
    %c0_i32_0 = arith.constant 0 : i32
    %c0_i32_1 = arith.constant 0 : i32
    return %c0_i32, %c0_i32_0 : i32, i32
  }
  func.func @transform_3(%arg0: i32) -> (i32, i32) {
    %c0_i32 = arith.constant 0 : i32
    %c0_i32_0 = arith.constant 0 : i32
    %c0_i32_1 = arith.constant 0 : i32
    return %c0_i32, %c0_i32_0 : i32, i32
  }
  func.func @transform_4(%arg0: i32) -> (i32, i32) {
    %c0_i32 = arith.constant 0 : i32
    %c0_i32_0 = arith.constant 0 : i32
    %c0_i32_1 = arith.constant 0 : i32
    return %c0_i32, %c0_i32_0 : i32, i32
  }
  func.func @transform_5(%arg0: i32) -> (i32, i32) {
    %c0_i32 = arith.constant 0 : i32
    %c0_i32_0 = arith.constant 0 : i32
    %c0_i32_1 = arith.constant 0 : i32
    return %c0_i32, %c0_i32_0 : i32, i32
  }
  func.func @transform_6(%arg0: i32) -> (i32, i32) {
    %c0_i32 = arith.constant 0 : i32
    %c0_i32_0 = arith.constant 0 : i32
    %c0_i32_1 = arith.constant 0 : i32
    return %c0_i32, %c0_i32_0 : i32, i32
  }
  func.func @transform_7(%arg0: i32) -> (i32, i32) {
    %c0_i32 = arith.constant 0 : i32
    %c0_i32_0 = arith.constant 0 : i32
    %c0_i32_1 = arith.constant 0 : i32
    return %c0_i32, %c0_i32_0 : i32, i32
  }
  func.func @transform_8(%arg0: i32) -> (i32, i32) {
    %c0_i32 = arith.constant 0 : i32
    %c0_i32_0 = arith.constant 0 : i32
    %c0_i32_1 = arith.constant 0 : i32
    return %c0_i32, %c0_i32_0 : i32, i32
  }
  func.func @transform_9(%arg0: i32) -> (i32, i32) {
    %c0_i32 = arith.constant 0 : i32
    %c0_i32_0 = arith.constant 0 : i32
    return %arg0, %c0_i32 : i32, i32
  }
}

</mosaic_0001>

<llo_original>
// kernel: tpu_custom_call.1
$region0: #{tpu_custom_call.1}
  #allocation0 [shape = 'u32[]', space=smem, size = 0x4, offset = 0x4, fixed_abs, tag = 'smem constant byte address 0x4 - core index']
  #allocation1 [shape = 'u32[72,128]{1,0:T(1,128)}', space=vmem, size = 0x9000, scoped, tag = 'internal scratch']
  #allocation2 [shape = 'f32[8,8,128]{2,1,0:T(8,128)}', space=vmem, size = 0x8000, scoped, tag = 'scratch operand']
  %s0 = inlined_call_operand.hbm [shape: f32[8,8,16], index: 0, kind: input, shape index: {}]
  %s1 = inlined_call_operand.hbm [shape: f32[16,512], index: 1, kind: input, shape index: {}]
  %s2 = inlined_call_operand.hbm [shape: f32[128,512], index: 2, kind: input, shape index: {}]
  %s3 = inlined_call_operand.hbm [shape: f32[1,512], index: 3, kind: input, shape index: {}]
  %s4 = inlined_call_operand.hbm [shape: f32[128,512], index: 4, kind: input, shape index: {}]
  %s5 = inlined_call_operand.hbm [shape: f32[128,512], index: 5, kind: input, shape index: {}]
  %s6 = inlined_call_operand.vmem [shape: f32[1,512], index: 6, kind: input, shape index: {}]
  %s7 = inlined_call_operand.hbm [shape: f32[128,128], index: 7, kind: input, shape index: {}]
  %s8 = inlined_call_operand.vmem [shape: f32[1,128], index: 8, kind: input, shape index: {}]
  %s9 = inlined_call_operand.hbm [shape: f32[8,128], index: 9, kind: output, shape index: {}]
  %s10 = sld [smem:[#allocation0]]
  $region74: #{tpu_custom_call.1} parent=0
    _
  %s12 = ssub.s32 1, %s10
  %s13 = scalar_select 0, %s12, %s10
  $region1: #{tpu_custom_call.1} parent=0
    #allocation3 [shape = 'u8[32768]{0}', space=vmem, size = 0x8000, scoped, tag = 'input window, operand 0, single buffered']
    #allocation4 [shape = 's32[1]{0}', space=sflag, size = 0x4, scoped, tag = 'scoped memory for tpu_custom_call.1']
    #allocation5 [shape = 's32[1]{0}', space=sflag, size = 0x4, scoped, tag = 'scoped memory for tpu_custom_call.1']
    #allocation6 [shape = 'u8[32768]{0}', space=vmem, size = 0x8000, scoped, tag = 'input window, operand 1, single buffered']
    #allocation7 [shape = 's32[1]{0}', space=sflag, size = 0x4, scoped, tag = 'scoped memory for tpu_custom_call.1']
    #allocation8 [shape = 'u8[262144]{0}', space=vmem, size = 0x40000, scoped, tag = 'input window, operand 2, single buffered']
    #allocation9 [shape = 'u8[2048]{0}', space=vmem, size = 0x800, scoped, tag = 'input window, operand 3, single buffered']
    #allocation10 [shape = 's32[1]{0}', space=sflag, size = 0x4, scoped, tag = 'scoped memory for tpu_custom_call.1']
    #allocation11 [shape = 'u8[262144]{0}', space=vmem, size = 0x40000, scoped, tag = 'input window, operand 4, single buffered']
    #allocation12 [shape = 'u8[262144]{0}', space=vmem, size = 0x40000, scoped, tag = 'input window, operand 5, single buffered']
    #allocation13 [shape = 's32[1]{0}', space=sflag, size = 0x4, scoped, tag = 'scoped memory for tpu_custom_call.1']
    #allocation14 [shape = 'u8[65536]{0}', space=vmem, size = 0x10000, scoped, tag = 'input window, operand 7, single buffered']
    #allocation15 [shape = 'u8[4096]{0}', space=vmem, size = 0x1000, scoped, tag = 'output window, operand 0, single buffered']
    %14 = vsyncpa [#allocation4], 0
    %15 = vsyncpa [#allocation7], 0
    %16 = vsyncpa [#allocation10], 0
    %17 = vsyncpa [#allocation13], 0
    %18 = vsyncpa [#allocation5], 0
    // Predicated region
    $region2: #{tpu_custom_call.1} parent=1 // pred_check
      _
    $region3: #{tpu_custom_call.1} parent=1 // pred_check_branch
      %20 = sbr.rel (0) target = $region5
    $region4: #{tpu_custom_call.1} parent=1 // pred_region
      %22 = vsyncadd [#allocation4], 0
      %s23 = sshll.u32 %s0, 4
      %s24 = int_to_ptr.hbm [resolvable:$true] %s23
      %s25 = sshll.u32 [#allocation3], 4
      %s26 = int_to_ptr.vmem [resolvable:$true] %s25
      %31 = dma.hbm_to_vmem [thread:$0]  %s24, 1024, %s26, [#allocation4], 128, 128, 8
    $region5: #{tpu_custom_call.1} parent=1 // pred_fallthru
      _
    // Predicated region
    $region6: #{tpu_custom_call.1} parent=1 // pred_check
      _
    $region7: #{tpu_custom_call.1} parent=1 // pred_check_branch
      %33 = sbr.rel (0) target = $region9
    $region8: #{tpu_custom_call.1} parent=1 // pred_region
      %35 = vsyncadd [#allocation7], 0
      %s36 = sshll.u32 %s1, 4
      %s37 = int_to_ptr.hbm [resolvable:$true] %s36
      %s38 = sshll.u32 [#allocation6], 4
      %s39 = int_to_ptr.vmem [resolvable:$true] %s38
      %44 = dma.hbm_to_vmem [thread:$0]  %s37, 1024, %s39, [#allocation7], 512, 512, 32
    $region9: #{tpu_custom_call.1} parent=1 // pred_fallthru
      _
    // Predicated region
    $region10: #{tpu_custom_call.1} parent=1 // pred_check
      _
    $region11: #{tpu_custom_call.1} parent=1 // pred_check_branch
      %46 = sbr.rel (0) target = $region13
    $region12: #{tpu_custom_call.1} parent=1 // pred_region
      %48 = vsyncadd [#allocation7], 0
      %s49 = sshll.u32 %s2, 4
      %s50 = int_to_ptr.hbm [resolvable:$true] %s49
      %s51 = sshll.u32 [#allocation8], 4
      %s52 = int_to_ptr.vmem [resolvable:$true] %s51
      %57 = dma.hbm_to_vmem [thread:$0]  %s50, 8192, %s52, [#allocation7], 512, 512, 32
    $region13: #{tpu_custom_call.1} parent=1 // pred_fallthru
      _
    // Predicated region
    $region14: #{tpu_custom_call.1} parent=1 // pred_check
      _
    $region15: #{tpu_custom_call.1} parent=1 // pred_check_branch
      %59 = sbr.rel (0) target = $region17
    $region16: #{tpu_custom_call.1} parent=1 // pred_region
      %61 = vsyncadd [#allocation10], 0
      %s63 = sshll.u32 %s3, 4
      %s64 = int_to_ptr.hbm [resolvable:$true] %s63
      %s65 = sshll.u32 [#allocation9], 4
      %s66 = int_to_ptr.vmem [resolvable:$true] %s65
      %68 = dma.hbm_to_vmem [thread:$0]  %s64, 64, %s66, [#allocation10]
    $region17: #{tpu_custom_call.1} parent=1 // pred_fallthru
      _
    // Predicated region
    $region18: #{tpu_custom_call.1} parent=1 // pred_check
      _
    $region19: #{tpu_custom_call.1} parent=1 // pred_check_branch
      %70 = sbr.rel (0) target = $region21
    $region20: #{tpu_custom_call.1} parent=1 // pred_region
      %72 = vsyncadd [#allocation10], 0
      %s73 = sshll.u32 %s4, 4
      %s74 = int_to_ptr.hbm [resolvable:$true] %s73
      %s75 = sshll.u32 [#allocation11], 4
      %s76 = int_to_ptr.vmem [resolvable:$true] %s75
      %81 = dma.hbm_to_vmem [thread:$0]  %s74, 8192, %s76, [#allocation10], 512, 512, 32
    $region21: #{tpu_custom_call.1} parent=1 // pred_fallthru
      _
    // Predicated region
    $region22: #{tpu_custom_call.1} parent=1 // pred_check
      _
    $region23: #{tpu_custom_call.1} parent=1 // pred_check_branch
      %83 = sbr.rel (0) target = $region25
    $region24: #{tpu_custom_call.1} parent=1 // pred_region
      %85 = vsyncadd [#allocation13], 0
      %s86 = sshll.u32 %s5, 4
      %s87 = int_to_ptr.hbm [resolvable:$true] %s86
      %s88 = sshll.u32 [#allocation12], 4
      %s89 = int_to_ptr.vmem [resolvable:$true] %s88
      %94 = dma.hbm_to_vmem [thread:$0]  %s87, 8192, %s89, [#allocation13], 512, 512, 32
    $region25: #{tpu_custom_call.1} parent=1 // pred_fallthru
      _
    // Predicated region
    $region26: #{tpu_custom_call.1} parent=1 // pred_check
      _
    $region27: #{tpu_custom_call.1} parent=1 // pred_check_branch
      %96 = sbr.rel (0) target = $region29
    $region28: #{tpu_custom_call.1} parent=1 // pred_region
      _
    $region29: #{tpu_custom_call.1} parent=1 // pred_fallthru
      _
    // Predicated region
    $region30: #{tpu_custom_call.1} parent=1 // pred_check
      _
    $region31: #{tpu_custom_call.1} parent=1 // pred_check_branch
      %98 = sbr.rel (0) target = $region33
    $region32: #{tpu_custom_call.1} parent=1 // pred_region
      %100 = vsyncadd [#allocation13], 0
      %s101 = sshll.u32 %s7, 4
      %s102 = int_to_ptr.hbm [resolvable:$true] %s101
      %s103 = sshll.u32 [#allocation14], 4
      %s104 = int_to_ptr.vmem [resolvable:$true] %s103
      %109 = dma.hbm_to_vmem [thread:$0]  %s102, 2048, %s104, [#allocation13], 128, 128, 8
    $region33: #{tpu_custom_call.1} parent=1 // pred_fallthru
      _
    // Predicated region
    $region34: #{tpu_custom_call.1} parent=1 // pred_check
      _
    $region35: #{tpu_custom_call.1} parent=1 // pred_check_branch
      %111 = sbr.rel (0) target = $region37
    $region36: #{tpu_custom_call.1} parent=1 // pred_region
      _
    $region37: #{tpu_custom_call.1} parent=1 // pred_fallthru
      _
    // Predicated region
    $region38: #{tpu_custom_call.1} parent=1 // pred_check
      _
    $region39: #{tpu_custom_call.1} parent=1 // pred_check_branch
      %113 = sbr.rel (0) target = $region41
    $region40: #{tpu_custom_call.1} parent=1 // pred_region
      %115 = dma.done [#allocation4], 1024
    $region41: #{tpu_custom_call.1} parent=1 // pred_fallthru
      _
    // Predicated region
    $region42: #{tpu_custom_call.1} parent=1 // pred_check
      _
    $region43: #{tpu_custom_call.1} parent=1 // pred_check_branch
      %117 = sbr.rel (0) target = $region45
    $region44: #{tpu_custom_call.1} parent=1 // pred_region
      %119 = dma.done [#allocation7], 1024
    $region45: #{tpu_custom_call.1} parent=1 // pred_fallthru
      _
    // Predicated region
    $region46: #{tpu_custom_call.1} parent=1 // pred_check
      _
    $region47: #{tpu_custom_call.1} parent=1 // pred_check_branch
      %121 = sbr.rel (0) target = $region49
    $region48: #{tpu_custom_call.1} parent=1 // pred_region
      %123 = dma.done [#allocation7], 8192
    $region49: #{tpu_custom_call.1} parent=1 // pred_fallthru
      _
    // Predicated region
    $region50: #{tpu_custom_call.1} parent=1 // pred_check
      _
    $region51: #{tpu_custom_call.1} parent=1 // pred_check_branch
      %125 = sbr.rel (0) target = $region53
    $region52: #{tpu_custom_call.1} parent=1 // pred_region
      %127 = dma.done [#allocation10], 64
    $region53: #{tpu_custom_call.1} parent=1 // pred_fallthru
      _
    // Predicated region
    $region54: #{tpu_custom_call.1} parent=1 // pred_check
      _
    $region55: #{tpu_custom_call.1} parent=1 // pred_check_branch
      %129 = sbr.rel (0) target = $region57
    $region56: #{tpu_custom_call.1} parent=1 // pred_region
      %131 = dma.done [#allocation10], 8192
    $region57: #{tpu_custom_call.1} parent=1 // pred_fallthru
      _
    // Predicated region
    $region58: #{tpu_custom_call.1} parent=1 // pred_check
      _
    $region59: #{tpu_custom_call.1} parent=1 // pred_check_branch
      %133 = sbr.rel (0) target = $region61
    $region60: #{tpu_custom_call.1} parent=1 // pred_region
      %135 = dma.done [#allocation13], 8192
    $region61: #{tpu_custom_call.1} parent=1 // pred_fallthru
      _
    // Predicated region
    $region62: #{tpu_custom_call.1} parent=1 // pred_check
      _
    $region63: #{tpu_custom_call.1} parent=1 // pred_check_branch
      %137 = sbr.rel (0) target = $region65
    $region64: #{tpu_custom_call.1} parent=1 // pred_region
      %139 = dma.done [#allocation13], 2048
    $region65: #{tpu_custom_call.1} parent=1 // pred_fallthru
      _
    %v140 = vld [vmem:[#allocation6] sm:$0xff]
    %v141 = vld [vmem:[#allocation6 + $0x8] sm:$0xff]
    %v142 = vld [vmem:[#allocation6 + $0x10] sm:$0xff]
    %v143 = vld [vmem:[#allocation6 + $0x18] sm:$0xff]
    %v144 = vld [vmem:[#allocation6 + $0x20] sm:$0xff]
    %v145 = vld [vmem:[#allocation6 + $0x28] sm:$0xff]
    %v146 = vld [vmem:[#allocation6 + $0x30] sm:$0xff]
    %v147 = vld [vmem:[#allocation6 + $0x38] sm:$0xff]
    %v148 = vld [vmem:[#allocation8] sm:$0xff]
    %v149 = vld [vmem:[#allocation8 + $0x8] sm:$0xff]
    %v150 = vld [vmem:[#allocation8 + $0x10] sm:$0xff]
    %v151 = vld [vmem:[#allocation8 + $0x18] sm:$0xff]
    %v152 = vld [vmem:[#allocation8 + $0x20] sm:$0xff]
    %v153 = vld [vmem:[#allocation8 + $0x28] sm:$0xff]
    %v154 = vld [vmem:[#allocation8 + $0x30] sm:$0xff]
    %v155 = vld [vmem:[#allocation8 + $0x38] sm:$0xff]
    %v156 = vld [vmem:[#allocation8 + $0x40] sm:$0xff]
    %v157 = vld [vmem:[#allocation8 + $0x48] sm:$0xff]
    %v158 = vld [vmem:[#allocation8 + $0x50] sm:$0xff]
    %v159 = vld [vmem:[#allocation8 + $0x58] sm:$0xff]
    %v160 = vld [vmem:[#allocation8 + $0x60] sm:$0xff]
    %v161 = vld [vmem:[#allocation8 + $0x68] sm:$0xff]
    %v162 = vld [vmem:[#allocation8 + $0x70] sm:$0xff]
    %v163 = vld [vmem:[#allocation8 + $0x78] sm:$0xff]
    %v164 = vld [vmem:[#allocation8 + $0x80] sm:$0xff]
    %v165 = vld [vmem:[#allocation8 + $0x88] sm:$0xff]
    %v166 = vld [vmem:[#allocation8 + $0x90] sm:$0xff]
    %v167 = vld [vmem:[#allocation8 + $0x98] sm:$0xff]
    %v168 = vld [vmem:[#allocation8 + $0xa0] sm:$0xff]
    %v169 = vld [vmem:[#allocation8 + $0xa8] sm:$0xff]
    %v170 = vld [vmem:[#allocation8 + $0xb0] sm:$0xff]
    %v171 = vld [vmem:[#allocation8 + $0xb8] sm:$0xff]
    %v172 = vld [vmem:[#allocation8 + $0xc0] sm:$0xff]
    %v173 = vld [vmem:[#allocation8 + $0xc8] sm:$0xff]
    %v174 = vld [vmem:[#allocation8 + $0xd0] sm:$0xff]
    %v175 = vld [vmem:[#allocation8 + $0xd8] sm:$0xff]
    %v176 = vld [vmem:[#allocation8 + $0xe0] sm:$0xff]
    %v177 = vld [vmem:[#allocation8 + $0xe8] sm:$0xff]
    %v178 = vld [vmem:[#allocation8 + $0xf0] sm:$0xff]
    %v179 = vld [vmem:[#allocation8 + $0xf8] sm:$0xff]
    %v180 = vld [vmem:[#allocation8 + $0x100] sm:$0xff]
    %v181 = vld [vmem:[#allocation8 + $0x108] sm:$0xff]
    %v182 = vld [vmem:[#allocation8 + $0x110] sm:$0xff]
    %v183 = vld [vmem:[#allocation8 + $0x118] sm:$0xff]
    %v184 = vld [vmem:[#allocation8 + $0x120] sm:$0xff]
    %v185 = vld [vmem:[#allocation8 + $0x128] sm:$0xff]
    %v186 = vld [vmem:[#allocation8 + $0x130] sm:$0xff]
    %v187 = vld [vmem:[#allocation8 + $0x138] sm:$0xff]
    %v188 = vld [vmem:[#allocation8 + $0x140] sm:$0xff]
    %v189 = vld [vmem:[#allocation8 + $0x148] sm:$0xff]
    %v190 = vld [vmem:[#allocation8 + $0x150] sm:$0xff]
    %v191 = vld [vmem:[#allocation8 + $0x158] sm:$0xff]
    %v192 = vld [vmem:[#allocation8 + $0x160] sm:$0xff]
    %v193 = vld [vmem:[#allocation8 + $0x168] sm:$0xff]
    %v194 = vld [vmem:[#allocation8 + $0x170] sm:$0xff]
    %v195 = vld [vmem:[#allocation8 + $0x178] sm:$0xff]
    %v196 = vld [vmem:[#allocation8 + $0x180] sm:$0xff]
    %v197 = vld [vmem:[#allocation8 + $0x188] sm:$0xff]
    %v198 = vld [vmem:[#allocation8 + $0x190] sm:$0xff]
    %v199 = vld [vmem:[#allocation8 + $0x198] sm:$0xff]
    %v200 = vld [vmem:[#allocation8 + $0x1a0] sm:$0xff]
    %v201 = vld [vmem:[#allocation8 + $0x1a8] sm:$0xff]
    %v202 = vld [vmem:[#allocation8 + $0x1b0] sm:$0xff]
    %v203 = vld [vmem:[#allocation8 + $0x1b8] sm:$0xff]
    %v204 = vld [vmem:[#allocation8 + $0x1c0] sm:$0xff]
    %v205 = vld [vmem:[#allocation8 + $0x1c8] sm:$0xff]
    %v206 = vld [vmem:[#allocation8 + $0x1d0] sm:$0xff]
    %v207 = vld [vmem:[#allocation8 + $0x1d8] sm:$0xff]
    %v208 = vld [vmem:[#allocation8 + $0x1e0] sm:$0xff]
    %v209 = vld [vmem:[#allocation8 + $0x1e8] sm:$0xff]
    %v210 = vld [vmem:[#allocation8 + $0x1f0] sm:$0xff]
    %v211 = vld [vmem:[#allocation8 + $0x1f8] sm:$0xff]
    %v212 = vld [vmem:[#allocation9] sm:$0xf]
    %v213 = vld [vmem:[#allocation3] sm:$0xff]
    %v214 = vld [vmem:[#allocation3 + $0x8] sm:$0xff]
    %v215 = vld [vmem:[#allocation3 + $0x10] sm:$0xff]
    %v216 = vld [vmem:[#allocation3 + $0x18] sm:$0xff]
    %v217 = vld [vmem:[#allocation3 + $0x20] sm:$0xff]
    %v218 = vld [vmem:[#allocation3 + $0x28] sm:$0xff]
    %v219 = vld [vmem:[#allocation3 + $0x30] sm:$0xff]
    %v220 = vld [vmem:[#allocation3 + $0x38] sm:$0xff]
    %v222 = vperm.slane %v212, 0
    %v223 = vperm.slane %v212, 1
    %v224 = vperm.slane %v212, 2
    %v225 = vperm.slane %v212, 3
    %vm230 = vcmask 130048
    %v232 = vsel %vm230, %v213, 0
    %v235 = vsel %vm230, %v214, 0
    %v238 = vsel %vm230, %v215, 0
    %v241 = vsel %vm230, %v216, 0
    %v244 = vsel %vm230, %v217, 0
    %v247 = vsel %vm230, %v218, 0
    %v250 = vsel %vm230, %v219, 0
    %v253 = vsel %vm230, %v220, 0
    %255 = vmatpush.msra.mxu0 0.0
    %256 = vmatpush.msra.mxu0 0.0
    %257 = vmatpush.msra.mxu0 0.0
    %258 = vmatpush.msra.mxu0 0.0
    %259 = vmatpush.msra.mxu0 0.0
    %260 = vmatpush.msra.mxu0 0.0
    %261 = vmatpush.msra.mxu0 0.0
    %262 = vmatpush.msra.mxu0 0.0
    %263 = vmatpush.msra.mxu0 0.0
    %264 = vmatpush.msra.mxu0 0.0
    %265 = vmatpush.msra.mxu0 0.0
    %266 = vmatpush.msra.mxu0 0.0
    %267 = vmatpush.msra.mxu0 0.0
    %268 = vmatpush.msra.mxu0 0.0
    %269 = vmatpush.msra.mxu0 %v144
    %270 = vmatpush.msra.mxu0 %v140
    %271 = vmatmul.f32.gmra.mxu0 %v232
    %v272 = vpop.f32.mrf.mxu0
    %v273 = vadd.f32 %v222, %v272
    %274 = vmatmul.f32.gmra.mxu0 %v235
    %v275 = vpop.f32.mrf.mxu0
    %v276 = vadd.f32 %v222, %v275
    %277 = vmatmul.f32.gmra.mxu0 %v238
    %v278 = vpop.f32.mrf.mxu0
    %v279 = vadd.f32 %v222, %v278
    %280 = vmatmul.f32.gmra.mxu0 %v241
    %v281 = vpop.f32.mrf.mxu0
    %v282 = vadd.f32 %v222, %v281
    %283 = vmatmul.f32.gmra.mxu0 %v244
    %v284 = vpop.f32.mrf.mxu0
    %v285 = vadd.f32 %v222, %v284
    %286 = vmatmul.f32.gmra.mxu0 %v247
    %v287 = vpop.f32.mrf.mxu0
    %v288 = vadd.f32 %v222, %v287
    %289 = vmatmul.f32.gmra.mxu0 %v250
    %v290 = vpop.f32.mrf.mxu0
    %v291 = vadd.f32 %v222, %v290
    %292 = vmatmul.f32.gmra.mxu0 %v253
    %v293 = vpop.f32.mrf.mxu0
    %v294 = vadd.f32 %v222, %v293
    %295 = vdwg.mxu0
    %296 = vmatpush.msra.mxu0 0.0
    %297 = vmatpush.msra.mxu0 0.0
    %298 = vmatpush.msra.mxu0 0.0
    %299 = vmatpush.msra.mxu0 0.0
    %300 = vmatpush.msra.mxu0 0.0
    %301 = vmatpush.msra.mxu0 0.0
    %302 = vmatpush.msra.mxu0 0.0
    %303 = vmatpush.msra.mxu0 0.0
    %304 = vmatpush.msra.mxu0 0.0
    %305 = vmatpush.msra.mxu0 0.0
    %306 = vmatpush.msra.mxu0 0.0
    %307 = vmatpush.msra.mxu0 0.0
    %308 = vmatpush.msra.mxu0 0.0
    %309 = vmatpush.msra.mxu0 0.0
    %310 = vmatpush.msra.mxu0 %v145
    %311 = vmatpush.msra.mxu0 %v141
    %312 = vmatmul.f32.gmra.mxu0 %v232
    %v313 = vpop.f32.mrf.mxu0
    %v314 = vadd.f32 %v223, %v313
    %315 = vmatmul.f32.gmra.mxu0 %v235
    %v316 = vpop.f32.mrf.mxu0
    %v317 = vadd.f32 %v223, %v316
    %318 = vmatmul.f32.gmra.mxu0 %v238
    %v319 = vpop.f32.mrf.mxu0
    %v320 = vadd.f32 %v223, %v319
    %321 = vmatmul.f32.gmra.mxu0 %v241
    %v322 = vpop.f32.mrf.mxu0
    %v323 = vadd.f32 %v223, %v322
    %324 = vmatmul.f32.gmra.mxu0 %v244
    %v325 = vpop.f32.mrf.mxu0
    %v326 = vadd.f32 %v223, %v325
    %327 = vmatmul.f32.gmra.mxu0 %v247
    %v328 = vpop.f32.mrf.mxu0
    %v329 = vadd.f32 %v223, %v328
    %330 = vmatmul.f32.gmra.mxu0 %v250
    %v331 = vpop.f32.mrf.mxu0
    %v332 = vadd.f32 %v223, %v331
    %333 = vmatmul.f32.gmra.mxu0 %v253
    %v334 = vpop.f32.mrf.mxu0
    %v335 = vadd.f32 %v223, %v334
    %336 = vdwg.mxu0
    %337 = vmatpush.msra.mxu0 0.0
    %338 = vmatpush.msra.mxu0 0.0
    %339 = vmatpush.msra.mxu0 0.0
    %340 = vmatpush.msra.mxu0 0.0
    %341 = vmatpush.msra.mxu0 0.0
    %342 = vmatpush.msra.mxu0 0.0
    %343 = vmatpush.msra.mxu0 0.0
    %344 = vmatpush.msra.mxu0 0.0
    %345 = vmatpush.msra.mxu0 0.0
    %346 = vmatpush.msra.mxu0 0.0
    %347 = vmatpush.msra.mxu0 0.0
    %348 = vmatpush.msra.mxu0 0.0
    %349 = vmatpush.msra.mxu0 0.0
    %350 = vmatpush.msra.mxu0 0.0
    %351 = vmatpush.msra.mxu0 %v146
    %352 = vmatpush.msra.mxu0 %v142
    %353 = vmatmul.f32.gmra.mxu0 %v232
    %v354 = vpop.f32.mrf.mxu0
    %v355 = vadd.f32 %v224, %v354
    %356 = vmatmul.f32.gmra.mxu0 %v235
    %v357 = vpop.f32.mrf.mxu0
    %v358 = vadd.f32 %v224, %v357
    %359 = vmatmul.f32.gmra.mxu0 %v238
    %v360 = vpop.f32.mrf.mxu0
    %v361 = vadd.f32 %v224, %v360
    %362 = vmatmul.f32.gmra.mxu0 %v241
    %v363 = vpop.f32.mrf.mxu0
    %v364 = vadd.f32 %v224, %v363
    %365 = vmatmul.f32.gmra.mxu0 %v244
    %v366 = vpop.f32.mrf.mxu0
    %v367 = vadd.f32 %v224, %v366
    %368 = vmatmul.f32.gmra.mxu0 %v247
    %v369 = vpop.f32.mrf.mxu0
    %v370 = vadd.f32 %v224, %v369
    %371 = vmatmul.f32.gmra.mxu0 %v250
    %v372 = vpop.f32.mrf.mxu0
    %v373 = vadd.f32 %v224, %v372
    %374 = vmatmul.f32.gmra.mxu0 %v253
    %v375 = vpop.f32.mrf.mxu0
    %v376 = vadd.f32 %v224, %v375
    %377 = vdwg.mxu0
    %378 = vmatpush.msra.mxu0 0.0
    %379 = vmatpush.msra.mxu0 0.0
    %380 = vmatpush.msra.mxu0 0.0
    %381 = vmatpush.msra.mxu0 0.0
    %382 = vmatpush.msra.mxu0 0.0
    %383 = vmatpush.msra.mxu0 0.0
    %384 = vmatpush.msra.mxu0 0.0
    %385 = vmatpush.msra.mxu0 0.0
    %386 = vmatpush.msra.mxu0 0.0
    %387 = vmatpush.msra.mxu0 0.0
    %388 = vmatpush.msra.mxu0 0.0
    %389 = vmatpush.msra.mxu0 0.0
    %390 = vmatpush.msra.mxu0 0.0
    %391 = vmatpush.msra.mxu0 0.0
    %392 = vmatpush.msra.mxu0 %v147
    %393 = vmatpush.msra.mxu0 %v143
    %394 = vmatmul.f32.gmra.mxu0 %v232
    %v395 = vpop.f32.mrf.mxu0
    %v396 = vadd.f32 %v225, %v395
    %397 = vmatmul.f32.gmra.mxu0 %v235
    %v398 = vpop.f32.mrf.mxu0
    %v399 = vadd.f32 %v225, %v398
    %400 = vmatmul.f32.gmra.mxu0 %v238
    %v401 = vpop.f32.mrf.mxu0
    %v402 = vadd.f32 %v225, %v401
    %403 = vmatmul.f32.gmra.mxu0 %v241
    %v404 = vpop.f32.mrf.mxu0
    %v405 = vadd.f32 %v225, %v404
    %406 = vmatmul.f32.gmra.mxu0 %v244
    %v407 = vpop.f32.mrf.mxu0
    %v408 = vadd.f32 %v225, %v407
    %409 = vmatmul.f32.gmra.mxu0 %v247
    %v410 = vpop.f32.mrf.mxu0
    %v411 = vadd.f32 %v225, %v410
    %412 = vmatmul.f32.gmra.mxu0 %v250
    %v413 = vpop.f32.mrf.mxu0
    %v414 = vadd.f32 %v225, %v413
    %415 = vmatmul.f32.gmra.mxu0 %v253
    %v416 = vpop.f32.mrf.mxu0
    %v417 = vadd.f32 %v225, %v416
    %418 = vdwg.mxu0
    %419 = vmatpush.msra.mxu0 %v208
    %420 = vmatpush.msra.mxu0 %v204
    %421 = vmatpush.msra.mxu0 %v200
    %422 = vmatpush.msra.mxu0 %v196
    %423 = vmatpush.msra.mxu0 %v192
    %424 = vmatpush.msra.mxu0 %v188
    %425 = vmatpush.msra.mxu0 %v184
    %426 = vmatpush.msra.mxu0 %v180
    %427 = vmatpush.msra.mxu0 %v176
    %428 = vmatpush.msra.mxu0 %v172
    %429 = vmatpush.msra.mxu0 %v168
    %430 = vmatpush.msra.mxu0 %v164
    %431 = vmatpush.msra.mxu0 %v160
    %432 = vmatpush.msra.mxu0 %v156
    %433 = vmatpush.msra.mxu0 %v152
    %434 = vmatpush.msra.mxu0 %v148
    %435 = vmatmul.f32.gmra.mxu0 0.0
    %v436 = vpop.f32.mrf.mxu0
    %v437 = vadd.f32 0.0, %v436
    %438 = vdwg.mxu0
    %439 = vmatpush.msra.mxu0 %v209
    %440 = vmatpush.msra.mxu0 %v205
    %441 = vmatpush.msra.mxu0 %v201
    %442 = vmatpush.msra.mxu0 %v197
    %443 = vmatpush.msra.mxu0 %v193
    %444 = vmatpush.msra.mxu0 %v189
    %445 = vmatpush.msra.mxu0 %v185
    %446 = vmatpush.msra.mxu0 %v181
    %447 = vmatpush.msra.mxu0 %v177
    %448 = vmatpush.msra.mxu0 %v173
    %449 = vmatpush.msra.mxu0 %v169
    %450 = vmatpush.msra.mxu0 %v165
    %451 = vmatpush.msra.mxu0 %v161
    %452 = vmatpush.msra.mxu0 %v157
    %453 = vmatpush.msra.mxu0 %v153
    %454 = vmatpush.msra.mxu0 %v149
    %455 = vmatmul.f32.gmra.mxu0 0.0
    %v456 = vpop.f32.mrf.mxu0
    %v457 = vadd.f32 0.0, %v456
    %458 = vdwg.mxu0
    %459 = vmatpush.msra.mxu0 %v210
    %460 = vmatpush.msra.mxu0 %v206
    %461 = vmatpush.msra.mxu0 %v202
    %462 = vmatpush.msra.mxu0 %v198
    %463 = vmatpush.msra.mxu0 %v194
    %464 = vmatpush.msra.mxu0 %v190
    %465 = vmatpush.msra.mxu0 %v186
    %466 = vmatpush.msra.mxu0 %v182
    %467 = vmatpush.msra.mxu0 %v178
    %468 = vmatpush.msra.mxu0 %v174
    %469 = vmatpush.msra.mxu0 %v170
    %470 = vmatpush.msra.mxu0 %v166
    %471 = vmatpush.msra.mxu0 %v162
    %472 = vmatpush.msra.mxu0 %v158
    %473 = vmatpush.msra.mxu0 %v154
    %474 = vmatpush.msra.mxu0 %v150
    %475 = vmatmul.f32.gmra.mxu0 0.0
    %v476 = vpop.f32.mrf.mxu0
    %v477 = vadd.f32 0.0, %v476
    %478 = vdwg.mxu0
    %479 = vmatpush.msra.mxu0 %v211
    %480 = vmatpush.msra.mxu0 %v207
    %481 = vmatpush.msra.mxu0 %v203
    %482 = vmatpush.msra.mxu0 %v199
    %483 = vmatpush.msra.mxu0 %v195
    %484 = vmatpush.msra.mxu0 %v191
    %485 = vmatpush.msra.mxu0 %v187
    %486 = vmatpush.msra.mxu0 %v183
    %487 = vmatpush.msra.mxu0 %v179
    %488 = vmatpush.msra.mxu0 %v175
    %489 = vmatpush.msra.mxu0 %v171
    %490 = vmatpush.msra.mxu0 %v167
    %491 = vmatpush.msra.mxu0 %v163
    %492 = vmatpush.msra.mxu0 %v159
    %493 = vmatpush.msra.mxu0 %v155
    %494 = vmatpush.msra.mxu0 %v151
    %495 = vmatmul.f32.gmra.mxu0 0.0
    %v496 = vpop.f32.mrf.mxu0
    %v497 = vadd.f32 0.0, %v496
    %498 = vdwg.mxu0
    %v499 = vadd.f32 %v273, %v437
    %v500 = vadd.f32 %v314, %v457
    %v501 = vadd.f32 %v355, %v477
    %v502 = vadd.f32 %v396, %v497
    %v503 = vxor.u32 %v499, 2147483648
    %v504 = vxor.u32 %v500, 2147483648
    %v505 = vxor.u32 %v501, 2147483648
    %v506 = vmul.f32 %v503, 1.442695
    %v507 = vpow.pop %v506
    %v508 = vmul.f32 %v504, 1.442695
    %v509 = vpow.pop %v508
    %v510 = vmul.f32 %v505, 1.442695
    %v511 = vpow.pop %v510
    %v512 = vadd.f32 %v507, 1.0
    %v513 = vadd.f32 %v509, 1.0
    %v514 = vadd.f32 %v511, 1.0
    %v515 = vrcp.pop %v512
    %v516 = vmul.f32 %v512, %v515
    %v517 = vsub.f32 1.0, %v516
    %v518 = vmul.f32 %v515, %v517
    %v519 = vadd.f32 %v515, %v518
    %vm520 = vweird.f32 %v512
    %vm521 = vweird.f32 %v515
    %vm522 = vmor %vm520, %vm521
    %v523 = vsel %vm522, %v515, %v519
    %v524 = vand.u32 2147483647, %v512
    %vm525 = vcmp.eq.f32.partialorder %v524, 8.507059e+37
    %v526 = vand.u32 %v512, 2147483648
    %v527 = vor.u32 1.1754944e-38, %v526
    %v528 = vsel %vm525, %v527, %v523
    %v529 = vmul.f32 1.0, %v528
    %v530 = vrcp.pop %v513
    %v531 = vmul.f32 %v513, %v530
    %v532 = vsub.f32 1.0, %v531
    %v533 = vmul.f32 %v530, %v532
    %v534 = vadd.f32 %v530, %v533
    %vm535 = vweird.f32 %v513
    %vm536 = vweird.f32 %v530
    %vm537 = vmor %vm535, %vm536
    %v538 = vsel %vm537, %v530, %v534
    %v539 = vand.u32 2147483647, %v513
    %vm540 = vcmp.eq.f32.partialorder %v539, 8.507059e+37
    %v541 = vand.u32 %v513, 2147483648
    %v542 = vor.u32 1.1754944e-38, %v541
    %v543 = vsel %vm540, %v542, %v538
    %v544 = vmul.f32 1.0, %v543
    %v545 = vrcp.pop %v514
    %v546 = vmul.f32 %v514, %v545
    %v547 = vsub.f32 1.0, %v546
    %v548 = vmul.f32 %v545, %v547
    %v549 = vadd.f32 %v545, %v548
    %vm550 = vweird.f32 %v514
    %vm551 = vweird.f32 %v545
    %vm552 = vmor %vm550, %vm551
    %v553 = vsel %vm552, %v545, %v549
    %v554 = vand.u32 2147483647, %v514
    %vm555 = vcmp.eq.f32.partialorder %v554, 8.507059e+37
    %v556 = vand.u32 %v514, 2147483648
    %v557 = vor.u32 1.1754944e-38, %v556
    %v558 = vsel %vm555, %v557, %v553
    %v559 = vmul.f32 1.0, %v558
    %v560 = vtanh.pop %v502
    %v561 = vmul.f32 %v544, 0.0
    %v562 = vmul.f32 %v529, %v560
    %v563 = vadd.f32 %v561, %v562
    %v564 = vtanh.pop %v563
    %v565 = vmul.f32 %v559, %v564
    %566 = vst [vmem:[#allocation2] sm:$0xff] %v565
    %567 = vmatpush.msra.mxu0 %v208
    %568 = vmatpush.msra.mxu0 %v204
    %569 = vmatpush.msra.mxu0 %v200
    %570 = vmatpush.msra.mxu0 %v196
    %571 = vmatpush.msra.mxu0 %v192
    %572 = vmatpush.msra.mxu0 %v188
    %573 = vmatpush.msra.mxu0 %v184
    %574 = vmatpush.msra.mxu0 %v180
    %575 = vmatpush.msra.mxu0 %v176
    %576 = vmatpush.msra.mxu0 %v172
    %577 = vmatpush.msra.mxu0 %v168
    %578 = vmatpush.msra.mxu0 %v164
    %579 = vmatpush.msra.mxu0 %v160
    %580 = vmatpush.msra.mxu0 %v156
    %581 = vmatpush.msra.mxu0 %v152
    %582 = vmatpush.msra.mxu0 %v148
    %583 = vmatmul.f32.gmra.mxu0 %v565
    %v584 = vpop.f32.mrf.mxu0
    %v585 = vadd.f32 0.0, %v584
    %586 = vdwg.mxu0
    %587 = vmatpush.msra.mxu0 %v209
    %588 = vmatpush.msra.mxu0 %v205
    %589 = vmatpush.msra.mxu0 %v201
    %590 = vmatpush.msra.mxu0 %v197
    %591 = vmatpush.msra.mxu0 %v193
    %592 = vmatpush.msra.mxu0 %v189
    %593 = vmatpush.msra.mxu0 %v185
    %594 = vmatpush.msra.mxu0 %v181
    %595 = vmatpush.msra.mxu0 %v177
    %596 = vmatpush.msra.mxu0 %v173
    %597 = vmatpush.msra.mxu0 %v169
    %598 = vmatpush.msra.mxu0 %v165
    %599 = vmatpush.msra.mxu0 %v161
    %600 = vmatpush.msra.mxu0 %v157
    %601 = vmatpush.msra.mxu0 %v153
    %602 = vmatpush.msra.mxu0 %v149
    %603 = vmatmul.f32.gmra.mxu0 %v565
    %v604 = vpop.f32.mrf.mxu0
    %v605 = vadd.f32 0.0, %v604
    %606 = vdwg.mxu0
    %607 = vmatpush.msra.mxu0 %v210
    %608 = vmatpush.msra.mxu0 %v206
    %609 = vmatpush.msra.mxu0 %v202
    %610 = vmatpush.msra.mxu0 %v198
    %611 = vmatpush.msra.mxu0 %v194
    %612 = vmatpush.msra.mxu0 %v190
    %613 = vmatpush.msra.mxu0 %v186
    %614 = vmatpush.msra.mxu0 %v182
    %615 = vmatpush.msra.mxu0 %v178
    %616 = vmatpush.msra.mxu0 %v174
    %617 = vmatpush.msra.mxu0 %v170
    %618 = vmatpush.msra.mxu0 %v166
    %619 = vmatpush.msra.mxu0 %v162
    %620 = vmatpush.msra.mxu0 %v158
    %621 = vmatpush.msra.mxu0 %v154
    %622 = vmatpush.msra.mxu0 %v150
    %623 = vmatmul.f32.gmra.mxu0 %v565
    %v624 = vpop.f32.mrf.mxu0
    %v625 = vadd.f32 0.0, %v624
    %626 = vdwg.mxu0
    %627 = vmatpush.msra.mxu0 %v211
    %628 = vmatpush.msra.mxu0 %v207
    %629 = vmatpush.msra.mxu0 %v203
    %630 = vmatpush.msra.mxu0 %v199
    %631 = vmatpush.msra.mxu0 %v195
    %632 = vmatpush.msra.mxu0 %v191
    %633 = vmatpush.msra.mxu0 %v187
    %634 = vmatpush.msra.mxu0 %v183
    %635 = vmatpush.msra.mxu0 %v179
    %636 = vmatpush.msra.mxu0 %v175
    %637 = vmatpush.msra.mxu0 %v171
    %638 = vmatpush.msra.mxu0 %v167
    %639 = vmatpush.msra.mxu0 %v163
    %640 = vmatpush.msra.mxu0 %v159
    %641 = vmatpush.msra.mxu0 %v155
    %642 = vmatpush.msra.mxu0 %v151
    %643 = vmatmul.f32.gmra.mxu0 %v565
    %v644 = vpop.f32.mrf.mxu0
    %v645 = vadd.f32 0.0, %v644
    %646 = vdwg.mxu0
    %v647 = vadd.f32 %v276, %v585
    %v648 = vadd.f32 %v317, %v605
    %v649 = vadd.f32 %v358, %v625
    %v650 = vadd.f32 %v399, %v645
    %v651 = vxor.u32 %v647, 2147483648
    %v652 = vxor.u32 %v648, 2147483648
    %v653 = vxor.u32 %v649, 2147483648
    %v654 = vmul.f32 %v651, 1.442695
    %v655 = vpow.pop %v654
    %v656 = vmul.f32 %v652, 1.442695
    %v657 = vpow.pop %v656
    %v658 = vmul.f32 %v653, 1.442695
    %v659 = vpow.pop %v658
    %v660 = vadd.f32 %v655, 1.0
    %v661 = vadd.f32 %v657, 1.0
    %v662 = vadd.f32 %v659, 1.0
    %v663 = vrcp.pop %v660
    %v664 = vmul.f32 %v660, %v663
    %v665 = vsub.f32 1.0, %v664
    %v666 = vmul.f32 %v663, %v665
    %v667 = vadd.f32 %v663, %v666
    %vm668 = vweird.f32 %v660
    %vm669 = vweird.f32 %v663
    %vm670 = vmor %vm668, %vm669
    %v671 = vsel %vm670, %v663, %v667
    %v672 = vand.u32 2147483647, %v660
    %vm673 = vcmp.eq.f32.partialorder %v672, 8.507059e+37
    %v674 = vand.u32 %v660, 2147483648
    %v675 = vor.u32 1.1754944e-38, %v674
    %v676 = vsel %vm673, %v675, %v671
    %v677 = vmul.f32 1.0, %v676
    %v678 = vrcp.pop %v661
    %v679 = vmul.f32 %v661, %v678
    %v680 = vsub.f32 1.0, %v679
    %v681 = vmul.f32 %v678, %v680
    %v682 = vadd.f32 %v678, %v681
    %vm683 = vweird.f32 %v661
    %vm684 = vweird.f32 %v678
    %vm685 = vmor %vm683, %vm684
    %v686 = vsel %vm685, %v678, %v682
    %v687 = vand.u32 2147483647, %v661
    %vm688 = vcmp.eq.f32.partialorder %v687, 8.507059e+37
    %v689 = vand.u32 %v661, 2147483648
    %v690 = vor.u32 1.1754944e-38, %v689
    %v691 = vsel %vm688, %v690, %v686
    %v692 = vmul.f32 1.0, %v691
    %v693 = vrcp.pop %v662
    %v694 = vmul.f32 %v662, %v693
    %v695 = vsub.f32 1.0, %v694
    %v696 = vmul.f32 %v693, %v695
    %v697 = vadd.f32 %v693, %v696
    %vm698 = vweird.f32 %v662
    %vm699 = vweird.f32 %v693
    %vm700 = vmor %vm698, %vm699
    %v701 = vsel %vm700, %v693, %v697
    %v702 = vand.u32 2147483647, %v662
    %vm703 = vcmp.eq.f32.partialorder %v702, 8.507059e+37
    %v704 = vand.u32 %v662, 2147483648
    %v705 = vor.u32 1.1754944e-38, %v704
    %v706 = vsel %vm703, %v705, %v701
    %v707 = vmul.f32 1.0, %v706
    %v708 = vtanh.pop %v650
    %v709 = vmul.f32 %v692, %v563
    %v710 = vmul.f32 %v677, %v708
    %v711 = vadd.f32 %v709, %v710
    %v712 = vtanh.pop %v711
    %v713 = vmul.f32 %v707, %v712
    %s714 = scalar_lea.vmem [#allocation2], 8
    %715 = vst [vmem:[%s714] sm:$0xff] %v713
    %716 = vmatpush.msra.mxu0 %v208
    %717 = vmatpush.msra.mxu0 %v204
    %718 = vmatpush.msra.mxu0 %v200
    %719 = vmatpush.msra.mxu0 %v196
    %720 = vmatpush.msra.mxu0 %v192
    %721 = vmatpush.msra.mxu0 %v188
    %722 = vmatpush.msra.mxu0 %v184
    %723 = vmatpush.msra.mxu0 %v180
    %724 = vmatpush.msra.mxu0 %v176
    %725 = vmatpush.msra.mxu0 %v172
    %726 = vmatpush.msra.mxu0 %v168
    %727 = vmatpush.msra.mxu0 %v164
    %728 = vmatpush.msra.mxu0 %v160
    %729 = vmatpush.msra.mxu0 %v156
    %730 = vmatpush.msra.mxu0 %v152
    %731 = vmatpush.msra.mxu0 %v148
    %732 = vmatmul.f32.gmra.mxu0 %v713
    %v733 = vpop.f32.mrf.mxu0
    %v734 = vadd.f32 0.0, %v733
    %735 = vdwg.mxu0
    %736 = vmatpush.msra.mxu0 %v209
    %737 = vmatpush.msra.mxu0 %v205
    %738 = vmatpush.msra.mxu0 %v201
    %739 = vmatpush.msra.mxu0 %v197
    %740 = vmatpush.msra.mxu0 %v193
    %741 = vmatpush.msra.mxu0 %v189
    %742 = vmatpush.msra.mxu0 %v185
    %743 = vmatpush.msra.mxu0 %v181
    %744 = vmatpush.msra.mxu0 %v177
    %745 = vmatpush.msra.mxu0 %v173
    %746 = vmatpush.msra.mxu0 %v169
    %747 = vmatpush.msra.mxu0 %v165
    %748 = vmatpush.msra.mxu0 %v161
    %749 = vmatpush.msra.mxu0 %v157
    %750 = vmatpush.msra.mxu0 %v153
    %751 = vmatpush.msra.mxu0 %v149
    %752 = vmatmul.f32.gmra.mxu0 %v713
    %v753 = vpop.f32.mrf.mxu0
    %v754 = vadd.f32 0.0, %v753
    %755 = vdwg.mxu0
    %756 = vmatpush.msra.mxu0 %v210
    %757 = vmatpush.msra.mxu0 %v206
    %758 = vmatpush.msra.mxu0 %v202
    %759 = vmatpush.msra.mxu0 %v198
    %760 = vmatpush.msra.mxu0 %v194
    %761 = vmatpush.msra.mxu0 %v190
    %762 = vmatpush.msra.mxu0 %v186
    %763 = vmatpush.msra.mxu0 %v182
    %764 = vmatpush.msra.mxu0 %v178
    %765 = vmatpush.msra.mxu0 %v174
    %766 = vmatpush.msra.mxu0 %v170
    %767 = vmatpush.msra.mxu0 %v166
    %768 = vmatpush.msra.mxu0 %v162
    %769 = vmatpush.msra.mxu0 %v158
    %770 = vmatpush.msra.mxu0 %v154
    %771 = vmatpush.msra.mxu0 %v150
    %772 = vmatmul.f32.gmra.mxu0 %v713
    %v773 = vpop.f32.mrf.mxu0
    %v774 = vadd.f32 0.0, %v773
    %775 = vdwg.mxu0
    %776 = vmatpush.msra.mxu0 %v211
    %777 = vmatpush.msra.mxu0 %v207
    %778 = vmatpush.msra.mxu0 %v203
    %779 = vmatpush.msra.mxu0 %v199
    %780 = vmatpush.msra.mxu0 %v195
    %781 = vmatpush.msra.mxu0 %v191
    %782 = vmatpush.msra.mxu0 %v187
    %783 = vmatpush.msra.mxu0 %v183
    %784 = vmatpush.msra.mxu0 %v179
    %785 = vmatpush.msra.mxu0 %v175
    %786 = vmatpush.msra.mxu0 %v171
    %787 = vmatpush.msra.mxu0 %v167
    %788 = vmatpush.msra.mxu0 %v163
    %789 = vmatpush.msra.mxu0 %v159
    %790 = vmatpush.msra.mxu0 %v155
    %791 = vmatpush.msra.mxu0 %v151
    %792 = vmatmul.f32.gmra.mxu0 %v713
    %v793 = vpop.f32.mrf.mxu0
    %v794 = vadd.f32 0.0, %v793
    %795 = vdwg.mxu0
    %v796 = vadd.f32 %v279, %v734
    %v797 = vadd.f32 %v320, %v754
    %v798 = vadd.f32 %v361, %v774
    %v799 = vadd.f32 %v402, %v794
    %v800 = vxor.u32 %v796, 2147483648
    %v801 = vxor.u32 %v797, 2147483648
    %v802 = vxor.u32 %v798, 2147483648
    %v803 = vmul.f32 %v800, 1.442695
    %v804 = vpow.pop %v803
    %v805 = vmul.f32 %v801, 1.442695
    %v806 = vpow.pop %v805
    %v807 = vmul.f32 %v802, 1.442695
    %v808 = vpow.pop %v807
    %v809 = vadd.f32 %v804, 1.0
    %v810 = vadd.f32 %v806, 1.0
    %v811 = vadd.f32 %v808, 1.0
    %v812 = vrcp.pop %v809
    %v813 = vmul.f32 %v809, %v812
    %v814 = vsub.f32 1.0, %v813
    %v815 = vmul.f32 %v812, %v814
    %v816 = vadd.f32 %v812, %v815
    %vm817 = vweird.f32 %v809
    %vm818 = vweird.f32 %v812
    %vm819 = vmor %vm817, %vm818
    %v820 = vsel %vm819, %v812, %v816
    %v821 = vand.u32 2147483647, %v809
    %vm822 = vcmp.eq.f32.partialorder %v821, 8.507059e+37
    %v823 = vand.u32 %v809, 2147483648
    %v824 = vor.u32 1.1754944e-38, %v823
    %v825 = vsel %vm822, %v824, %v820
    %v826 = vmul.f32 1.0, %v825
    %v827 = vrcp.pop %v810
    %v828 = vmul.f32 %v810, %v827
    %v829 = vsub.f32 1.0, %v828
    %v830 = vmul.f32 %v827, %v829
    %v831 = vadd.f32 %v827, %v830
    %vm832 = vweird.f32 %v810
    %vm833 = vweird.f32 %v827
    %vm834 = vmor %vm832, %vm833
    %v835 = vsel %vm834, %v827, %v831
    %v836 = vand.u32 2147483647, %v810
    %vm837 = vcmp.eq.f32.partialorder %v836, 8.507059e+37
    %v838 = vand.u32 %v810, 2147483648
    %v839 = vor.u32 1.1754944e-38, %v838
    %v840 = vsel %vm837, %v839, %v835
    %v841 = vmul.f32 1.0, %v840
    %v842 = vrcp.pop %v811
    %v843 = vmul.f32 %v811, %v842
    %v844 = vsub.f32 1.0, %v843
    %v845 = vmul.f32 %v842, %v844
    %v846 = vadd.f32 %v842, %v845
    %vm847 = vweird.f32 %v811
    %vm848 = vweird.f32 %v842
    %vm849 = vmor %vm847, %vm848
    %v850 = vsel %vm849, %v842, %v846
    %v851 = vand.u32 2147483647, %v811
    %vm852 = vcmp.eq.f32.partialorder %v851, 8.507059e+37
    %v853 = vand.u32 %v811, 2147483648
    %v854 = vor.u32 1.1754944e-38, %v853
    %v855 = vsel %vm852, %v854, %v850
    %v856 = vmul.f32 1.0, %v855
    %v857 = vtanh.pop %v799
    %v858 = vmul.f32 %v841, %v711
    %v859 = vmul.f32 %v826, %v857
    %v860 = vadd.f32 %v858, %v859
    %v861 = vtanh.pop %v860
    %v862 = vmul.f32 %v856, %v861
    %s863 = scalar_lea.vmem [#allocation2], 16
    %864 = vst [vmem:[%s863] sm:$0xff] %v862
    %865 = vmatpush.msra.mxu0 %v208
    %866 = vmatpush.msra.mxu0 %v204
    %867 = vmatpush.msra.mxu0 %v200
    %868 = vmatpush.msra.mxu0 %v196
    %869 = vmatpush.msra.mxu0 %v192
    %870 = vmatpush.msra.mxu0 %v188
    %871 = vmatpush.msra.mxu0 %v184
    %872 = vmatpush.msra.mxu0 %v180
    %873 = vmatpush.msra.mxu0 %v176
    %874 = vmatpush.msra.mxu0 %v172
    %875 = vmatpush.msra.mxu0 %v168
    %876 = vmatpush.msra.mxu0 %v164
    %877 = vmatpush.msra.mxu0 %v160
    %878 = vmatpush.msra.mxu0 %v156
    %879 = vmatpush.msra.mxu0 %v152
    %880 = vmatpush.msra.mxu0 %v148
    %881 = vmatmul.f32.gmra.mxu0 %v862
    %v882 = vpop.f32.mrf.mxu0
    %v883 = vadd.f32 0.0, %v882
    %884 = vdwg.mxu0
    %885 = vmatpush.msra.mxu0 %v209
    %886 = vmatpush.msra.mxu0 %v205
    %887 = vmatpush.msra.mxu0 %v201
    %888 = vmatpush.msra.mxu0 %v197
    %889 = vmatpush.msra.mxu0 %v193
    %890 = vmatpush.msra.mxu0 %v189
    %891 = vmatpush.msra.mxu0 %v185
    %892 = vmatpush.msra.mxu0 %v181
    %893 = vmatpush.msra.mxu0 %v177
    %894 = vmatpush.msra.mxu0 %v173
    %895 = vmatpush.msra.mxu0 %v169
    %896 = vmatpush.msra.mxu0 %v165
    %897 = vmatpush.msra.mxu0 %v161
    %898 = vmatpush.msra.mxu0 %v157
    %899 = vmatpush.msra.mxu0 %v153
    %900 = vmatpush.msra.mxu0 %v149
    %901 = vmatmul.f32.gmra.mxu0 %v862
    %v902 = vpop.f32.mrf.mxu0
    %v903 = vadd.f32 0.0, %v902
    %904 = vdwg.mxu0
    %905 = vmatpush.msra.mxu0 %v210
    %906 = vmatpush.msra.mxu0 %v206
    %907 = vmatpush.msra.mxu0 %v202
    %908 = vmatpush.msra.mxu0 %v198
    %909 = vmatpush.msra.mxu0 %v194
    %910 = vmatpush.msra.mxu0 %v190
    %911 = vmatpush.msra.mxu0 %v186
    %912 = vmatpush.msra.mxu0 %v182
    %913 = vmatpush.msra.mxu0 %v178
    %914 = vmatpush.msra.mxu0 %v174
    %915 = vmatpush.msra.mxu0 %v170
    %916 = vmatpush.msra.mxu0 %v166
    %917 = vmatpush.msra.mxu0 %v162
    %918 = vmatpush.msra.mxu0 %v158
    %919 = vmatpush.msra.mxu0 %v154
    %920 = vmatpush.msra.mxu0 %v150
    %921 = vmatmul.f32.gmra.mxu0 %v862
    %v922 = vpop.f32.mrf.mxu0
    %v923 = vadd.f32 0.0, %v922
    %924 = vdwg.mxu0
    %925 = vmatpush.msra.mxu0 %v211
    %926 = vmatpush.msra.mxu0 %v207
    %927 = vmatpush.msra.mxu0 %v203
    %928 = vmatpush.msra.mxu0 %v199
    %929 = vmatpush.msra.mxu0 %v195
    %930 = vmatpush.msra.mxu0 %v191
    %931 = vmatpush.msra.mxu0 %v187
    %932 = vmatpush.msra.mxu0 %v183
    %933 = vmatpush.msra.mxu0 %v179
    %934 = vmatpush.msra.mxu0 %v175
    %935 = vmatpush.msra.mxu0 %v171
    %936 = vmatpush.msra.mxu0 %v167
    %937 = vmatpush.msra.mxu0 %v163
    %938 = vmatpush.msra.mxu0 %v159
    %939 = vmatpush.msra.mxu0 %v155
    %940 = vmatpush.msra.mxu0 %v151
    %941 = vmatmul.f32.gmra.mxu0 %v862
    %v942 = vpop.f32.mrf.mxu0
    %v943 = vadd.f32 0.0, %v942
    %944 = vdwg.mxu0
    %v945 = vadd.f32 %v282, %v883
    %v946 = vadd.f32 %v323, %v903
    %v947 = vadd.f32 %v364, %v923
    %v948 = vadd.f32 %v405, %v943
    %v949 = vxor.u32 %v945, 2147483648
    %v950 = vxor.u32 %v946, 2147483648
    %v951 = vxor.u32 %v947, 2147483648
    %v952 = vmul.f32 %v949, 1.442695
    %v953 = vpow.pop %v952
    %v954 = vmul.f32 %v950, 1.442695
    %v955 = vpow.pop %v954
    %v956 = vmul.f32 %v951, 1.442695
    %v957 = vpow.pop %v956
    %v958 = vadd.f32 %v953, 1.0
    %v959 = vadd.f32 %v955, 1.0
    %v960 = vadd.f32 %v957, 1.0
    %v961 = vrcp.pop %v958
    %v962 = vmul.f32 %v958, %v961
    %v963 = vsub.f32 1.0, %v962
    %v964 = vmul.f32 %v961, %v963
    %v965 = vadd.f32 %v961, %v964
    %vm966 = vweird.f32 %v958
    %vm967 = vweird.f32 %v961
    %vm968 = vmor %vm966, %vm967
    %v969 = vsel %vm968, %v961, %v965
    %v970 = vand.u32 2147483647, %v958
    %vm971 = vcmp.eq.f32.partialorder %v970, 8.507059e+37
    %v972 = vand.u32 %v958, 2147483648
    %v973 = vor.u32 1.1754944e-38, %v972
    %v974 = vsel %vm971, %v973, %v969
    %v975 = vmul.f32 1.0, %v974
    %v976 = vrcp.pop %v959
    %v977 = vmul.f32 %v959, %v976
    %v978 = vsub.f32 1.0, %v977
    %v979 = vmul.f32 %v976, %v978
    %v980 = vadd.f32 %v976, %v979
    %vm981 = vweird.f32 %v959
    %vm982 = vweird.f32 %v976
    %vm983 = vmor %vm981, %vm982
    %v984 = vsel %vm983, %v976, %v980
    %v985 = vand.u32 2147483647, %v959
    %vm986 = vcmp.eq.f32.partialorder %v985, 8.507059e+37
    %v987 = vand.u32 %v959, 2147483648
    %v988 = vor.u32 1.1754944e-38, %v987
    %v989 = vsel %vm986, %v988, %v984
    %v990 = vmul.f32 1.0, %v989
    %v991 = vrcp.pop %v960
    %v992 = vmul.f32 %v960, %v991
    %v993 = vsub.f32 1.0, %v992
    %v994 = vmul.f32 %v991, %v993
    %v995 = vadd.f32 %v991, %v994
    %vm996 = vweird.f32 %v960
    %vm997 = vweird.f32 %v991
    %vm998 = vmor %vm996, %vm997
    %v999 = vsel %vm998, %v991, %v995
    %v1000 = vand.u32 2147483647, %v960
    %vm1001 = vcmp.eq.f32.partialorder %v1000, 8.507059e+37
    %v1002 = vand.u32 %v960, 2147483648
    %v1003 = vor.u32 1.1754944e-38, %v1002
    %v1004 = vsel %vm1001, %v1003, %v999
    %v1005 = vmul.f32 1.0, %v1004
    %v1006 = vtanh.pop %v948
    %v1007 = vmul.f32 %v990, %v860
    %v1008 = vmul.f32 %v975, %v1006
    %v1009 = vadd.f32 %v1007, %v1008
    %v1010 = vtanh.pop %v1009
    %v1011 = vmul.f32 %v1005, %v1010
    %s1012 = scalar_lea.vmem [#allocation2], 24
    %1013 = vst [vmem:[%s1012] sm:$0xff] %v1011
    %1014 = vmatpush.msra.mxu0 %v208
    %1015 = vmatpush.msra.mxu0 %v204
    %1016 = vmatpush.msra.mxu0 %v200
    %1017 = vmatpush.msra.mxu0 %v196
    %1018 = vmatpush.msra.mxu0 %v192
    %1019 = vmatpush.msra.mxu0 %v188
    %1020 = vmatpush.msra.mxu0 %v184
    %1021 = vmatpush.msra.mxu0 %v180
    %1022 = vmatpush.msra.mxu0 %v176
    %1023 = vmatpush.msra.mxu0 %v172
    %1024 = vmatpush.msra.mxu0 %v168
    %1025 = vmatpush.msra.mxu0 %v164
    %1026 = vmatpush.msra.mxu0 %v160
    %1027 = vmatpush.msra.mxu0 %v156
    %1028 = vmatpush.msra.mxu0 %v152
    %1029 = vmatpush.msra.mxu0 %v148
    %1030 = vmatmul.f32.gmra.mxu0 %v1011
    %v1031 = vpop.f32.mrf.mxu0
    %v1032 = vadd.f32 0.0, %v1031
    %1033 = vdwg.mxu0
    %1034 = vmatpush.msra.mxu0 %v209
    %1035 = vmatpush.msra.mxu0 %v205
    %1036 = vmatpush.msra.mxu0 %v201
    %1037 = vmatpush.msra.mxu0 %v197
    %1038 = vmatpush.msra.mxu0 %v193
    %1039 = vmatpush.msra.mxu0 %v189
    %1040 = vmatpush.msra.mxu0 %v185
    %1041 = vmatpush.msra.mxu0 %v181
    %1042 = vmatpush.msra.mxu0 %v177
    %1043 = vmatpush.msra.mxu0 %v173
    %1044 = vmatpush.msra.mxu0 %v169
    %1045 = vmatpush.msra.mxu0 %v165
    %1046 = vmatpush.msra.mxu0 %v161
    %1047 = vmatpush.msra.mxu0 %v157
    %1048 = vmatpush.msra.mxu0 %v153
    %1049 = vmatpush.msra.mxu0 %v149
    %1050 = vmatmul.f32.gmra.mxu0 %v1011
    %v1051 = vpop.f32.mrf.mxu0
    %v1052 = vadd.f32 0.0, %v1051
    %1053 = vdwg.mxu0
    %1054 = vmatpush.msra.mxu0 %v210
    %1055 = vmatpush.msra.mxu0 %v206
    %1056 = vmatpush.msra.mxu0 %v202
    %1057 = vmatpush.msra.mxu0 %v198
    %1058 = vmatpush.msra.mxu0 %v194
    %1059 = vmatpush.msra.mxu0 %v190
    %1060 = vmatpush.msra.mxu0 %v186
    %1061 = vmatpush.msra.mxu0 %v182
    %1062 = vmatpush.msra.mxu0 %v178
    %1063 = vmatpush.msra.mxu0 %v174
    %1064 = vmatpush.msra.mxu0 %v170
    %1065 = vmatpush.msra.mxu0 %v166
    %1066 = vmatpush.msra.mxu0 %v162
    %1067 = vmatpush.msra.mxu0 %v158
    %1068 = vmatpush.msra.mxu0 %v154
    %1069 = vmatpush.msra.mxu0 %v150
    %1070 = vmatmul.f32.gmra.mxu0 %v1011
    %v1071 = vpop.f32.mrf.mxu0
    %v1072 = vadd.f32 0.0, %v1071
    %1073 = vdwg.mxu0
    %1074 = vmatpush.msra.mxu0 %v211
    %1075 = vmatpush.msra.mxu0 %v207
    %1076 = vmatpush.msra.mxu0 %v203
    %1077 = vmatpush.msra.mxu0 %v199
    %1078 = vmatpush.msra.mxu0 %v195
    %1079 = vmatpush.msra.mxu0 %v191
    %1080 = vmatpush.msra.mxu0 %v187
    %1081 = vmatpush.msra.mxu0 %v183
    %1082 = vmatpush.msra.mxu0 %v179
    %1083 = vmatpush.msra.mxu0 %v175
    %1084 = vmatpush.msra.mxu0 %v171
    %1085 = vmatpush.msra.mxu0 %v167
    %1086 = vmatpush.msra.mxu0 %v163
    %1087 = vmatpush.msra.mxu0 %v159
    %1088 = vmatpush.msra.mxu0 %v155
    %1089 = vmatpush.msra.mxu0 %v151
    %1090 = vmatmul.f32.gmra.mxu0 %v1011
    %v1091 = vpop.f32.mrf.mxu0
    %v1092 = vadd.f32 0.0, %v1091
    %1093 = vdwg.mxu0
    %v1094 = vadd.f32 %v285, %v1032
    %v1095 = vadd.f32 %v326, %v1052
    %v1096 = vadd.f32 %v367, %v1072
    %v1097 = vadd.f32 %v408, %v1092
    %v1098 = vxor.u32 %v1094, 2147483648
    %v1099 = vxor.u32 %v1095, 2147483648
    %v1100 = vxor.u32 %v1096, 2147483648
    %v1101 = vmul.f32 %v1098, 1.442695
    %v1102 = vpow.pop %v1101
    %v1103 = vmul.f32 %v1099, 1.442695
    %v1104 = vpow.pop %v1103
    %v1105 = vmul.f32 %v1100, 1.442695
    %v1106 = vpow.pop %v1105
    %v1107 = vadd.f32 %v1102, 1.0
    %v1108 = vadd.f32 %v1104, 1.0
    %v1109 = vadd.f32 %v1106, 1.0
    %v1110 = vrcp.pop %v1107
    %v1111 = vmul.f32 %v1107, %v1110
    %v1112 = vsub.f32 1.0, %v1111
    %v1113 = vmul.f32 %v1110, %v1112
    %v1114 = vadd.f32 %v1110, %v1113
    %vm1115 = vweird.f32 %v1107
    %vm1116 = vweird.f32 %v1110
    %vm1117 = vmor %vm1115, %vm1116
    %v1118 = vsel %vm1117, %v1110, %v1114
    %v1119 = vand.u32 2147483647, %v1107
    %vm1120 = vcmp.eq.f32.partialorder %v1119, 8.507059e+37
    %v1121 = vand.u32 %v1107, 2147483648
    %v1122 = vor.u32 1.1754944e-38, %v1121
    %v1123 = vsel %vm1120, %v1122, %v1118
    %v1124 = vmul.f32 1.0, %v1123
    %v1125 = vrcp.pop %v1108
    %v1126 = vmul.f32 %v1108, %v1125
    %v1127 = vsub.f32 1.0, %v1126
    %v1128 = vmul.f32 %v1125, %v1127
    %v1129 = vadd.f32 %v1125, %v1128
    %vm1130 = vweird.f32 %v1108
    %vm1131 = vweird.f32 %v1125
    %vm1132 = vmor %vm1130, %vm1131
    %v1133 = vsel %vm1132, %v1125, %v1129
    %v1134 = vand.u32 2147483647, %v1108
    %vm1135 = vcmp.eq.f32.partialorder %v1134, 8.507059e+37
    %v1136 = vand.u32 %v1108, 2147483648
    %v1137 = vor.u32 1.1754944e-38, %v1136
    %v1138 = vsel %vm1135, %v1137, %v1133
    %v1139 = vmul.f32 1.0, %v1138
    %v1140 = vrcp.pop %v1109
    %v1141 = vmul.f32 %v1109, %v1140
    %v1142 = vsub.f32 1.0, %v1141
    %v1143 = vmul.f32 %v1140, %v1142
    %v1144 = vadd.f32 %v1140, %v1143
    %vm1145 = vweird.f32 %v1109
    %vm1146 = vweird.f32 %v1140
    %vm1147 = vmor %vm1145, %vm1146
    %v1148 = vsel %vm1147, %v1140, %v1144
    %v1149 = vand.u32 2147483647, %v1109
    %vm1150 = vcmp.eq.f32.partialorder %v1149, 8.507059e+37
    %v1151 = vand.u32 %v1109, 2147483648
    %v1152 = vor.u32 1.1754944e-38, %v1151
    %v1153 = vsel %vm1150, %v1152, %v1148
    %v1154 = vmul.f32 1.0, %v1153
    %v1155 = vtanh.pop %v1097
    %v1156 = vmul.f32 %v1139, %v1009
    %v1157 = vmul.f32 %v1124, %v1155
    %v1158 = vadd.f32 %v1156, %v1157
    %v1159 = vtanh.pop %v1158
    %v1160 = vmul.f32 %v1154, %v1159
    %s1161 = scalar_lea.vmem [#allocation2], 32
    %1162 = vst [vmem:[%s1161] sm:$0xff] %v1160
    %1163 = vmatpush.msra.mxu0 %v208
    %1164 = vmatpush.msra.mxu0 %v204
    %1165 = vmatpush.msra.mxu0 %v200
    %1166 = vmatpush.msra.mxu0 %v196
    %1167 = vmatpush.msra.mxu0 %v192
    %1168 = vmatpush.msra.mxu0 %v188
    %1169 = vmatpush.msra.mxu0 %v184
    %1170 = vmatpush.msra.mxu0 %v180
    %1171 = vmatpush.msra.mxu0 %v176
    %1172 = vmatpush.msra.mxu0 %v172
    %1173 = vmatpush.msra.mxu0 %v168
    %1174 = vmatpush.msra.mxu0 %v164
    %1175 = vmatpush.msra.mxu0 %v160
    %1176 = vmatpush.msra.mxu0 %v156
    %1177 = vmatpush.msra.mxu0 %v152
    %1178 = vmatpush.msra.mxu0 %v148
    %1179 = vmatmul.f32.gmra.mxu0 %v1160
    %v1180 = vpop.f32.mrf.mxu0
    %v1181 = vadd.f32 0.0, %v1180
    %1182 = vdwg.mxu0
    %1183 = vmatpush.msra.mxu0 %v209
    %1184 = vmatpush.msra.mxu0 %v205
    %1185 = vmatpush.msra.mxu0 %v201
    %1186 = vmatpush.msra.mxu0 %v197
    %1187 = vmatpush.msra.mxu0 %v193
    %1188 = vmatpush.msra.mxu0 %v189
    %1189 = vmatpush.msra.mxu0 %v185
    %1190 = vmatpush.msra.mxu0 %v181
    %1191 = vmatpush.msra.mxu0 %v177
    %1192 = vmatpush.msra.mxu0 %v173
    %1193 = vmatpush.msra.mxu0 %v169
    %1194 = vmatpush.msra.mxu0 %v165
    %1195 = vmatpush.msra.mxu0 %v161
    %1196 = vmatpush.msra.mxu0 %v157
    %1197 = vmatpush.msra.mxu0 %v153
    %1198 = vmatpush.msra.mxu0 %v149
    %1199 = vmatmul.f32.gmra.mxu0 %v1160
    %v1200 = vpop.f32.mrf.mxu0
    %v1201 = vadd.f32 0.0, %v1200
    %1202 = vdwg.mxu0
    %1203 = vmatpush.msra.mxu0 %v210
    %1204 = vmatpush.msra.mxu0 %v206
    %1205 = vmatpush.msra.mxu0 %v202
    %1206 = vmatpush.msra.mxu0 %v198
    %1207 = vmatpush.msra.mxu0 %v194
    %1208 = vmatpush.msra.mxu0 %v190
    %1209 = vmatpush.msra.mxu0 %v186
    %1210 = vmatpush.msra.mxu0 %v182
    %1211 = vmatpush.msra.mxu0 %v178
    %1212 = vmatpush.msra.mxu0 %v174
    %1213 = vmatpush.msra.mxu0 %v170
    %1214 = vmatpush.msra.mxu0 %v166
    %1215 = vmatpush.msra.mxu0 %v162
    %1216 = vmatpush.msra.mxu0 %v158
    %1217 = vmatpush.msra.mxu0 %v154
    %1218 = vmatpush.msra.mxu0 %v150
    %1219 = vmatmul.f32.gmra.mxu0 %v1160
    %v1220 = vpop.f32.mrf.mxu0
    %v1221 = vadd.f32 0.0, %v1220
    %1222 = vdwg.mxu0
    %1223 = vmatpush.msra.mxu0 %v211
    %1224 = vmatpush.msra.mxu0 %v207
    %1225 = vmatpush.msra.mxu0 %v203
    %1226 = vmatpush.msra.mxu0 %v199
    %1227 = vmatpush.msra.mxu0 %v195
    %1228 = vmatpush.msra.mxu0 %v191
    %1229 = vmatpush.msra.mxu0 %v187
    %1230 = vmatpush.msra.mxu0 %v183
    %1231 = vmatpush.msra.mxu0 %v179
    %1232 = vmatpush.msra.mxu0 %v175
    %1233 = vmatpush.msra.mxu0 %v171
    %1234 = vmatpush.msra.mxu0 %v167
    %1235 = vmatpush.msra.mxu0 %v163
    %1236 = vmatpush.msra.mxu0 %v159
    %1237 = vmatpush.msra.mxu0 %v155
    %1238 = vmatpush.msra.mxu0 %v151
    %1239 = vmatmul.f32.gmra.mxu0 %v1160
    %v1240 = vpop.f32.mrf.mxu0
    %v1241 = vadd.f32 0.0, %v1240
    %1242 = vdwg.mxu0
    %v1243 = vadd.f32 %v288, %v1181
    %v1244 = vadd.f32 %v329, %v1201
    %v1245 = vadd.f32 %v370, %v1221
    %v1246 = vadd.f32 %v411, %v1241
    %v1247 = vxor.u32 %v1243, 2147483648
    %v1248 = vxor.u32 %v1244, 2147483648
    %v1249 = vxor.u32 %v1245, 2147483648
    %v1250 = vmul.f32 %v1247, 1.442695
    %v1251 = vpow.pop %v1250
    %v1252 = vmul.f32 %v1248, 1.442695
    %v1253 = vpow.pop %v1252
    %v1254 = vmul.f32 %v1249, 1.442695
    %v1255 = vpow.pop %v1254
    %v1256 = vadd.f32 %v1251, 1.0
    %v1257 = vadd.f32 %v1253, 1.0
    %v1258 = vadd.f32 %v1255, 1.0
    %v1259 = vrcp.pop %v1256
    %v1260 = vmul.f32 %v1256, %v1259
    %v1261 = vsub.f32 1.0, %v1260
    %v1262 = vmul.f32 %v1259, %v1261
    %v1263 = vadd.f32 %v1259, %v1262
    %vm1264 = vweird.f32 %v1256
    %vm1265 = vweird.f32 %v1259
    %vm1266 = vmor %vm1264, %vm1265
    %v1267 = vsel %vm1266, %v1259, %v1263
    %v1268 = vand.u32 2147483647, %v1256
    %vm1269 = vcmp.eq.f32.partialorder %v1268, 8.507059e+37
    %v1270 = vand.u32 %v1256, 2147483648
    %v1271 = vor.u32 1.1754944e-38, %v1270
    %v1272 = vsel %vm1269, %v1271, %v1267
    %v1273 = vmul.f32 1.0, %v1272
    %v1274 = vrcp.pop %v1257
    %v1275 = vmul.f32 %v1257, %v1274
    %v1276 = vsub.f32 1.0, %v1275
    %v1277 = vmul.f32 %v1274, %v1276
    %v1278 = vadd.f32 %v1274, %v1277
    %vm1279 = vweird.f32 %v1257
    %vm1280 = vweird.f32 %v1274
    %vm1281 = vmor %vm1279, %vm1280
    %v1282 = vsel %vm1281, %v1274, %v1278
    %v1283 = vand.u32 2147483647, %v1257
    %vm1284 = vcmp.eq.f32.partialorder %v1283, 8.507059e+37
    %v1285 = vand.u32 %v1257, 2147483648
    %v1286 = vor.u32 1.1754944e-38, %v1285
    %v1287 = vsel %vm1284, %v1286, %v1282
    %v1288 = vmul.f32 1.0, %v1287
    %v1289 = vrcp.pop %v1258
    %v1290 = vmul.f32 %v1258, %v1289
    %v1291 = vsub.f32 1.0, %v1290
    %v1292 = vmul.f32 %v1289, %v1291
    %v1293 = vadd.f32 %v1289, %v1292
    %vm1294 = vweird.f32 %v1258
    %vm1295 = vweird.f32 %v1289
    %vm1296 = vmor %vm1294, %vm1295
    %v1297 = vsel %vm1296, %v1289, %v1293
    %v1298 = vand.u32 2147483647, %v1258
    %vm1299 = vcmp.eq.f32.partialorder %v1298, 8.507059e+37
    %v1300 = vand.u32 %v1258, 2147483648
    %v1301 = vor.u32 1.1754944e-38, %v1300
    %v1302 = vsel %vm1299, %v1301, %v1297
    %v1303 = vmul.f32 1.0, %v1302
    %v1304 = vtanh.pop %v1246
    %v1305 = vmul.f32 %v1288, %v1158
    %v1306 = vmul.f32 %v1273, %v1304
    %v1307 = vadd.f32 %v1305, %v1306
    %v1308 = vtanh.pop %v1307
    %v1309 = vmul.f32 %v1303, %v1308
    %s1310 = scalar_lea.vmem [#allocation2], 40
    %1311 = vst [vmem:[%s1310] sm:$0xff] %v1309
    %1312 = vmatpush.msra.mxu0 %v208
    %1313 = vmatpush.msra.mxu0 %v204
    %1314 = vmatpush.msra.mxu0 %v200
    %1315 = vmatpush.msra.mxu0 %v196
    %1316 = vmatpush.msra.mxu0 %v192
    %1317 = vmatpush.msra.mxu0 %v188
    %1318 = vmatpush.msra.mxu0 %v184
    %1319 = vmatpush.msra.mxu0 %v180
    %1320 = vmatpush.msra.mxu0 %v176
    %1321 = vmatpush.msra.mxu0 %v172
    %1322 = vmatpush.msra.mxu0 %v168
    %1323 = vmatpush.msra.mxu0 %v164
    %1324 = vmatpush.msra.mxu0 %v160
    %1325 = vmatpush.msra.mxu0 %v156
    %1326 = vmatpush.msra.mxu0 %v152
    %1327 = vmatpush.msra.mxu0 %v148
    %1328 = vmatmul.f32.gmra.mxu0 %v1309
    %v1329 = vpop.f32.mrf.mxu0
    %v1330 = vadd.f32 0.0, %v1329
    %1331 = vdwg.mxu0
    %1332 = vmatpush.msra.mxu0 %v209
    %1333 = vmatpush.msra.mxu0 %v205
    %1334 = vmatpush.msra.mxu0 %v201
    %1335 = vmatpush.msra.mxu0 %v197
    %1336 = vmatpush.msra.mxu0 %v193
    %1337 = vmatpush.msra.mxu0 %v189
    %1338 = vmatpush.msra.mxu0 %v185
    %1339 = vmatpush.msra.mxu0 %v181
    %1340 = vmatpush.msra.mxu0 %v177
    %1341 = vmatpush.msra.mxu0 %v173
    %1342 = vmatpush.msra.mxu0 %v169
    %1343 = vmatpush.msra.mxu0 %v165
    %1344 = vmatpush.msra.mxu0 %v161
    %1345 = vmatpush.msra.mxu0 %v157
    %1346 = vmatpush.msra.mxu0 %v153
    %1347 = vmatpush.msra.mxu0 %v149
    %1348 = vmatmul.f32.gmra.mxu0 %v1309
    %v1349 = vpop.f32.mrf.mxu0
    %v1350 = vadd.f32 0.0, %v1349
    %1351 = vdwg.mxu0
    %1352 = vmatpush.msra.mxu0 %v210
    %1353 = vmatpush.msra.mxu0 %v206
    %1354 = vmatpush.msra.mxu0 %v202
    %1355 = vmatpush.msra.mxu0 %v198
    %1356 = vmatpush.msra.mxu0 %v194
    %1357 = vmatpush.msra.mxu0 %v190
    %1358 = vmatpush.msra.mxu0 %v186
    %1359 = vmatpush.msra.mxu0 %v182
    %1360 = vmatpush.msra.mxu0 %v178
    %1361 = vmatpush.msra.mxu0 %v174
    %1362 = vmatpush.msra.mxu0 %v170
    %1363 = vmatpush.msra.mxu0 %v166
    %1364 = vmatpush.msra.mxu0 %v162
    %1365 = vmatpush.msra.mxu0 %v158
    %1366 = vmatpush.msra.mxu0 %v154
    %1367 = vmatpush.msra.mxu0 %v150
    %1368 = vmatmul.f32.gmra.mxu0 %v1309
    %v1369 = vpop.f32.mrf.mxu0
    %v1370 = vadd.f32 0.0, %v1369
    %1371 = vdwg.mxu0
    %1372 = vmatpush.msra.mxu0 %v211
    %1373 = vmatpush.msra.mxu0 %v207
    %1374 = vmatpush.msra.mxu0 %v203
    %1375 = vmatpush.msra.mxu0 %v199
    %1376 = vmatpush.msra.mxu0 %v195
    %1377 = vmatpush.msra.mxu0 %v191
    %1378 = vmatpush.msra.mxu0 %v187
    %1379 = vmatpush.msra.mxu0 %v183
    %1380 = vmatpush.msra.mxu0 %v179
    %1381 = vmatpush.msra.mxu0 %v175
    %1382 = vmatpush.msra.mxu0 %v171
    %1383 = vmatpush.msra.mxu0 %v167
    %1384 = vmatpush.msra.mxu0 %v163
    %1385 = vmatpush.msra.mxu0 %v159
    %1386 = vmatpush.msra.mxu0 %v155
    %1387 = vmatpush.msra.mxu0 %v151
    %1388 = vmatmul.f32.gmra.mxu0 %v1309
    %v1389 = vpop.f32.mrf.mxu0
    %v1390 = vadd.f32 0.0, %v1389
    %1391 = vdwg.mxu0
    %v1392 = vadd.f32 %v291, %v1330
    %v1393 = vadd.f32 %v332, %v1350
    %v1394 = vadd.f32 %v373, %v1370
    %v1395 = vadd.f32 %v414, %v1390
    %v1396 = vxor.u32 %v1392, 2147483648
    %v1397 = vxor.u32 %v1393, 2147483648
    %v1398 = vxor.u32 %v1394, 2147483648
    %v1399 = vmul.f32 %v1396, 1.442695
    %v1400 = vpow.pop %v1399
    %v1401 = vmul.f32 %v1397, 1.442695
    %v1402 = vpow.pop %v1401
    %v1403 = vmul.f32 %v1398, 1.442695
    %v1404 = vpow.pop %v1403
    %v1405 = vadd.f32 %v1400, 1.0
    %v1406 = vadd.f32 %v1402, 1.0
    %v1407 = vadd.f32 %v1404, 1.0
    %v1408 = vrcp.pop %v1405
    %v1409 = vmul.f32 %v1405, %v1408
    %v1410 = vsub.f32 1.0, %v1409
    %v1411 = vmul.f32 %v1408, %v1410
    %v1412 = vadd.f32 %v1408, %v1411
    %vm1413 = vweird.f32 %v1405
    %vm1414 = vweird.f32 %v1408
    %vm1415 = vmor %vm1413, %vm1414
    %v1416 = vsel %vm1415, %v1408, %v1412
    %v1417 = vand.u32 2147483647, %v1405
    %vm1418 = vcmp.eq.f32.partialorder %v1417, 8.507059e+37
    %v1419 = vand.u32 %v1405, 2147483648
    %v1420 = vor.u32 1.1754944e-38, %v1419
    %v1421 = vsel %vm1418, %v1420, %v1416
    %v1422 = vmul.f32 1.0, %v1421
    %v1423 = vrcp.pop %v1406
    %v1424 = vmul.f32 %v1406, %v1423
    %v1425 = vsub.f32 1.0, %v1424
    %v1426 = vmul.f32 %v1423, %v1425
    %v1427 = vadd.f32 %v1423, %v1426
    %vm1428 = vweird.f32 %v1406
    %vm1429 = vweird.f32 %v1423
    %vm1430 = vmor %vm1428, %vm1429
    %v1431 = vsel %vm1430, %v1423, %v1427
    %v1432 = vand.u32 2147483647, %v1406
    %vm1433 = vcmp.eq.f32.partialorder %v1432, 8.507059e+37
    %v1434 = vand.u32 %v1406, 2147483648
    %v1435 = vor.u32 1.1754944e-38, %v1434
    %v1436 = vsel %vm1433, %v1435, %v1431
    %v1437 = vmul.f32 1.0, %v1436
    %v1438 = vrcp.pop %v1407
    %v1439 = vmul.f32 %v1407, %v1438
    %v1440 = vsub.f32 1.0, %v1439
    %v1441 = vmul.f32 %v1438, %v1440
    %v1442 = vadd.f32 %v1438, %v1441
    %vm1443 = vweird.f32 %v1407
    %vm1444 = vweird.f32 %v1438
    %vm1445 = vmor %vm1443, %vm1444
    %v1446 = vsel %vm1445, %v1438, %v1442
    %v1447 = vand.u32 2147483647, %v1407
    %vm1448 = vcmp.eq.f32.partialorder %v1447, 8.507059e+37
    %v1449 = vand.u32 %v1407, 2147483648
    %v1450 = vor.u32 1.1754944e-38, %v1449
    %v1451 = vsel %vm1448, %v1450, %v1446
    %v1452 = vmul.f32 1.0, %v1451
    %v1453 = vtanh.pop %v1395
    %v1454 = vmul.f32 %v1437, %v1307
    %v1455 = vmul.f32 %v1422, %v1453
    %v1456 = vadd.f32 %v1454, %v1455
    %v1457 = vtanh.pop %v1456
    %v1458 = vmul.f32 %v1452, %v1457
    %s1459 = scalar_lea.vmem [#allocation2], 48
    %1460 = vst [vmem:[%s1459] sm:$0xff] %v1458
    %1461 = vmatpush.msra.mxu0 %v208
    %1462 = vmatpush.msra.mxu0 %v204
    %1463 = vmatpush.msra.mxu0 %v200
    %1464 = vmatpush.msra.mxu0 %v196
    %1465 = vmatpush.msra.mxu0 %v192
    %1466 = vmatpush.msra.mxu0 %v188
    %1467 = vmatpush.msra.mxu0 %v184
    %1468 = vmatpush.msra.mxu0 %v180
    %1469 = vmatpush.msra.mxu0 %v176
    %1470 = vmatpush.msra.mxu0 %v172
    %1471 = vmatpush.msra.mxu0 %v168
    %1472 = vmatpush.msra.mxu0 %v164
    %1473 = vmatpush.msra.mxu0 %v160
    %1474 = vmatpush.msra.mxu0 %v156
    %1475 = vmatpush.msra.mxu0 %v152
    %1476 = vmatpush.msra.mxu0 %v148
    %1477 = vmatmul.f32.gmra.mxu0 %v1458
    %v1478 = vpop.f32.mrf.mxu0
    %v1479 = vadd.f32 0.0, %v1478
    %1480 = vdwg.mxu0
    %1481 = vmatpush.msra.mxu0 %v209
    %1482 = vmatpush.msra.mxu0 %v205
    %1483 = vmatpush.msra.mxu0 %v201
    %1484 = vmatpush.msra.mxu0 %v197
    %1485 = vmatpush.msra.mxu0 %v193
    %1486 = vmatpush.msra.mxu0 %v189
    %1487 = vmatpush.msra.mxu0 %v185
    %1488 = vmatpush.msra.mxu0 %v181
    %1489 = vmatpush.msra.mxu0 %v177
    %1490 = vmatpush.msra.mxu0 %v173
    %1491 = vmatpush.msra.mxu0 %v169
    %1492 = vmatpush.msra.mxu0 %v165
    %1493 = vmatpush.msra.mxu0 %v161
    %1494 = vmatpush.msra.mxu0 %v157
    %1495 = vmatpush.msra.mxu0 %v153
    %1496 = vmatpush.msra.mxu0 %v149
    %1497 = vmatmul.f32.gmra.mxu0 %v1458
    %v1498 = vpop.f32.mrf.mxu0
    %v1499 = vadd.f32 0.0, %v1498
    %1500 = vdwg.mxu0
    %1501 = vmatpush.msra.mxu0 %v210
    %1502 = vmatpush.msra.mxu0 %v206
    %1503 = vmatpush.msra.mxu0 %v202
    %1504 = vmatpush.msra.mxu0 %v198
    %1505 = vmatpush.msra.mxu0 %v194
    %1506 = vmatpush.msra.mxu0 %v190
    %1507 = vmatpush.msra.mxu0 %v186
    %1508 = vmatpush.msra.mxu0 %v182
    %1509 = vmatpush.msra.mxu0 %v178
    %1510 = vmatpush.msra.mxu0 %v174
    %1511 = vmatpush.msra.mxu0 %v170
    %1512 = vmatpush.msra.mxu0 %v166
    %1513 = vmatpush.msra.mxu0 %v162
    %1514 = vmatpush.msra.mxu0 %v158
    %1515 = vmatpush.msra.mxu0 %v154
    %1516 = vmatpush.msra.mxu0 %v150
    %1517 = vmatmul.f32.gmra.mxu0 %v1458
    %v1518 = vpop.f32.mrf.mxu0
    %v1519 = vadd.f32 0.0, %v1518
    %1520 = vdwg.mxu0
    %1521 = vmatpush.msra.mxu0 %v211
    %1522 = vmatpush.msra.mxu0 %v207
    %1523 = vmatpush.msra.mxu0 %v203
    %1524 = vmatpush.msra.mxu0 %v199
    %1525 = vmatpush.msra.mxu0 %v195
    %1526 = vmatpush.msra.mxu0 %v191
    %1527 = vmatpush.msra.mxu0 %v187
    %1528 = vmatpush.msra.mxu0 %v183
    %1529 = vmatpush.msra.mxu0 %v179
    %1530 = vmatpush.msra.mxu0 %v175
    %1531 = vmatpush.msra.mxu0 %v171
    %1532 = vmatpush.msra.mxu0 %v167
    %1533 = vmatpush.msra.mxu0 %v163
    %1534 = vmatpush.msra.mxu0 %v159
    %1535 = vmatpush.msra.mxu0 %v155
    %1536 = vmatpush.msra.mxu0 %v151
    %1537 = vmatmul.f32.gmra.mxu0 %v1458
    %v1538 = vpop.f32.mrf.mxu0
    %v1539 = vadd.f32 0.0, %v1538
    %1540 = vdwg.mxu0
    %v1541 = vadd.f32 %v294, %v1479
    %v1542 = vadd.f32 %v335, %v1499
    %v1543 = vadd.f32 %v376, %v1519
    %v1544 = vadd.f32 %v417, %v1539
    %v1545 = vxor.u32 %v1541, 2147483648
    %v1546 = vxor.u32 %v1542, 2147483648
    %v1547 = vxor.u32 %v1543, 2147483648
    %v1548 = vmul.f32 %v1545, 1.442695
    %v1549 = vpow.pop %v1548
    %v1550 = vmul.f32 %v1546, 1.442695
    %v1551 = vpow.pop %v1550
    %v1552 = vmul.f32 %v1547, 1.442695
    %v1553 = vpow.pop %v1552
    %v1554 = vadd.f32 %v1549, 1.0
    %v1555 = vadd.f32 %v1551, 1.0
    %v1556 = vadd.f32 %v1553, 1.0
    %v1557 = vrcp.pop %v1554
    %v1558 = vmul.f32 %v1554, %v1557
    %v1559 = vsub.f32 1.0, %v1558
    %v1560 = vmul.f32 %v1557, %v1559
    %v1561 = vadd.f32 %v1557, %v1560
    %vm1562 = vweird.f32 %v1554
    %vm1563 = vweird.f32 %v1557
    %vm1564 = vmor %vm1562, %vm1563
    %v1565 = vsel %vm1564, %v1557, %v1561
    %v1566 = vand.u32 2147483647, %v1554
    %vm1567 = vcmp.eq.f32.partialorder %v1566, 8.507059e+37
    %v1568 = vand.u32 %v1554, 2147483648
    %v1569 = vor.u32 1.1754944e-38, %v1568
    %v1570 = vsel %vm1567, %v1569, %v1565
    %v1571 = vmul.f32 1.0, %v1570
    %v1572 = vrcp.pop %v1555
    %v1573 = vmul.f32 %v1555, %v1572
    %v1574 = vsub.f32 1.0, %v1573
    %v1575 = vmul.f32 %v1572, %v1574
    %v1576 = vadd.f32 %v1572, %v1575
    %vm1577 = vweird.f32 %v1555
    %vm1578 = vweird.f32 %v1572
    %vm1579 = vmor %vm1577, %vm1578
    %v1580 = vsel %vm1579, %v1572, %v1576
    %v1581 = vand.u32 2147483647, %v1555
    %vm1582 = vcmp.eq.f32.partialorder %v1581, 8.507059e+37
    %v1583 = vand.u32 %v1555, 2147483648
    %v1584 = vor.u32 1.1754944e-38, %v1583
    %v1585 = vsel %vm1582, %v1584, %v1580
    %v1586 = vmul.f32 1.0, %v1585
    %v1587 = vrcp.pop %v1556
    %v1588 = vmul.f32 %v1556, %v1587
    %v1589 = vsub.f32 1.0, %v1588
    %v1590 = vmul.f32 %v1587, %v1589
    %v1591 = vadd.f32 %v1587, %v1590
    %vm1592 = vweird.f32 %v1556
    %vm1593 = vweird.f32 %v1587
    %vm1594 = vmor %vm1592, %vm1593
    %v1595 = vsel %vm1594, %v1587, %v1591
    %v1596 = vand.u32 2147483647, %v1556
    %vm1597 = vcmp.eq.f32.partialorder %v1596, 8.507059e+37
    %v1598 = vand.u32 %v1556, 2147483648
    %v1599 = vor.u32 1.1754944e-38, %v1598
    %v1600 = vsel %vm1597, %v1599, %v1595
    %v1601 = vmul.f32 1.0, %v1600
    %v1602 = vtanh.pop %v1544
    %v1603 = vmul.f32 %v1586, %v1456
    %v1604 = vmul.f32 %v1571, %v1602
    %v1605 = vadd.f32 %v1603, %v1604
    %v1606 = vtanh.pop %v1605
    %v1607 = vmul.f32 %v1601, %v1606
    %s1608 = scalar_lea.vmem [#allocation2], 56
    %1609 = vst [vmem:[%s1608] sm:$0xff] %v1607
    %v1610 = vld [vmem:[#allocation11] sm:$0xff]
    %v1611 = vld [vmem:[#allocation11 + $0x8] sm:$0xff]
    %v1612 = vld [vmem:[#allocation11 + $0x10] sm:$0xff]
    %v1613 = vld [vmem:[#allocation11 + $0x18] sm:$0xff]
    %v1614 = vld [vmem:[#allocation11 + $0x20] sm:$0xff]
    %v1615 = vld [vmem:[#allocation11 + $0x28] sm:$0xff]
    %v1616 = vld [vmem:[#allocation11 + $0x30] sm:$0xff]
    %v1617 = vld [vmem:[#allocation11 + $0x38] sm:$0xff]
    %v1618 = vld [vmem:[#allocation11 + $0x40] sm:$0xff]
    %v1619 = vld [vmem:[#allocation11 + $0x48] sm:$0xff]
    %v1620 = vld [vmem:[#allocation11 + $0x50] sm:$0xff]
    %v1621 = vld [vmem:[#allocation11 + $0x58] sm:$0xff]
    %v1622 = vld [vmem:[#allocation11 + $0x60] sm:$0xff]
    %v1623 = vld [vmem:[#allocation11 + $0x68] sm:$0xff]
    %v1624 = vld [vmem:[#allocation11 + $0x70] sm:$0xff]
    %v1625 = vld [vmem:[#allocation11 + $0x78] sm:$0xff]
    %v1626 = vld [vmem:[#allocation11 + $0x80] sm:$0xff]
    %v1627 = vld [vmem:[#allocation11 + $0x88] sm:$0xff]
    %v1628 = vld [vmem:[#allocation11 + $0x90] sm:$0xff]
    %v1629 = vld [vmem:[#allocation11 + $0x98] sm:$0xff]
    %v1630 = vld [vmem:[#allocation11 + $0xa0] sm:$0xff]
    %v1631 = vld [vmem:[#allocation11 + $0xa8] sm:$0xff]
    %v1632 = vld [vmem:[#allocation11 + $0xb0] sm:$0xff]
    %v1633 = vld [vmem:[#allocation11 + $0xb8] sm:$0xff]
    %v1634 = vld [vmem:[#allocation11 + $0xc0] sm:$0xff]
    %v1635 = vld [vmem:[#allocation11 + $0xc8] sm:$0xff]
    %v1636 = vld [vmem:[#allocation11 + $0xd0] sm:$0xff]
    %v1637 = vld [vmem:[#allocation11 + $0xd8] sm:$0xff]
    %v1638 = vld [vmem:[#allocation11 + $0xe0] sm:$0xff]
    %v1639 = vld [vmem:[#allocation11 + $0xe8] sm:$0xff]
    %v1640 = vld [vmem:[#allocation11 + $0xf0] sm:$0xff]
    %v1641 = vld [vmem:[#allocation11 + $0xf8] sm:$0xff]
    %v1642 = vld [vmem:[#allocation11 + $0x100] sm:$0xff]
    %v1643 = vld [vmem:[#allocation11 + $0x108] sm:$0xff]
    %v1644 = vld [vmem:[#allocation11 + $0x110] sm:$0xff]
    %v1645 = vld [vmem:[#allocation11 + $0x118] sm:$0xff]
    %v1646 = vld [vmem:[#allocation11 + $0x120] sm:$0xff]
    %v1647 = vld [vmem:[#allocation11 + $0x128] sm:$0xff]
    %v1648 = vld [vmem:[#allocation11 + $0x130] sm:$0xff]
    %v1649 = vld [vmem:[#allocation11 + $0x138] sm:$0xff]
    %v1650 = vld [vmem:[#allocation11 + $0x140] sm:$0xff]
    %v1651 = vld [vmem:[#allocation11 + $0x148] sm:$0xff]
    %v1652 = vld [vmem:[#allocation11 + $0x150] sm:$0xff]
    %v1653 = vld [vmem:[#allocation11 + $0x158] sm:$0xff]
    %v1654 = vld [vmem:[#allocation11 + $0x160] sm:$0xff]
    %v1655 = vld [vmem:[#allocation11 + $0x168] sm:$0xff]
    %v1656 = vld [vmem:[#allocation11 + $0x170] sm:$0xff]
    %v1657 = vld [vmem:[#allocation11 + $0x178] sm:$0xff]
    %v1658 = vld [vmem:[#allocation11 + $0x180] sm:$0xff]
    %v1659 = vld [vmem:[#allocation11 + $0x188] sm:$0xff]
    %v1660 = vld [vmem:[#allocation11 + $0x190] sm:$0xff]
    %v1661 = vld [vmem:[#allocation11 + $0x198] sm:$0xff]
    %v1662 = vld [vmem:[#allocation11 + $0x1a0] sm:$0xff]
    %v1663 = vld [vmem:[#allocation11 + $0x1a8] sm:$0xff]
    %v1664 = vld [vmem:[#allocation11 + $0x1b0] sm:$0xff]
    %v1665 = vld [vmem:[#allocation11 + $0x1b8] sm:$0xff]
    %v1666 = vld [vmem:[#allocation11 + $0x1c0] sm:$0xff]
    %v1667 = vld [vmem:[#allocation11 + $0x1c8] sm:$0xff]
    %v1668 = vld [vmem:[#allocation11 + $0x1d0] sm:$0xff]
    %v1669 = vld [vmem:[#allocation11 + $0x1d8] sm:$0xff]
    %v1670 = vld [vmem:[#allocation11 + $0x1e0] sm:$0xff]
    %v1671 = vld [vmem:[#allocation11 + $0x1e8] sm:$0xff]
    %v1672 = vld [vmem:[#allocation11 + $0x1f0] sm:$0xff]
    %v1673 = vld [vmem:[#allocation11 + $0x1f8] sm:$0xff]
    %v1674 = vld [vmem:[#allocation12] sm:$0xff]
    %v1675 = vld [vmem:[#allocation12 + $0x8] sm:$0xff]
    %v1676 = vld [vmem:[#allocation12 + $0x10] sm:$0xff]
    %v1677 = vld [vmem:[#allocation12 + $0x18] sm:$0xff]
    %v1678 = vld [vmem:[#allocation12 + $0x20] sm:$0xff]
    %v1679 = vld [vmem:[#allocation12 + $0x28] sm:$0xff]
    %v1680 = vld [vmem:[#allocation12 + $0x30] sm:$0xff]
    %v1681 = vld [vmem:[#allocation12 + $0x38] sm:$0xff]
    %v1682 = vld [vmem:[#allocation12 + $0x40] sm:$0xff]
    %v1683 = vld [vmem:[#allocation12 + $0x48] sm:$0xff]
    %v1684 = vld [vmem:[#allocation12 + $0x50] sm:$0xff]
    %v1685 = vld [vmem:[#allocation12 + $0x58] sm:$0xff]
    %v1686 = vld [vmem:[#allocation12 + $0x60] sm:$0xff]
    %v1687 = vld [vmem:[#allocation12 + $0x68] sm:$0xff]
    %v1688 = vld [vmem:[#allocation12 + $0x70] sm:$0xff]
    %v1689 = vld [vmem:[#allocation12 + $0x78] sm:$0xff]
    %v1690 = vld [vmem:[#allocation12 + $0x80] sm:$0xff]
    %v1691 = vld [vmem:[#allocation12 + $0x88] sm:$0xff]
    %v1692 = vld [vmem:[#allocation12 + $0x90] sm:$0xff]
    %v1693 = vld [vmem:[#allocation12 + $0x98] sm:$0xff]
    %v1694 = vld [vmem:[#allocation12 + $0xa0] sm:$0xff]
    %v1695 = vld [vmem:[#allocation12 + $0xa8] sm:$0xff]
    %v1696 = vld [vmem:[#allocation12 + $0xb0] sm:$0xff]
    %v1697 = vld [vmem:[#allocation12 + $0xb8] sm:$0xff]
    %v1698 = vld [vmem:[#allocation12 + $0xc0] sm:$0xff]
    %v1699 = vld [vmem:[#allocation12 + $0xc8] sm:$0xff]
    %v1700 = vld [vmem:[#allocation12 + $0xd0] sm:$0xff]
    %v1701 = vld [vmem:[#allocation12 + $0xd8] sm:$0xff]
    %v1702 = vld [vmem:[#allocation12 + $0xe0] sm:$0xff]
    %v1703 = vld [vmem:[#allocation12 + $0xe8] sm:$0xff]
    %v1704 = vld [vmem:[#allocation12 + $0xf0] sm:$0xff]
    %v1705 = vld [vmem:[#allocation12 + $0xf8] sm:$0xff]
    %v1706 = vld [vmem:[#allocation12 + $0x100] sm:$0xff]
    %v1707 = vld [vmem:[#allocation12 + $0x108] sm:$0xff]
    %v1708 = vld [vmem:[#allocation12 + $0x110] sm:$0xff]
    %v1709 = vld [vmem:[#allocation12 + $0x118] sm:$0xff]
    %v1710 = vld [vmem:[#allocation12 + $0x120] sm:$0xff]
    %v1711 = vld [vmem:[#allocation12 + $0x128] sm:$0xff]
    %v1712 = vld [vmem:[#allocation12 + $0x130] sm:$0xff]
    %v1713 = vld [vmem:[#allocation12 + $0x138] sm:$0xff]
    %v1714 = vld [vmem:[#allocation12 + $0x140] sm:$0xff]
    %v1715 = vld [vmem:[#allocation12 + $0x148] sm:$0xff]
    %v1716 = vld [vmem:[#allocation12 + $0x150] sm:$0xff]
    %v1717 = vld [vmem:[#allocation12 + $0x158] sm:$0xff]
    %v1718 = vld [vmem:[#allocation12 + $0x160] sm:$0xff]
    %v1719 = vld [vmem:[#allocation12 + $0x168] sm:$0xff]
    %v1720 = vld [vmem:[#allocation12 + $0x170] sm:$0xff]
    %v1721 = vld [vmem:[#allocation12 + $0x178] sm:$0xff]
    %v1722 = vld [vmem:[#allocation12 + $0x180] sm:$0xff]
    %v1723 = vld [vmem:[#allocation12 + $0x188] sm:$0xff]
    %v1724 = vld [vmem:[#allocation12 + $0x190] sm:$0xff]
    %v1725 = vld [vmem:[#allocation12 + $0x198] sm:$0xff]
    %v1726 = vld [vmem:[#allocation12 + $0x1a0] sm:$0xff]
    %v1727 = vld [vmem:[#allocation12 + $0x1a8] sm:$0xff]
    %v1728 = vld [vmem:[#allocation12 + $0x1b0] sm:$0xff]
    %v1729 = vld [vmem:[#allocation12 + $0x1b8] sm:$0xff]
    %v1730 = vld [vmem:[#allocation12 + $0x1c0] sm:$0xff]
    %v1731 = vld [vmem:[#allocation12 + $0x1c8] sm:$0xff]
    %v1732 = vld [vmem:[#allocation12 + $0x1d0] sm:$0xff]
    %v1733 = vld [vmem:[#allocation12 + $0x1d8] sm:$0xff]
    %v1734 = vld [vmem:[#allocation12 + $0x1e0] sm:$0xff]
    %v1735 = vld [vmem:[#allocation12 + $0x1e8] sm:$0xff]
    %v1736 = vld [vmem:[#allocation12 + $0x1f0] sm:$0xff]
    %v1737 = vld [vmem:[#allocation12 + $0x1f8] sm:$0xff]
    %v1738 = vld [vmem:[%s6] sm:$0xf]
    %v1739 = vld [vmem:[#allocation2] sm:$0xff]
    %v1740 = vld [vmem:[#allocation2 + $0x8] sm:$0xff]
    %v1741 = vld [vmem:[#allocation2 + $0x10] sm:$0xff]
    %v1742 = vld [vmem:[#allocation2 + $0x18] sm:$0xff]
    %v1743 = vld [vmem:[#allocation2 + $0x20] sm:$0xff]
    %v1744 = vld [vmem:[#allocation2 + $0x28] sm:$0xff]
    %v1745 = vld [vmem:[#allocation2 + $0x30] sm:$0xff]
    %v1746 = vld [vmem:[#allocation2 + $0x38] sm:$0xff]
    %v1748 = vperm.slane %v1738, 0
    %v1749 = vperm.slane %v1738, 1
    %v1750 = vperm.slane %v1738, 2
    %v1751 = vperm.slane %v1738, 3
    %1756 = vmatpush.msra.mxu0 %v1670
    %1757 = vmatpush.msra.mxu0 %v1666
    %1758 = vmatpush.msra.mxu0 %v1662
    %1759 = vmatpush.msra.mxu0 %v1658
    %1760 = vmatpush.msra.mxu0 %v1654
    %1761 = vmatpush.msra.mxu0 %v1650
    %1762 = vmatpush.msra.mxu0 %v1646
    %1763 = vmatpush.msra.mxu0 %v1642
    %1764 = vmatpush.msra.mxu0 %v1638
    %1765 = vmatpush.msra.mxu0 %v1634
    %1766 = vmatpush.msra.mxu0 %v1630
    %1767 = vmatpush.msra.mxu0 %v1626
    %1768 = vmatpush.msra.mxu0 %v1622
    %1769 = vmatpush.msra.mxu0 %v1618
    %1770 = vmatpush.msra.mxu0 %v1614
    %1771 = vmatpush.msra.mxu0 %v1610
    %1772 = vmatmul.f32.gmra.mxu0 %v1739
    %v1773 = vpop.f32.mrf.mxu0
    %v1774 = vadd.f32 %v1748, %v1773
    %1775 = vmatmul.f32.gmra.mxu0 %v1740
    %v1776 = vpop.f32.mrf.mxu0
    %v1777 = vadd.f32 %v1748, %v1776
    %1778 = vmatmul.f32.gmra.mxu0 %v1741
    %v1779 = vpop.f32.mrf.mxu0
    %v1780 = vadd.f32 %v1748, %v1779
    %1781 = vmatmul.f32.gmra.mxu0 %v1742
    %v1782 = vpop.f32.mrf.mxu0
    %v1783 = vadd.f32 %v1748, %v1782
    %1784 = vmatmul.f32.gmra.mxu0 %v1743
    %v1785 = vpop.f32.mrf.mxu0
    %v1786 = vadd.f32 %v1748, %v1785
    %1787 = vmatmul.f32.gmra.mxu0 %v1744
    %v1788 = vpop.f32.mrf.mxu0
    %v1789 = vadd.f32 %v1748, %v1788
    %1790 = vmatmul.f32.gmra.mxu0 %v1745
    %v1791 = vpop.f32.mrf.mxu0
    %v1792 = vadd.f32 %v1748, %v1791
    %1793 = vmatmul.f32.gmra.mxu0 %v1746
    %v1794 = vpop.f32.mrf.mxu0
    %v1795 = vadd.f32 %v1748, %v1794
    %1796 = vdwg.mxu0
    %1797 = vmatpush.msra.mxu0 %v1671
    %1798 = vmatpush.msra.mxu0 %v1667
    %1799 = vmatpush.msra.mxu0 %v1663
    %1800 = vmatpush.msra.mxu0 %v1659
    %1801 = vmatpush.msra.mxu0 %v1655
    %1802 = vmatpush.msra.mxu0 %v1651
    %1803 = vmatpush.msra.mxu0 %v1647
    %1804 = vmatpush.msra.mxu0 %v1643
    %1805 = vmatpush.msra.mxu0 %v1639
    %1806 = vmatpush.msra.mxu0 %v1635
    %1807 = vmatpush.msra.mxu0 %v1631
    %1808 = vmatpush.msra.mxu0 %v1627
    %1809 = vmatpush.msra.mxu0 %v1623
    %1810 = vmatpush.msra.mxu0 %v1619
    %1811 = vmatpush.msra.mxu0 %v1615
    %1812 = vmatpush.msra.mxu0 %v1611
    %1813 = vmatmul.f32.gmra.mxu0 %v1739
    %v1814 = vpop.f32.mrf.mxu0
    %v1815 = vadd.f32 %v1749, %v1814
    %1816 = vmatmul.f32.gmra.mxu0 %v1740
    %v1817 = vpop.f32.mrf.mxu0
    %v1818 = vadd.f32 %v1749, %v1817
    %1819 = vmatmul.f32.gmra.mxu0 %v1741
    %v1820 = vpop.f32.mrf.mxu0
    %v1821 = vadd.f32 %v1749, %v1820
    %1822 = vmatmul.f32.gmra.mxu0 %v1742
    %v1823 = vpop.f32.mrf.mxu0
    %v1824 = vadd.f32 %v1749, %v1823
    %1825 = vmatmul.f32.gmra.mxu0 %v1743
    %v1826 = vpop.f32.mrf.mxu0
    %v1827 = vadd.f32 %v1749, %v1826
    %1828 = vmatmul.f32.gmra.mxu0 %v1744
    %v1829 = vpop.f32.mrf.mxu0
    %v1830 = vadd.f32 %v1749, %v1829
    %1831 = vmatmul.f32.gmra.mxu0 %v1745
    %v1832 = vpop.f32.mrf.mxu0
    %v1833 = vadd.f32 %v1749, %v1832
    %1834 = vmatmul.f32.gmra.mxu0 %v1746
    %v1835 = vpop.f32.mrf.mxu0
    %v1836 = vadd.f32 %v1749, %v1835
    %1837 = vdwg.mxu0
    %1838 = vmatpush.msra.mxu0 %v1672
    %1839 = vmatpush.msra.mxu0 %v1668
    %1840 = vmatpush.msra.mxu0 %v1664
    %1841 = vmatpush.msra.mxu0 %v1660
    %1842 = vmatpush.msra.mxu0 %v1656
    %1843 = vmatpush.msra.mxu0 %v1652
    %1844 = vmatpush.msra.mxu0 %v1648
    %1845 = vmatpush.msra.mxu0 %v1644
    %1846 = vmatpush.msra.mxu0 %v1640
    %1847 = vmatpush.msra.mxu0 %v1636
    %1848 = vmatpush.msra.mxu0 %v1632
    %1849 = vmatpush.msra.mxu0 %v1628
    %1850 = vmatpush.msra.mxu0 %v1624
    %1851 = vmatpush.msra.mxu0 %v1620
    %1852 = vmatpush.msra.mxu0 %v1616
    %1853 = vmatpush.msra.mxu0 %v1612
    %1854 = vmatmul.f32.gmra.mxu0 %v1739
    %v1855 = vpop.f32.mrf.mxu0
    %v1856 = vadd.f32 %v1750, %v1855
    %1857 = vmatmul.f32.gmra.mxu0 %v1740
    %v1858 = vpop.f32.mrf.mxu0
    %v1859 = vadd.f32 %v1750, %v1858
    %1860 = vmatmul.f32.gmra.mxu0 %v1741
    %v1861 = vpop.f32.mrf.mxu0
    %v1862 = vadd.f32 %v1750, %v1861
    %1863 = vmatmul.f32.gmra.mxu0 %v1742
    %v1864 = vpop.f32.mrf.mxu0
    %v1865 = vadd.f32 %v1750, %v1864
    %1866 = vmatmul.f32.gmra.mxu0 %v1743
    %v1867 = vpop.f32.mrf.mxu0
    %v1868 = vadd.f32 %v1750, %v1867
    %1869 = vmatmul.f32.gmra.mxu0 %v1744
    %v1870 = vpop.f32.mrf.mxu0
    %v1871 = vadd.f32 %v1750, %v1870
    %1872 = vmatmul.f32.gmra.mxu0 %v1745
    %v1873 = vpop.f32.mrf.mxu0
    %v1874 = vadd.f32 %v1750, %v1873
    %1875 = vmatmul.f32.gmra.mxu0 %v1746
    %v1876 = vpop.f32.mrf.mxu0
    %v1877 = vadd.f32 %v1750, %v1876
    %1878 = vdwg.mxu0
    %1879 = vmatpush.msra.mxu0 %v1673
    %1880 = vmatpush.msra.mxu0 %v1669
    %1881 = vmatpush.msra.mxu0 %v1665
    %1882 = vmatpush.msra.mxu0 %v1661
    %1883 = vmatpush.msra.mxu0 %v1657
    %1884 = vmatpush.msra.mxu0 %v1653
    %1885 = vmatpush.msra.mxu0 %v1649
    %1886 = vmatpush.msra.mxu0 %v1645
    %1887 = vmatpush.msra.mxu0 %v1641
    %1888 = vmatpush.msra.mxu0 %v1637
    %1889 = vmatpush.msra.mxu0 %v1633
    %1890 = vmatpush.msra.mxu0 %v1629
    %1891 = vmatpush.msra.mxu0 %v1625
    %1892 = vmatpush.msra.mxu0 %v1621
    %1893 = vmatpush.msra.mxu0 %v1617
    %1894 = vmatpush.msra.mxu0 %v1613
    %1895 = vmatmul.f32.gmra.mxu0 %v1739
    %v1896 = vpop.f32.mrf.mxu0
    %v1897 = vadd.f32 %v1751, %v1896
    %1898 = vmatmul.f32.gmra.mxu0 %v1740
    %v1899 = vpop.f32.mrf.mxu0
    %v1900 = vadd.f32 %v1751, %v1899
    %1901 = vmatmul.f32.gmra.mxu0 %v1741
    %v1902 = vpop.f32.mrf.mxu0
    %v1903 = vadd.f32 %v1751, %v1902
    %1904 = vmatmul.f32.gmra.mxu0 %v1742
    %v1905 = vpop.f32.mrf.mxu0
    %v1906 = vadd.f32 %v1751, %v1905
    %1907 = vmatmul.f32.gmra.mxu0 %v1743
    %v1908 = vpop.f32.mrf.mxu0
    %v1909 = vadd.f32 %v1751, %v1908
    %1910 = vmatmul.f32.gmra.mxu0 %v1744
    %v1911 = vpop.f32.mrf.mxu0
    %v1912 = vadd.f32 %v1751, %v1911
    %1913 = vmatmul.f32.gmra.mxu0 %v1745
    %v1914 = vpop.f32.mrf.mxu0
    %v1915 = vadd.f32 %v1751, %v1914
    %1916 = vmatmul.f32.gmra.mxu0 %v1746
    %v1917 = vpop.f32.mrf.mxu0
    %v1918 = vadd.f32 %v1751, %v1917
    %1919 = vdwg.mxu0
    %1920 = vmatpush.msra.mxu0 %v1734
    %1921 = vmatpush.msra.mxu0 %v1730
    %1922 = vmatpush.msra.mxu0 %v1726
    %1923 = vmatpush.msra.mxu0 %v1722
    %1924 = vmatpush.msra.mxu0 %v1718
    %1925 = vmatpush.msra.mxu0 %v1714
    %1926 = vmatpush.msra.mxu0 %v1710
    %1927 = vmatpush.msra.mxu0 %v1706
    %1928 = vmatpush.msra.mxu0 %v1702
    %1929 = vmatpush.msra.mxu0 %v1698
    %1930 = vmatpush.msra.mxu0 %v1694
    %1931 = vmatpush.msra.mxu0 %v1690
    %1932 = vmatpush.msra.mxu0 %v1686
    %1933 = vmatpush.msra.mxu0 %v1682
    %1934 = vmatpush.msra.mxu0 %v1678
    %1935 = vmatpush.msra.mxu0 %v1674
    %1936 = vmatmul.f32.gmra.mxu0 0.0
    %v1937 = vpop.f32.mrf.mxu0
    %v1938 = vadd.f32 0.0, %v1937
    %1939 = vdwg.mxu0
    %1940 = vmatpush.msra.mxu0 %v1735
    %1941 = vmatpush.msra.mxu0 %v1731
    %1942 = vmatpush.msra.mxu0 %v1727
    %1943 = vmatpush.msra.mxu0 %v1723
    %1944 = vmatpush.msra.mxu0 %v1719
    %1945 = vmatpush.msra.mxu0 %v1715
    %1946 = vmatpush.msra.mxu0 %v1711
    %1947 = vmatpush.msra.mxu0 %v1707
    %1948 = vmatpush.msra.mxu0 %v1703
    %1949 = vmatpush.msra.mxu0 %v1699
    %1950 = vmatpush.msra.mxu0 %v1695
    %1951 = vmatpush.msra.mxu0 %v1691
    %1952 = vmatpush.msra.mxu0 %v1687
    %1953 = vmatpush.msra.mxu0 %v1683
    %1954 = vmatpush.msra.mxu0 %v1679
    %1955 = vmatpush.msra.mxu0 %v1675
    %1956 = vmatmul.f32.gmra.mxu0 0.0
    %v1957 = vpop.f32.mrf.mxu0
    %v1958 = vadd.f32 0.0, %v1957
    %1959 = vdwg.mxu0
    %1960 = vmatpush.msra.mxu0 %v1736
    %1961 = vmatpush.msra.mxu0 %v1732
    %1962 = vmatpush.msra.mxu0 %v1728
    %1963 = vmatpush.msra.mxu0 %v1724
    %1964 = vmatpush.msra.mxu0 %v1720
    %1965 = vmatpush.msra.mxu0 %v1716
    %1966 = vmatpush.msra.mxu0 %v1712
    %1967 = vmatpush.msra.mxu0 %v1708
    %1968 = vmatpush.msra.mxu0 %v1704
    %1969 = vmatpush.msra.mxu0 %v1700
    %1970 = vmatpush.msra.mxu0 %v1696
    %1971 = vmatpush.msra.mxu0 %v1692
    %1972 = vmatpush.msra.mxu0 %v1688
    %1973 = vmatpush.msra.mxu0 %v1684
    %1974 = vmatpush.msra.mxu0 %v1680
    %1975 = vmatpush.msra.mxu0 %v1676
    %1976 = vmatmul.f32.gmra.mxu0 0.0
    %v1977 = vpop.f32.mrf.mxu0
    %v1978 = vadd.f32 0.0, %v1977
    %1979 = vdwg.mxu0
    %1980 = vmatpush.msra.mxu0 %v1737
    %1981 = vmatpush.msra.mxu0 %v1733
    %1982 = vmatpush.msra.mxu0 %v1729
    %1983 = vmatpush.msra.mxu0 %v1725
    %1984 = vmatpush.msra.mxu0 %v1721
    %1985 = vmatpush.msra.mxu0 %v1717
    %1986 = vmatpush.msra.mxu0 %v1713
    %1987 = vmatpush.msra.mxu0 %v1709
    %1988 = vmatpush.msra.mxu0 %v1705
    %1989 = vmatpush.msra.mxu0 %v1701
    %1990 = vmatpush.msra.mxu0 %v1697
    %1991 = vmatpush.msra.mxu0 %v1693
    %1992 = vmatpush.msra.mxu0 %v1689
    %1993 = vmatpush.msra.mxu0 %v1685
    %1994 = vmatpush.msra.mxu0 %v1681
    %1995 = vmatpush.msra.mxu0 %v1677
    %1996 = vmatmul.f32.gmra.mxu0 0.0
    %v1997 = vpop.f32.mrf.mxu0
    %v1998 = vadd.f32 0.0, %v1997
    %1999 = vdwg.mxu0
    %v2000 = vadd.f32 %v1774, %v1938
    %v2001 = vadd.f32 %v1815, %v1958
    %v2002 = vadd.f32 %v1856, %v1978
    %v2003 = vadd.f32 %v1897, %v1998
    %v2004 = vxor.u32 %v2000, 2147483648
    %v2005 = vxor.u32 %v2001, 2147483648
    %v2006 = vxor.u32 %v2002, 2147483648
    %v2007 = vmul.f32 %v2004, 1.442695
    %v2008 = vpow.pop %v2007
    %v2009 = vmul.f32 %v2005, 1.442695
    %v2010 = vpow.pop %v2009
    %v2011 = vmul.f32 %v2006, 1.442695
    %v2012 = vpow.pop %v2011
    %v2013 = vadd.f32 %v2008, 1.0
    %v2014 = vadd.f32 %v2010, 1.0
    %v2015 = vadd.f32 %v2012, 1.0
    %v2016 = vrcp.pop %v2013
    %v2017 = vmul.f32 %v2013, %v2016
    %v2018 = vsub.f32 1.0, %v2017
    %v2019 = vmul.f32 %v2016, %v2018
    %v2020 = vadd.f32 %v2016, %v2019
    %vm2021 = vweird.f32 %v2013
    %vm2022 = vweird.f32 %v2016
    %vm2023 = vmor %vm2021, %vm2022
    %v2024 = vsel %vm2023, %v2016, %v2020
    %v2025 = vand.u32 2147483647, %v2013
    %vm2026 = vcmp.eq.f32.partialorder %v2025, 8.507059e+37
    %v2027 = vand.u32 %v2013, 2147483648
    %v2028 = vor.u32 1.1754944e-38, %v2027
    %v2029 = vsel %vm2026, %v2028, %v2024
    %v2030 = vmul.f32 1.0, %v2029
    %v2031 = vrcp.pop %v2014
    %v2032 = vmul.f32 %v2014, %v2031
    %v2033 = vsub.f32 1.0, %v2032
    %v2034 = vmul.f32 %v2031, %v2033
    %v2035 = vadd.f32 %v2031, %v2034
    %vm2036 = vweird.f32 %v2014
    %vm2037 = vweird.f32 %v2031
    %vm2038 = vmor %vm2036, %vm2037
    %v2039 = vsel %vm2038, %v2031, %v2035
    %v2040 = vand.u32 2147483647, %v2014
    %vm2041 = vcmp.eq.f32.partialorder %v2040, 8.507059e+37
    %v2042 = vand.u32 %v2014, 2147483648
    %v2043 = vor.u32 1.1754944e-38, %v2042
    %v2044 = vsel %vm2041, %v2043, %v2039
    %v2045 = vmul.f32 1.0, %v2044
    %v2046 = vrcp.pop %v2015
    %v2047 = vmul.f32 %v2015, %v2046
    %v2048 = vsub.f32 1.0, %v2047
    %v2049 = vmul.f32 %v2046, %v2048
    %v2050 = vadd.f32 %v2046, %v2049
    %vm2051 = vweird.f32 %v2015
    %vm2052 = vweird.f32 %v2046
    %vm2053 = vmor %vm2051, %vm2052
    %v2054 = vsel %vm2053, %v2046, %v2050
    %v2055 = vand.u32 2147483647, %v2015
    %vm2056 = vcmp.eq.f32.partialorder %v2055, 8.507059e+37
    %v2057 = vand.u32 %v2015, 2147483648
    %v2058 = vor.u32 1.1754944e-38, %v2057
    %v2059 = vsel %vm2056, %v2058, %v2054
    %v2060 = vmul.f32 1.0, %v2059
    %v2061 = vtanh.pop %v2003
    %v2062 = vmul.f32 %v2045, 0.0
    %v2063 = vmul.f32 %v2030, %v2061
    %v2064 = vadd.f32 %v2062, %v2063
    %v2065 = vtanh.pop %v2064
    %v2066 = vmul.f32 %v2060, %v2065
    %2067 = vmatpush.msra.mxu0 %v1734
    %2068 = vmatpush.msra.mxu0 %v1730
    %2069 = vmatpush.msra.mxu0 %v1726
    %2070 = vmatpush.msra.mxu0 %v1722
    %2071 = vmatpush.msra.mxu0 %v1718
    %2072 = vmatpush.msra.mxu0 %v1714
    %2073 = vmatpush.msra.mxu0 %v1710
    %2074 = vmatpush.msra.mxu0 %v1706
    %2075 = vmatpush.msra.mxu0 %v1702
    %2076 = vmatpush.msra.mxu0 %v1698
    %2077 = vmatpush.msra.mxu0 %v1694
    %2078 = vmatpush.msra.mxu0 %v1690
    %2079 = vmatpush.msra.mxu0 %v1686
    %2080 = vmatpush.msra.mxu0 %v1682
    %2081 = vmatpush.msra.mxu0 %v1678
    %2082 = vmatpush.msra.mxu0 %v1674
    %2083 = vmatmul.f32.gmra.mxu0 %v2066
    %v2084 = vpop.f32.mrf.mxu0
    %v2085 = vadd.f32 0.0, %v2084
    %2086 = vdwg.mxu0
    %2087 = vmatpush.msra.mxu0 %v1735
    %2088 = vmatpush.msra.mxu0 %v1731
    %2089 = vmatpush.msra.mxu0 %v1727
    %2090 = vmatpush.msra.mxu0 %v1723
    %2091 = vmatpush.msra.mxu0 %v1719
    %2092 = vmatpush.msra.mxu0 %v1715
    %2093 = vmatpush.msra.mxu0 %v1711
    %2094 = vmatpush.msra.mxu0 %v1707
    %2095 = vmatpush.msra.mxu0 %v1703
    %2096 = vmatpush.msra.mxu0 %v1699
    %2097 = vmatpush.msra.mxu0 %v1695
    %2098 = vmatpush.msra.mxu0 %v1691
    %2099 = vmatpush.msra.mxu0 %v1687
    %2100 = vmatpush.msra.mxu0 %v1683
    %2101 = vmatpush.msra.mxu0 %v1679
    %2102 = vmatpush.msra.mxu0 %v1675
    %2103 = vmatmul.f32.gmra.mxu0 %v2066
    %v2104 = vpop.f32.mrf.mxu0
    %v2105 = vadd.f32 0.0, %v2104
    %2106 = vdwg.mxu0
    %2107 = vmatpush.msra.mxu0 %v1736
    %2108 = vmatpush.msra.mxu0 %v1732
    %2109 = vmatpush.msra.mxu0 %v1728
    %2110 = vmatpush.msra.mxu0 %v1724
    %2111 = vmatpush.msra.mxu0 %v1720
    %2112 = vmatpush.msra.mxu0 %v1716
    %2113 = vmatpush.msra.mxu0 %v1712
    %2114 = vmatpush.msra.mxu0 %v1708
    %2115 = vmatpush.msra.mxu0 %v1704
    %2116 = vmatpush.msra.mxu0 %v1700
    %2117 = vmatpush.msra.mxu0 %v1696
    %2118 = vmatpush.msra.mxu0 %v1692
    %2119 = vmatpush.msra.mxu0 %v1688
    %2120 = vmatpush.msra.mxu0 %v1684
    %2121 = vmatpush.msra.mxu0 %v1680
    %2122 = vmatpush.msra.mxu0 %v1676
    %2123 = vmatmul.f32.gmra.mxu0 %v2066
    %v2124 = vpop.f32.mrf.mxu0
    %v2125 = vadd.f32 0.0, %v2124
    %2126 = vdwg.mxu0
    %2127 = vmatpush.msra.mxu0 %v1737
    %2128 = vmatpush.msra.mxu0 %v1733
    %2129 = vmatpush.msra.mxu0 %v1729
    %2130 = vmatpush.msra.mxu0 %v1725
    %2131 = vmatpush.msra.mxu0 %v1721
    %2132 = vmatpush.msra.mxu0 %v1717
    %2133 = vmatpush.msra.mxu0 %v1713
    %2134 = vmatpush.msra.mxu0 %v1709
    %2135 = vmatpush.msra.mxu0 %v1705
    %2136 = vmatpush.msra.mxu0 %v1701
    %2137 = vmatpush.msra.mxu0 %v1697
    %2138 = vmatpush.msra.mxu0 %v1693
    %2139 = vmatpush.msra.mxu0 %v1689
    %2140 = vmatpush.msra.mxu0 %v1685
    %2141 = vmatpush.msra.mxu0 %v1681
    %2142 = vmatpush.msra.mxu0 %v1677
    %2143 = vmatmul.f32.gmra.mxu0 %v2066
    %v2144 = vpop.f32.mrf.mxu0
    %v2145 = vadd.f32 0.0, %v2144
    %2146 = vdwg.mxu0
    %v2147 = vadd.f32 %v1777, %v2085
    %v2148 = vadd.f32 %v1818, %v2105
    %v2149 = vadd.f32 %v1859, %v2125
    %v2150 = vadd.f32 %v1900, %v2145
    %v2151 = vxor.u32 %v2147, 2147483648
    %v2152 = vxor.u32 %v2148, 2147483648
    %v2153 = vxor.u32 %v2149, 2147483648
    %v2154 = vmul.f32 %v2151, 1.442695
    %v2155 = vpow.pop %v2154
    %v2156 = vmul.f32 %v2152, 1.442695
    %v2157 = vpow.pop %v2156
    %v2158 = vmul.f32 %v2153, 1.442695
    %v2159 = vpow.pop %v2158
    %v2160 = vadd.f32 %v2155, 1.0
    %v2161 = vadd.f32 %v2157, 1.0
    %v2162 = vadd.f32 %v2159, 1.0
    %v2163 = vrcp.pop %v2160
    %v2164 = vmul.f32 %v2160, %v2163
    %v2165 = vsub.f32 1.0, %v2164
    %v2166 = vmul.f32 %v2163, %v2165
    %v2167 = vadd.f32 %v2163, %v2166
    %vm2168 = vweird.f32 %v2160
    %vm2169 = vweird.f32 %v2163
    %vm2170 = vmor %vm2168, %vm2169
    %v2171 = vsel %vm2170, %v2163, %v2167
    %v2172 = vand.u32 2147483647, %v2160
    %vm2173 = vcmp.eq.f32.partialorder %v2172, 8.507059e+37
    %v2174 = vand.u32 %v2160, 2147483648
    %v2175 = vor.u32 1.1754944e-38, %v2174
    %v2176 = vsel %vm2173, %v2175, %v2171
    %v2177 = vmul.f32 1.0, %v2176
    %v2178 = vrcp.pop %v2161
    %v2179 = vmul.f32 %v2161, %v2178
    %v2180 = vsub.f32 1.0, %v2179
    %v2181 = vmul.f32 %v2178, %v2180
    %v2182 = vadd.f32 %v2178, %v2181
    %vm2183 = vweird.f32 %v2161
    %vm2184 = vweird.f32 %v2178
    %vm2185 = vmor %vm2183, %vm2184
    %v2186 = vsel %vm2185, %v2178, %v2182
    %v2187 = vand.u32 2147483647, %v2161
    %vm2188 = vcmp.eq.f32.partialorder %v2187, 8.507059e+37
    %v2189 = vand.u32 %v2161, 2147483648
    %v2190 = vor.u32 1.1754944e-38, %v2189
    %v2191 = vsel %vm2188, %v2190, %v2186
    %v2192 = vmul.f32 1.0, %v2191
    %v2193 = vrcp.pop %v2162
    %v2194 = vmul.f32 %v2162, %v2193
    %v2195 = vsub.f32 1.0, %v2194
    %v2196 = vmul.f32 %v2193, %v2195
    %v2197 = vadd.f32 %v2193, %v2196
    %vm2198 = vweird.f32 %v2162
    %vm2199 = vweird.f32 %v2193
    %vm2200 = vmor %vm2198, %vm2199
    %v2201 = vsel %vm2200, %v2193, %v2197
    %v2202 = vand.u32 2147483647, %v2162
    %vm2203 = vcmp.eq.f32.partialorder %v2202, 8.507059e+37
    %v2204 = vand.u32 %v2162, 2147483648
    %v2205 = vor.u32 1.1754944e-38, %v2204
    %v2206 = vsel %vm2203, %v2205, %v2201
    %v2207 = vmul.f32 1.0, %v2206
    %v2208 = vtanh.pop %v2150
    %v2209 = vmul.f32 %v2192, %v2064
    %v2210 = vmul.f32 %v2177, %v2208
    %v2211 = vadd.f32 %v2209, %v2210
    %v2212 = vtanh.pop %v2211
    %v2213 = vmul.f32 %v2207, %v2212
    %2214 = vmatpush.msra.mxu0 %v1734
    %2215 = vmatpush.msra.mxu0 %v1730
    %2216 = vmatpush.msra.mxu0 %v1726
    %2217 = vmatpush.msra.mxu0 %v1722
    %2218 = vmatpush.msra.mxu0 %v1718
    %2219 = vmatpush.msra.mxu0 %v1714
    %2220 = vmatpush.msra.mxu0 %v1710
    %2221 = vmatpush.msra.mxu0 %v1706
    %2222 = vmatpush.msra.mxu0 %v1702
    %2223 = vmatpush.msra.mxu0 %v1698
    %2224 = vmatpush.msra.mxu0 %v1694
    %2225 = vmatpush.msra.mxu0 %v1690
    %2226 = vmatpush.msra.mxu0 %v1686
    %2227 = vmatpush.msra.mxu0 %v1682
    %2228 = vmatpush.msra.mxu0 %v1678
    %2229 = vmatpush.msra.mxu0 %v1674
    %2230 = vmatmul.f32.gmra.mxu0 %v2213
    %v2231 = vpop.f32.mrf.mxu0
    %v2232 = vadd.f32 0.0, %v2231
    %2233 = vdwg.mxu0
    %2234 = vmatpush.msra.mxu0 %v1735
    %2235 = vmatpush.msra.mxu0 %v1731
    %2236 = vmatpush.msra.mxu0 %v1727
    %2237 = vmatpush.msra.mxu0 %v1723
    %2238 = vmatpush.msra.mxu0 %v1719
    %2239 = vmatpush.msra.mxu0 %v1715
    %2240 = vmatpush.msra.mxu0 %v1711
    %2241 = vmatpush.msra.mxu0 %v1707
    %2242 = vmatpush.msra.mxu0 %v1703
    %2243 = vmatpush.msra.mxu0 %v1699
    %2244 = vmatpush.msra.mxu0 %v1695
    %2245 = vmatpush.msra.mxu0 %v1691
    %2246 = vmatpush.msra.mxu0 %v1687
    %2247 = vmatpush.msra.mxu0 %v1683
    %2248 = vmatpush.msra.mxu0 %v1679
    %2249 = vmatpush.msra.mxu0 %v1675
    %2250 = vmatmul.f32.gmra.mxu0 %v2213
    %v2251 = vpop.f32.mrf.mxu0
    %v2252 = vadd.f32 0.0, %v2251
    %2253 = vdwg.mxu0
    %2254 = vmatpush.msra.mxu0 %v1736
    %2255 = vmatpush.msra.mxu0 %v1732
    %2256 = vmatpush.msra.mxu0 %v1728
    %2257 = vmatpush.msra.mxu0 %v1724
    %2258 = vmatpush.msra.mxu0 %v1720
    %2259 = vmatpush.msra.mxu0 %v1716
    %2260 = vmatpush.msra.mxu0 %v1712
    %2261 = vmatpush.msra.mxu0 %v1708
    %2262 = vmatpush.msra.mxu0 %v1704
    %2263 = vmatpush.msra.mxu0 %v1700
    %2264 = vmatpush.msra.mxu0 %v1696
    %2265 = vmatpush.msra.mxu0 %v1692
    %2266 = vmatpush.msra.mxu0 %v1688
    %2267 = vmatpush.msra.mxu0 %v1684
    %2268 = vmatpush.msra.mxu0 %v1680
    %2269 = vmatpush.msra.mxu0 %v1676
    %2270 = vmatmul.f32.gmra.mxu0 %v2213
    %v2271 = vpop.f32.mrf.mxu0
    %v2272 = vadd.f32 0.0, %v2271
    %2273 = vdwg.mxu0
    %2274 = vmatpush.msra.mxu0 %v1737
    %2275 = vmatpush.msra.mxu0 %v1733
    %2276 = vmatpush.msra.mxu0 %v1729
    %2277 = vmatpush.msra.mxu0 %v1725
    %2278 = vmatpush.msra.mxu0 %v1721
    %2279 = vmatpush.msra.mxu0 %v1717
    %2280 = vmatpush.msra.mxu0 %v1713
    %2281 = vmatpush.msra.mxu0 %v1709
    %2282 = vmatpush.msra.mxu0 %v1705
    %2283 = vmatpush.msra.mxu0 %v1701
    %2284 = vmatpush.msra.mxu0 %v1697
    %2285 = vmatpush.msra.mxu0 %v1693
    %2286 = vmatpush.msra.mxu0 %v1689
    %2287 = vmatpush.msra.mxu0 %v1685
    %2288 = vmatpush.msra.mxu0 %v1681
    %2289 = vmatpush.msra.mxu0 %v1677
    %2290 = vmatmul.f32.gmra.mxu0 %v2213
    %v2291 = vpop.f32.mrf.mxu0
    %v2292 = vadd.f32 0.0, %v2291
    %2293 = vdwg.mxu0
    %v2294 = vadd.f32 %v1780, %v2232
    %v2295 = vadd.f32 %v1821, %v2252
    %v2296 = vadd.f32 %v1862, %v2272
    %v2297 = vadd.f32 %v1903, %v2292
    %v2298 = vxor.u32 %v2294, 2147483648
    %v2299 = vxor.u32 %v2295, 2147483648
    %v2300 = vxor.u32 %v2296, 2147483648
    %v2301 = vmul.f32 %v2298, 1.442695
    %v2302 = vpow.pop %v2301
    %v2303 = vmul.f32 %v2299, 1.442695
    %v2304 = vpow.pop %v2303
    %v2305 = vmul.f32 %v2300, 1.442695
    %v2306 = vpow.pop %v2305
    %v2307 = vadd.f32 %v2302, 1.0
    %v2308 = vadd.f32 %v2304, 1.0
    %v2309 = vadd.f32 %v2306, 1.0
    %v2310 = vrcp.pop %v2307
    %v2311 = vmul.f32 %v2307, %v2310
    %v2312 = vsub.f32 1.0, %v2311
    %v2313 = vmul.f32 %v2310, %v2312
    %v2314 = vadd.f32 %v2310, %v2313
    %vm2315 = vweird.f32 %v2307
    %vm2316 = vweird.f32 %v2310
    %vm2317 = vmor %vm2315, %vm2316
    %v2318 = vsel %vm2317, %v2310, %v2314
    %v2319 = vand.u32 2147483647, %v2307
    %vm2320 = vcmp.eq.f32.partialorder %v2319, 8.507059e+37
    %v2321 = vand.u32 %v2307, 2147483648
    %v2322 = vor.u32 1.1754944e-38, %v2321
    %v2323 = vsel %vm2320, %v2322, %v2318
    %v2324 = vmul.f32 1.0, %v2323
    %v2325 = vrcp.pop %v2308
    %v2326 = vmul.f32 %v2308, %v2325
    %v2327 = vsub.f32 1.0, %v2326
    %v2328 = vmul.f32 %v2325, %v2327
    %v2329 = vadd.f32 %v2325, %v2328
    %vm2330 = vweird.f32 %v2308
    %vm2331 = vweird.f32 %v2325
    %vm2332 = vmor %vm2330, %vm2331
    %v2333 = vsel %vm2332, %v2325, %v2329
    %v2334 = vand.u32 2147483647, %v2308
    %vm2335 = vcmp.eq.f32.partialorder %v2334, 8.507059e+37
    %v2336 = vand.u32 %v2308, 2147483648
    %v2337 = vor.u32 1.1754944e-38, %v2336
    %v2338 = vsel %vm2335, %v2337, %v2333
    %v2339 = vmul.f32 1.0, %v2338
    %v2340 = vrcp.pop %v2309
    %v2341 = vmul.f32 %v2309, %v2340
    %v2342 = vsub.f32 1.0, %v2341
    %v2343 = vmul.f32 %v2340, %v2342
    %v2344 = vadd.f32 %v2340, %v2343
    %vm2345 = vweird.f32 %v2309
    %vm2346 = vweird.f32 %v2340
    %vm2347 = vmor %vm2345, %vm2346
    %v2348 = vsel %vm2347, %v2340, %v2344
    %v2349 = vand.u32 2147483647, %v2309
    %vm2350 = vcmp.eq.f32.partialorder %v2349, 8.507059e+37
    %v2351 = vand.u32 %v2309, 2147483648
    %v2352 = vor.u32 1.1754944e-38, %v2351
    %v2353 = vsel %vm2350, %v2352, %v2348
    %v2354 = vmul.f32 1.0, %v2353
    %v2355 = vtanh.pop %v2297
    %v2356 = vmul.f32 %v2339, %v2211
    %v2357 = vmul.f32 %v2324, %v2355
    %v2358 = vadd.f32 %v2356, %v2357
    %v2359 = vtanh.pop %v2358
    %v2360 = vmul.f32 %v2354, %v2359
    %2361 = vmatpush.msra.mxu0 %v1734
    %2362 = vmatpush.msra.mxu0 %v1730
    %2363 = vmatpush.msra.mxu0 %v1726
    %2364 = vmatpush.msra.mxu0 %v1722
    %2365 = vmatpush.msra.mxu0 %v1718
    %2366 = vmatpush.msra.mxu0 %v1714
    %2367 = vmatpush.msra.mxu0 %v1710
    %2368 = vmatpush.msra.mxu0 %v1706
    %2369 = vmatpush.msra.mxu0 %v1702
    %2370 = vmatpush.msra.mxu0 %v1698
    %2371 = vmatpush.msra.mxu0 %v1694
    %2372 = vmatpush.msra.mxu0 %v1690
    %2373 = vmatpush.msra.mxu0 %v1686
    %2374 = vmatpush.msra.mxu0 %v1682
    %2375 = vmatpush.msra.mxu0 %v1678
    %2376 = vmatpush.msra.mxu0 %v1674
    %2377 = vmatmul.f32.gmra.mxu0 %v2360
    %v2378 = vpop.f32.mrf.mxu0
    %v2379 = vadd.f32 0.0, %v2378
    %2380 = vdwg.mxu0
    %2381 = vmatpush.msra.mxu0 %v1735
    %2382 = vmatpush.msra.mxu0 %v1731
    %2383 = vmatpush.msra.mxu0 %v1727
    %2384 = vmatpush.msra.mxu0 %v1723
    %2385 = vmatpush.msra.mxu0 %v1719
    %2386 = vmatpush.msra.mxu0 %v1715
    %2387 = vmatpush.msra.mxu0 %v1711
    %2388 = vmatpush.msra.mxu0 %v1707
    %2389 = vmatpush.msra.mxu0 %v1703
    %2390 = vmatpush.msra.mxu0 %v1699
    %2391 = vmatpush.msra.mxu0 %v1695
    %2392 = vmatpush.msra.mxu0 %v1691
    %2393 = vmatpush.msra.mxu0 %v1687
    %2394 = vmatpush.msra.mxu0 %v1683
    %2395 = vmatpush.msra.mxu0 %v1679
    %2396 = vmatpush.msra.mxu0 %v1675
    %2397 = vmatmul.f32.gmra.mxu0 %v2360
    %v2398 = vpop.f32.mrf.mxu0
    %v2399 = vadd.f32 0.0, %v2398
    %2400 = vdwg.mxu0
    %2401 = vmatpush.msra.mxu0 %v1736
    %2402 = vmatpush.msra.mxu0 %v1732
    %2403 = vmatpush.msra.mxu0 %v1728
    %2404 = vmatpush.msra.mxu0 %v1724
    %2405 = vmatpush.msra.mxu0 %v1720
    %2406 = vmatpush.msra.mxu0 %v1716
    %2407 = vmatpush.msra.mxu0 %v1712
    %2408 = vmatpush.msra.mxu0 %v1708
    %2409 = vmatpush.msra.mxu0 %v1704
    %2410 = vmatpush.msra.mxu0 %v1700
    %2411 = vmatpush.msra.mxu0 %v1696
    %2412 = vmatpush.msra.mxu0 %v1692
    %2413 = vmatpush.msra.mxu0 %v1688
    %2414 = vmatpush.msra.mxu0 %v1684
    %2415 = vmatpush.msra.mxu0 %v1680
    %2416 = vmatpush.msra.mxu0 %v1676
    %2417 = vmatmul.f32.gmra.mxu0 %v2360
    %v2418 = vpop.f32.mrf.mxu0
    %v2419 = vadd.f32 0.0, %v2418
    %2420 = vdwg.mxu0
    %2421 = vmatpush.msra.mxu0 %v1737
    %2422 = vmatpush.msra.mxu0 %v1733
    %2423 = vmatpush.msra.mxu0 %v1729
    %2424 = vmatpush.msra.mxu0 %v1725
    %2425 = vmatpush.msra.mxu0 %v1721
    %2426 = vmatpush.msra.mxu0 %v1717
    %2427 = vmatpush.msra.mxu0 %v1713
    %2428 = vmatpush.msra.mxu0 %v1709
    %2429 = vmatpush.msra.mxu0 %v1705
    %2430 = vmatpush.msra.mxu0 %v1701
    %2431 = vmatpush.msra.mxu0 %v1697
    %2432 = vmatpush.msra.mxu0 %v1693
    %2433 = vmatpush.msra.mxu0 %v1689
    %2434 = vmatpush.msra.mxu0 %v1685
    %2435 = vmatpush.msra.mxu0 %v1681
    %2436 = vmatpush.msra.mxu0 %v1677
    %2437 = vmatmul.f32.gmra.mxu0 %v2360
    %v2438 = vpop.f32.mrf.mxu0
    %v2439 = vadd.f32 0.0, %v2438
    %2440 = vdwg.mxu0
    %v2441 = vadd.f32 %v1783, %v2379
    %v2442 = vadd.f32 %v1824, %v2399
    %v2443 = vadd.f32 %v1865, %v2419
    %v2444 = vadd.f32 %v1906, %v2439
    %v2445 = vxor.u32 %v2441, 2147483648
    %v2446 = vxor.u32 %v2442, 2147483648
    %v2447 = vxor.u32 %v2443, 2147483648
    %v2448 = vmul.f32 %v2445, 1.442695
    %v2449 = vpow.pop %v2448
    %v2450 = vmul.f32 %v2446, 1.442695
    %v2451 = vpow.pop %v2450
    %v2452 = vmul.f32 %v2447, 1.442695
    %v2453 = vpow.pop %v2452
    %v2454 = vadd.f32 %v2449, 1.0
    %v2455 = vadd.f32 %v2451, 1.0
    %v2456 = vadd.f32 %v2453, 1.0
    %v2457 = vrcp.pop %v2454
    %v2458 = vmul.f32 %v2454, %v2457
    %v2459 = vsub.f32 1.0, %v2458
    %v2460 = vmul.f32 %v2457, %v2459
    %v2461 = vadd.f32 %v2457, %v2460
    %vm2462 = vweird.f32 %v2454
    %vm2463 = vweird.f32 %v2457
    %vm2464 = vmor %vm2462, %vm2463
    %v2465 = vsel %vm2464, %v2457, %v2461
    %v2466 = vand.u32 2147483647, %v2454
    %vm2467 = vcmp.eq.f32.partialorder %v2466, 8.507059e+37
    %v2468 = vand.u32 %v2454, 2147483648
    %v2469 = vor.u32 1.1754944e-38, %v2468
    %v2470 = vsel %vm2467, %v2469, %v2465
    %v2471 = vmul.f32 1.0, %v2470
    %v2472 = vrcp.pop %v2455
    %v2473 = vmul.f32 %v2455, %v2472
    %v2474 = vsub.f32 1.0, %v2473
    %v2475 = vmul.f32 %v2472, %v2474
    %v2476 = vadd.f32 %v2472, %v2475
    %vm2477 = vweird.f32 %v2455
    %vm2478 = vweird.f32 %v2472
    %vm2479 = vmor %vm2477, %vm2478
    %v2480 = vsel %vm2479, %v2472, %v2476
    %v2481 = vand.u32 2147483647, %v2455
    %vm2482 = vcmp.eq.f32.partialorder %v2481, 8.507059e+37
    %v2483 = vand.u32 %v2455, 2147483648
    %v2484 = vor.u32 1.1754944e-38, %v2483
    %v2485 = vsel %vm2482, %v2484, %v2480
    %v2486 = vmul.f32 1.0, %v2485
    %v2487 = vrcp.pop %v2456
    %v2488 = vmul.f32 %v2456, %v2487
    %v2489 = vsub.f32 1.0, %v2488
    %v2490 = vmul.f32 %v2487, %v2489
    %v2491 = vadd.f32 %v2487, %v2490
    %vm2492 = vweird.f32 %v2456
    %vm2493 = vweird.f32 %v2487
    %vm2494 = vmor %vm2492, %vm2493
    %v2495 = vsel %vm2494, %v2487, %v2491
    %v2496 = vand.u32 2147483647, %v2456
    %vm2497 = vcmp.eq.f32.partialorder %v2496, 8.507059e+37
    %v2498 = vand.u32 %v2456, 2147483648
    %v2499 = vor.u32 1.1754944e-38, %v2498
    %v2500 = vsel %vm2497, %v2499, %v2495
    %v2501 = vmul.f32 1.0, %v2500
    %v2502 = vtanh.pop %v2444
    %v2503 = vmul.f32 %v2486, %v2358
    %v2504 = vmul.f32 %v2471, %v2502
    %v2505 = vadd.f32 %v2503, %v2504
    %v2506 = vtanh.pop %v2505
    %v2507 = vmul.f32 %v2501, %v2506
    %2508 = vmatpush.msra.mxu0 %v1734
    %2509 = vmatpush.msra.mxu0 %v1730
    %2510 = vmatpush.msra.mxu0 %v1726
    %2511 = vmatpush.msra.mxu0 %v1722
    %2512 = vmatpush.msra.mxu0 %v1718
    %2513 = vmatpush.msra.mxu0 %v1714
    %2514 = vmatpush.msra.mxu0 %v1710
    %2515 = vmatpush.msra.mxu0 %v1706
    %2516 = vmatpush.msra.mxu0 %v1702
    %2517 = vmatpush.msra.mxu0 %v1698
    %2518 = vmatpush.msra.mxu0 %v1694
    %2519 = vmatpush.msra.mxu0 %v1690
    %2520 = vmatpush.msra.mxu0 %v1686
    %2521 = vmatpush.msra.mxu0 %v1682
    %2522 = vmatpush.msra.mxu0 %v1678
    %2523 = vmatpush.msra.mxu0 %v1674
    %2524 = vmatmul.f32.gmra.mxu0 %v2507
    %v2525 = vpop.f32.mrf.mxu0
    %v2526 = vadd.f32 0.0, %v2525
    %2527 = vdwg.mxu0
    %2528 = vmatpush.msra.mxu0 %v1735
    %2529 = vmatpush.msra.mxu0 %v1731
    %2530 = vmatpush.msra.mxu0 %v1727
    %2531 = vmatpush.msra.mxu0 %v1723
    %2532 = vmatpush.msra.mxu0 %v1719
    %2533 = vmatpush.msra.mxu0 %v1715
    %2534 = vmatpush.msra.mxu0 %v1711
    %2535 = vmatpush.msra.mxu0 %v1707
    %2536 = vmatpush.msra.mxu0 %v1703
    %2537 = vmatpush.msra.mxu0 %v1699
    %2538 = vmatpush.msra.mxu0 %v1695
    %2539 = vmatpush.msra.mxu0 %v1691
    %2540 = vmatpush.msra.mxu0 %v1687
    %2541 = vmatpush.msra.mxu0 %v1683
    %2542 = vmatpush.msra.mxu0 %v1679
    %2543 = vmatpush.msra.mxu0 %v1675
    %2544 = vmatmul.f32.gmra.mxu0 %v2507
    %v2545 = vpop.f32.mrf.mxu0
    %v2546 = vadd.f32 0.0, %v2545
    %2547 = vdwg.mxu0
    %2548 = vmatpush.msra.mxu0 %v1736
    %2549 = vmatpush.msra.mxu0 %v1732
    %2550 = vmatpush.msra.mxu0 %v1728
    %2551 = vmatpush.msra.mxu0 %v1724
    %2552 = vmatpush.msra.mxu0 %v1720
    %2553 = vmatpush.msra.mxu0 %v1716
    %2554 = vmatpush.msra.mxu0 %v1712
    %2555 = vmatpush.msra.mxu0 %v1708
    %2556 = vmatpush.msra.mxu0 %v1704
    %2557 = vmatpush.msra.mxu0 %v1700
    %2558 = vmatpush.msra.mxu0 %v1696
    %2559 = vmatpush.msra.mxu0 %v1692
    %2560 = vmatpush.msra.mxu0 %v1688
    %2561 = vmatpush.msra.mxu0 %v1684
    %2562 = vmatpush.msra.mxu0 %v1680
    %2563 = vmatpush.msra.mxu0 %v1676
    %2564 = vmatmul.f32.gmra.mxu0 %v2507
    %v2565 = vpop.f32.mrf.mxu0
    %v2566 = vadd.f32 0.0, %v2565
    %2567 = vdwg.mxu0
    %2568 = vmatpush.msra.mxu0 %v1737
    %2569 = vmatpush.msra.mxu0 %v1733
    %2570 = vmatpush.msra.mxu0 %v1729
    %2571 = vmatpush.msra.mxu0 %v1725
    %2572 = vmatpush.msra.mxu0 %v1721
    %2573 = vmatpush.msra.mxu0 %v1717
    %2574 = vmatpush.msra.mxu0 %v1713
    %2575 = vmatpush.msra.mxu0 %v1709
    %2576 = vmatpush.msra.mxu0 %v1705
    %2577 = vmatpush.msra.mxu0 %v1701
    %2578 = vmatpush.msra.mxu0 %v1697
    %2579 = vmatpush.msra.mxu0 %v1693
    %2580 = vmatpush.msra.mxu0 %v1689
    %2581 = vmatpush.msra.mxu0 %v1685
    %2582 = vmatpush.msra.mxu0 %v1681
    %2583 = vmatpush.msra.mxu0 %v1677
    %2584 = vmatmul.f32.gmra.mxu0 %v2507
    %v2585 = vpop.f32.mrf.mxu0
    %v2586 = vadd.f32 0.0, %v2585
    %2587 = vdwg.mxu0
    %v2588 = vadd.f32 %v1786, %v2526
    %v2589 = vadd.f32 %v1827, %v2546
    %v2590 = vadd.f32 %v1868, %v2566
    %v2591 = vadd.f32 %v1909, %v2586
    %v2592 = vxor.u32 %v2588, 2147483648
    %v2593 = vxor.u32 %v2589, 2147483648
    %v2594 = vxor.u32 %v2590, 2147483648
    %v2595 = vmul.f32 %v2592, 1.442695
    %v2596 = vpow.pop %v2595
    %v2597 = vmul.f32 %v2593, 1.442695
    %v2598 = vpow.pop %v2597
    %v2599 = vmul.f32 %v2594, 1.442695
    %v2600 = vpow.pop %v2599
    %v2601 = vadd.f32 %v2596, 1.0
    %v2602 = vadd.f32 %v2598, 1.0
    %v2603 = vadd.f32 %v2600, 1.0
    %v2604 = vrcp.pop %v2601
    %v2605 = vmul.f32 %v2601, %v2604
    %v2606 = vsub.f32 1.0, %v2605
    %v2607 = vmul.f32 %v2604, %v2606
    %v2608 = vadd.f32 %v2604, %v2607
    %vm2609 = vweird.f32 %v2601
    %vm2610 = vweird.f32 %v2604
    %vm2611 = vmor %vm2609, %vm2610
    %v2612 = vsel %vm2611, %v2604, %v2608
    %v2613 = vand.u32 2147483647, %v2601
    %vm2614 = vcmp.eq.f32.partialorder %v2613, 8.507059e+37
    %v2615 = vand.u32 %v2601, 2147483648
    %v2616 = vor.u32 1.1754944e-38, %v2615
    %v2617 = vsel %vm2614, %v2616, %v2612
    %v2618 = vmul.f32 1.0, %v2617
    %v2619 = vrcp.pop %v2602
    %v2620 = vmul.f32 %v2602, %v2619
    %v2621 = vsub.f32 1.0, %v2620
    %v2622 = vmul.f32 %v2619, %v2621
    %v2623 = vadd.f32 %v2619, %v2622
    %vm2624 = vweird.f32 %v2602
    %vm2625 = vweird.f32 %v2619
    %vm2626 = vmor %vm2624, %vm2625
    %v2627 = vsel %vm2626, %v2619, %v2623
    %v2628 = vand.u32 2147483647, %v2602
    %vm2629 = vcmp.eq.f32.partialorder %v2628, 8.507059e+37
    %v2630 = vand.u32 %v2602, 2147483648
    %v2631 = vor.u32 1.1754944e-38, %v2630
    %v2632 = vsel %vm2629, %v2631, %v2627
    %v2633 = vmul.f32 1.0, %v2632
    %v2634 = vrcp.pop %v2603
    %v2635 = vmul.f32 %v2603, %v2634
    %v2636 = vsub.f32 1.0, %v2635
    %v2637 = vmul.f32 %v2634, %v2636
    %v2638 = vadd.f32 %v2634, %v2637
    %vm2639 = vweird.f32 %v2603
    %vm2640 = vweird.f32 %v2634
    %vm2641 = vmor %vm2639, %vm2640
    %v2642 = vsel %vm2641, %v2634, %v2638
    %v2643 = vand.u32 2147483647, %v2603
    %vm2644 = vcmp.eq.f32.partialorder %v2643, 8.507059e+37
    %v2645 = vand.u32 %v2603, 2147483648
    %v2646 = vor.u32 1.1754944e-38, %v2645
    %v2647 = vsel %vm2644, %v2646, %v2642
    %v2648 = vmul.f32 1.0, %v2647
    %v2649 = vtanh.pop %v2591
    %v2650 = vmul.f32 %v2633, %v2505
    %v2651 = vmul.f32 %v2618, %v2649
    %v2652 = vadd.f32 %v2650, %v2651
    %v2653 = vtanh.pop %v2652
    %v2654 = vmul.f32 %v2648, %v2653
    %2655 = vmatpush.msra.mxu0 %v1734
    %2656 = vmatpush.msra.mxu0 %v1730
    %2657 = vmatpush.msra.mxu0 %v1726
    %2658 = vmatpush.msra.mxu0 %v1722
    %2659 = vmatpush.msra.mxu0 %v1718
    %2660 = vmatpush.msra.mxu0 %v1714
    %2661 = vmatpush.msra.mxu0 %v1710
    %2662 = vmatpush.msra.mxu0 %v1706
    %2663 = vmatpush.msra.mxu0 %v1702
    %2664 = vmatpush.msra.mxu0 %v1698
    %2665 = vmatpush.msra.mxu0 %v1694
    %2666 = vmatpush.msra.mxu0 %v1690
    %2667 = vmatpush.msra.mxu0 %v1686
    %2668 = vmatpush.msra.mxu0 %v1682
    %2669 = vmatpush.msra.mxu0 %v1678
    %2670 = vmatpush.msra.mxu0 %v1674
    %2671 = vmatmul.f32.gmra.mxu0 %v2654
    %v2672 = vpop.f32.mrf.mxu0
    %v2673 = vadd.f32 0.0, %v2672
    %2674 = vdwg.mxu0
    %2675 = vmatpush.msra.mxu0 %v1735
    %2676 = vmatpush.msra.mxu0 %v1731
    %2677 = vmatpush.msra.mxu0 %v1727
    %2678 = vmatpush.msra.mxu0 %v1723
    %2679 = vmatpush.msra.mxu0 %v1719
    %2680 = vmatpush.msra.mxu0 %v1715
    %2681 = vmatpush.msra.mxu0 %v1711
    %2682 = vmatpush.msra.mxu0 %v1707
    %2683 = vmatpush.msra.mxu0 %v1703
    %2684 = vmatpush.msra.mxu0 %v1699
    %2685 = vmatpush.msra.mxu0 %v1695
    %2686 = vmatpush.msra.mxu0 %v1691
    %2687 = vmatpush.msra.mxu0 %v1687
    %2688 = vmatpush.msra.mxu0 %v1683
    %2689 = vmatpush.msra.mxu0 %v1679
    %2690 = vmatpush.msra.mxu0 %v1675
    %2691 = vmatmul.f32.gmra.mxu0 %v2654
    %v2692 = vpop.f32.mrf.mxu0
    %v2693 = vadd.f32 0.0, %v2692
    %2694 = vdwg.mxu0
    %2695 = vmatpush.msra.mxu0 %v1736
    %2696 = vmatpush.msra.mxu0 %v1732
    %2697 = vmatpush.msra.mxu0 %v1728
    %2698 = vmatpush.msra.mxu0 %v1724
    %2699 = vmatpush.msra.mxu0 %v1720
    %2700 = vmatpush.msra.mxu0 %v1716
    %2701 = vmatpush.msra.mxu0 %v1712
    %2702 = vmatpush.msra.mxu0 %v1708
    %2703 = vmatpush.msra.mxu0 %v1704
    %2704 = vmatpush.msra.mxu0 %v1700
    %2705 = vmatpush.msra.mxu0 %v1696
    %2706 = vmatpush.msra.mxu0 %v1692
    %2707 = vmatpush.msra.mxu0 %v1688
    %2708 = vmatpush.msra.mxu0 %v1684
    %2709 = vmatpush.msra.mxu0 %v1680
    %2710 = vmatpush.msra.mxu0 %v1676
    %2711 = vmatmul.f32.gmra.mxu0 %v2654
    %v2712 = vpop.f32.mrf.mxu0
    %v2713 = vadd.f32 0.0, %v2712
    %2714 = vdwg.mxu0
    %2715 = vmatpush.msra.mxu0 %v1737
    %2716 = vmatpush.msra.mxu0 %v1733
    %2717 = vmatpush.msra.mxu0 %v1729
    %2718 = vmatpush.msra.mxu0 %v1725
    %2719 = vmatpush.msra.mxu0 %v1721
    %2720 = vmatpush.msra.mxu0 %v1717
    %2721 = vmatpush.msra.mxu0 %v1713
    %2722 = vmatpush.msra.mxu0 %v1709
    %2723 = vmatpush.msra.mxu0 %v1705
    %2724 = vmatpush.msra.mxu0 %v1701
    %2725 = vmatpush.msra.mxu0 %v1697
    %2726 = vmatpush.msra.mxu0 %v1693
    %2727 = vmatpush.msra.mxu0 %v1689
    %2728 = vmatpush.msra.mxu0 %v1685
    %2729 = vmatpush.msra.mxu0 %v1681
    %2730 = vmatpush.msra.mxu0 %v1677
    %2731 = vmatmul.f32.gmra.mxu0 %v2654
    %v2732 = vpop.f32.mrf.mxu0
    %v2733 = vadd.f32 0.0, %v2732
    %2734 = vdwg.mxu0
    %v2735 = vadd.f32 %v1789, %v2673
    %v2736 = vadd.f32 %v1830, %v2693
    %v2737 = vadd.f32 %v1871, %v2713
    %v2738 = vadd.f32 %v1912, %v2733
    %v2739 = vxor.u32 %v2735, 2147483648
    %v2740 = vxor.u32 %v2736, 2147483648
    %v2741 = vxor.u32 %v2737, 2147483648
    %v2742 = vmul.f32 %v2739, 1.442695
    %v2743 = vpow.pop %v2742
    %v2744 = vmul.f32 %v2740, 1.442695
    %v2745 = vpow.pop %v2744
    %v2746 = vmul.f32 %v2741, 1.442695
    %v2747 = vpow.pop %v2746
    %v2748 = vadd.f32 %v2743, 1.0
    %v2749 = vadd.f32 %v2745, 1.0
    %v2750 = vadd.f32 %v2747, 1.0
    %v2751 = vrcp.pop %v2748
    %v2752 = vmul.f32 %v2748, %v2751
    %v2753 = vsub.f32 1.0, %v2752
    %v2754 = vmul.f32 %v2751, %v2753
    %v2755 = vadd.f32 %v2751, %v2754
    %vm2756 = vweird.f32 %v2748
    %vm2757 = vweird.f32 %v2751
    %vm2758 = vmor %vm2756, %vm2757
    %v2759 = vsel %vm2758, %v2751, %v2755
    %v2760 = vand.u32 2147483647, %v2748
    %vm2761 = vcmp.eq.f32.partialorder %v2760, 8.507059e+37
    %v2762 = vand.u32 %v2748, 2147483648
    %v2763 = vor.u32 1.1754944e-38, %v2762
    %v2764 = vsel %vm2761, %v2763, %v2759
    %v2765 = vmul.f32 1.0, %v2764
    %v2766 = vrcp.pop %v2749
    %v2767 = vmul.f32 %v2749, %v2766
    %v2768 = vsub.f32 1.0, %v2767
    %v2769 = vmul.f32 %v2766, %v2768
    %v2770 = vadd.f32 %v2766, %v2769
    %vm2771 = vweird.f32 %v2749
    %vm2772 = vweird.f32 %v2766
    %vm2773 = vmor %vm2771, %vm2772
    %v2774 = vsel %vm2773, %v2766, %v2770
    %v2775 = vand.u32 2147483647, %v2749
    %vm2776 = vcmp.eq.f32.partialorder %v2775, 8.507059e+37
    %v2777 = vand.u32 %v2749, 2147483648
    %v2778 = vor.u32 1.1754944e-38, %v2777
    %v2779 = vsel %vm2776, %v2778, %v2774
    %v2780 = vmul.f32 1.0, %v2779
    %v2781 = vrcp.pop %v2750
    %v2782 = vmul.f32 %v2750, %v2781
    %v2783 = vsub.f32 1.0, %v2782
    %v2784 = vmul.f32 %v2781, %v2783
    %v2785 = vadd.f32 %v2781, %v2784
    %vm2786 = vweird.f32 %v2750
    %vm2787 = vweird.f32 %v2781
    %vm2788 = vmor %vm2786, %vm2787
    %v2789 = vsel %vm2788, %v2781, %v2785
    %v2790 = vand.u32 2147483647, %v2750
    %vm2791 = vcmp.eq.f32.partialorder %v2790, 8.507059e+37
    %v2792 = vand.u32 %v2750, 2147483648
    %v2793 = vor.u32 1.1754944e-38, %v2792
    %v2794 = vsel %vm2791, %v2793, %v2789
    %v2795 = vmul.f32 1.0, %v2794
    %v2796 = vtanh.pop %v2738
    %v2797 = vmul.f32 %v2780, %v2652
    %v2798 = vmul.f32 %v2765, %v2796
    %v2799 = vadd.f32 %v2797, %v2798
    %v2800 = vtanh.pop %v2799
    %v2801 = vmul.f32 %v2795, %v2800
    %2802 = vmatpush.msra.mxu0 %v1734
    %2803 = vmatpush.msra.mxu0 %v1730
    %2804 = vmatpush.msra.mxu0 %v1726
    %2805 = vmatpush.msra.mxu0 %v1722
    %2806 = vmatpush.msra.mxu0 %v1718
    %2807 = vmatpush.msra.mxu0 %v1714
    %2808 = vmatpush.msra.mxu0 %v1710
    %2809 = vmatpush.msra.mxu0 %v1706
    %2810 = vmatpush.msra.mxu0 %v1702
    %2811 = vmatpush.msra.mxu0 %v1698
    %2812 = vmatpush.msra.mxu0 %v1694
    %2813 = vmatpush.msra.mxu0 %v1690
    %2814 = vmatpush.msra.mxu0 %v1686
    %2815 = vmatpush.msra.mxu0 %v1682
    %2816 = vmatpush.msra.mxu0 %v1678
    %2817 = vmatpush.msra.mxu0 %v1674
    %2818 = vmatmul.f32.gmra.mxu0 %v2801
    %v2819 = vpop.f32.mrf.mxu0
    %v2820 = vadd.f32 0.0, %v2819
    %2821 = vdwg.mxu0
    %2822 = vmatpush.msra.mxu0 %v1735
    %2823 = vmatpush.msra.mxu0 %v1731
    %2824 = vmatpush.msra.mxu0 %v1727
    %2825 = vmatpush.msra.mxu0 %v1723
    %2826 = vmatpush.msra.mxu0 %v1719
    %2827 = vmatpush.msra.mxu0 %v1715
    %2828 = vmatpush.msra.mxu0 %v1711
    %2829 = vmatpush.msra.mxu0 %v1707
    %2830 = vmatpush.msra.mxu0 %v1703
    %2831 = vmatpush.msra.mxu0 %v1699
    %2832 = vmatpush.msra.mxu0 %v1695
    %2833 = vmatpush.msra.mxu0 %v1691
    %2834 = vmatpush.msra.mxu0 %v1687
    %2835 = vmatpush.msra.mxu0 %v1683
    %2836 = vmatpush.msra.mxu0 %v1679
    %2837 = vmatpush.msra.mxu0 %v1675
    %2838 = vmatmul.f32.gmra.mxu0 %v2801
    %v2839 = vpop.f32.mrf.mxu0
    %v2840 = vadd.f32 0.0, %v2839
    %2841 = vdwg.mxu0
    %2842 = vmatpush.msra.mxu0 %v1736
    %2843 = vmatpush.msra.mxu0 %v1732
    %2844 = vmatpush.msra.mxu0 %v1728
    %2845 = vmatpush.msra.mxu0 %v1724
    %2846 = vmatpush.msra.mxu0 %v1720
    %2847 = vmatpush.msra.mxu0 %v1716
    %2848 = vmatpush.msra.mxu0 %v1712
    %2849 = vmatpush.msra.mxu0 %v1708
    %2850 = vmatpush.msra.mxu0 %v1704
    %2851 = vmatpush.msra.mxu0 %v1700
    %2852 = vmatpush.msra.mxu0 %v1696
    %2853 = vmatpush.msra.mxu0 %v1692
    %2854 = vmatpush.msra.mxu0 %v1688
    %2855 = vmatpush.msra.mxu0 %v1684
    %2856 = vmatpush.msra.mxu0 %v1680
    %2857 = vmatpush.msra.mxu0 %v1676
    %2858 = vmatmul.f32.gmra.mxu0 %v2801
    %v2859 = vpop.f32.mrf.mxu0
    %v2860 = vadd.f32 0.0, %v2859
    %2861 = vdwg.mxu0
    %2862 = vmatpush.msra.mxu0 %v1737
    %2863 = vmatpush.msra.mxu0 %v1733
    %2864 = vmatpush.msra.mxu0 %v1729
    %2865 = vmatpush.msra.mxu0 %v1725
    %2866 = vmatpush.msra.mxu0 %v1721
    %2867 = vmatpush.msra.mxu0 %v1717
    %2868 = vmatpush.msra.mxu0 %v1713
    %2869 = vmatpush.msra.mxu0 %v1709
    %2870 = vmatpush.msra.mxu0 %v1705
    %2871 = vmatpush.msra.mxu0 %v1701
    %2872 = vmatpush.msra.mxu0 %v1697
    %2873 = vmatpush.msra.mxu0 %v1693
    %2874 = vmatpush.msra.mxu0 %v1689
    %2875 = vmatpush.msra.mxu0 %v1685
    %2876 = vmatpush.msra.mxu0 %v1681
    %2877 = vmatpush.msra.mxu0 %v1677
    %2878 = vmatmul.f32.gmra.mxu0 %v2801
    %v2879 = vpop.f32.mrf.mxu0
    %v2880 = vadd.f32 0.0, %v2879
    %2881 = vdwg.mxu0
    %v2882 = vadd.f32 %v1792, %v2820
    %v2883 = vadd.f32 %v1833, %v2840
    %v2884 = vadd.f32 %v1874, %v2860
    %v2885 = vadd.f32 %v1915, %v2880
    %v2886 = vxor.u32 %v2882, 2147483648
    %v2887 = vxor.u32 %v2883, 2147483648
    %v2888 = vxor.u32 %v2884, 2147483648
    %v2889 = vmul.f32 %v2886, 1.442695
    %v2890 = vpow.pop %v2889
    %v2891 = vmul.f32 %v2887, 1.442695
    %v2892 = vpow.pop %v2891
    %v2893 = vmul.f32 %v2888, 1.442695
    %v2894 = vpow.pop %v2893
    %v2895 = vadd.f32 %v2890, 1.0
    %v2896 = vadd.f32 %v2892, 1.0
    %v2897 = vadd.f32 %v2894, 1.0
    %v2898 = vrcp.pop %v2895
    %v2899 = vmul.f32 %v2895, %v2898
    %v2900 = vsub.f32 1.0, %v2899
    %v2901 = vmul.f32 %v2898, %v2900
    %v2902 = vadd.f32 %v2898, %v2901
    %vm2903 = vweird.f32 %v2895
    %vm2904 = vweird.f32 %v2898
    %vm2905 = vmor %vm2903, %vm2904
    %v2906 = vsel %vm2905, %v2898, %v2902
    %v2907 = vand.u32 2147483647, %v2895
    %vm2908 = vcmp.eq.f32.partialorder %v2907, 8.507059e+37
    %v2909 = vand.u32 %v2895, 2147483648
    %v2910 = vor.u32 1.1754944e-38, %v2909
    %v2911 = vsel %vm2908, %v2910, %v2906
    %v2912 = vmul.f32 1.0, %v2911
    %v2913 = vrcp.pop %v2896
    %v2914 = vmul.f32 %v2896, %v2913
    %v2915 = vsub.f32 1.0, %v2914
    %v2916 = vmul.f32 %v2913, %v2915
    %v2917 = vadd.f32 %v2913, %v2916
    %vm2918 = vweird.f32 %v2896
    %vm2919 = vweird.f32 %v2913
    %vm2920 = vmor %vm2918, %vm2919
    %v2921 = vsel %vm2920, %v2913, %v2917
    %v2922 = vand.u32 2147483647, %v2896
    %vm2923 = vcmp.eq.f32.partialorder %v2922, 8.507059e+37
    %v2924 = vand.u32 %v2896, 2147483648
    %v2925 = vor.u32 1.1754944e-38, %v2924
    %v2926 = vsel %vm2923, %v2925, %v2921
    %v2927 = vmul.f32 1.0, %v2926
    %v2928 = vrcp.pop %v2897
    %v2929 = vmul.f32 %v2897, %v2928
    %v2930 = vsub.f32 1.0, %v2929
    %v2931 = vmul.f32 %v2928, %v2930
    %v2932 = vadd.f32 %v2928, %v2931
    %vm2933 = vweird.f32 %v2897
    %vm2934 = vweird.f32 %v2928
    %vm2935 = vmor %vm2933, %vm2934
    %v2936 = vsel %vm2935, %v2928, %v2932
    %v2937 = vand.u32 2147483647, %v2897
    %vm2938 = vcmp.eq.f32.partialorder %v2937, 8.507059e+37
    %v2939 = vand.u32 %v2897, 2147483648
    %v2940 = vor.u32 1.1754944e-38, %v2939
    %v2941 = vsel %vm2938, %v2940, %v2936
    %v2942 = vmul.f32 1.0, %v2941
    %v2943 = vtanh.pop %v2885
    %v2944 = vmul.f32 %v2927, %v2799
    %v2945 = vmul.f32 %v2912, %v2943
    %v2946 = vadd.f32 %v2944, %v2945
    %v2947 = vtanh.pop %v2946
    %v2948 = vmul.f32 %v2942, %v2947
    %2949 = vmatpush.msra.mxu0 %v1734
    %2950 = vmatpush.msra.mxu0 %v1730
    %2951 = vmatpush.msra.mxu0 %v1726
    %2952 = vmatpush.msra.mxu0 %v1722
    %2953 = vmatpush.msra.mxu0 %v1718
    %2954 = vmatpush.msra.mxu0 %v1714
    %2955 = vmatpush.msra.mxu0 %v1710
    %2956 = vmatpush.msra.mxu0 %v1706
    %2957 = vmatpush.msra.mxu0 %v1702
    %2958 = vmatpush.msra.mxu0 %v1698
    %2959 = vmatpush.msra.mxu0 %v1694
    %2960 = vmatpush.msra.mxu0 %v1690
    %2961 = vmatpush.msra.mxu0 %v1686
    %2962 = vmatpush.msra.mxu0 %v1682
    %2963 = vmatpush.msra.mxu0 %v1678
    %2964 = vmatpush.msra.mxu0 %v1674
    %2965 = vmatmul.f32.gmra.mxu0 %v2948
    %v2966 = vpop.f32.mrf.mxu0
    %v2967 = vadd.f32 0.0, %v2966
    %2968 = vdwg.mxu0
    %2969 = vmatpush.msra.mxu0 %v1735
    %2970 = vmatpush.msra.mxu0 %v1731
    %2971 = vmatpush.msra.mxu0 %v1727
    %2972 = vmatpush.msra.mxu0 %v1723
    %2973 = vmatpush.msra.mxu0 %v1719
    %2974 = vmatpush.msra.mxu0 %v1715
    %2975 = vmatpush.msra.mxu0 %v1711
    %2976 = vmatpush.msra.mxu0 %v1707
    %2977 = vmatpush.msra.mxu0 %v1703
    %2978 = vmatpush.msra.mxu0 %v1699
    %2979 = vmatpush.msra.mxu0 %v1695
    %2980 = vmatpush.msra.mxu0 %v1691
    %2981 = vmatpush.msra.mxu0 %v1687
    %2982 = vmatpush.msra.mxu0 %v1683
    %2983 = vmatpush.msra.mxu0 %v1679
    %2984 = vmatpush.msra.mxu0 %v1675
    %2985 = vmatmul.f32.gmra.mxu0 %v2948
    %v2986 = vpop.f32.mrf.mxu0
    %v2987 = vadd.f32 0.0, %v2986
    %2988 = vdwg.mxu0
    %2989 = vmatpush.msra.mxu0 %v1736
    %2990 = vmatpush.msra.mxu0 %v1732
    %2991 = vmatpush.msra.mxu0 %v1728
    %2992 = vmatpush.msra.mxu0 %v1724
    %2993 = vmatpush.msra.mxu0 %v1720
    %2994 = vmatpush.msra.mxu0 %v1716
    %2995 = vmatpush.msra.mxu0 %v1712
    %2996 = vmatpush.msra.mxu0 %v1708
    %2997 = vmatpush.msra.mxu0 %v1704
    %2998 = vmatpush.msra.mxu0 %v1700
    %2999 = vmatpush.msra.mxu0 %v1696
    %3000 = vmatpush.msra.mxu0 %v1692
    %3001 = vmatpush.msra.mxu0 %v1688
    %3002 = vmatpush.msra.mxu0 %v1684
    %3003 = vmatpush.msra.mxu0 %v1680
    %3004 = vmatpush.msra.mxu0 %v1676
    %3005 = vmatmul.f32.gmra.mxu0 %v2948
    %v3006 = vpop.f32.mrf.mxu0
    %v3007 = vadd.f32 0.0, %v3006
    %3008 = vdwg.mxu0
    %3009 = vmatpush.msra.mxu0 %v1737
    %3010 = vmatpush.msra.mxu0 %v1733
    %3011 = vmatpush.msra.mxu0 %v1729
    %3012 = vmatpush.msra.mxu0 %v1725
    %3013 = vmatpush.msra.mxu0 %v1721
    %3014 = vmatpush.msra.mxu0 %v1717
    %3015 = vmatpush.msra.mxu0 %v1713
    %3016 = vmatpush.msra.mxu0 %v1709
    %3017 = vmatpush.msra.mxu0 %v1705
    %3018 = vmatpush.msra.mxu0 %v1701
    %3019 = vmatpush.msra.mxu0 %v1697
    %3020 = vmatpush.msra.mxu0 %v1693
    %3021 = vmatpush.msra.mxu0 %v1689
    %3022 = vmatpush.msra.mxu0 %v1685
    %3023 = vmatpush.msra.mxu0 %v1681
    %3024 = vmatpush.msra.mxu0 %v1677
    %3025 = vmatmul.f32.gmra.mxu0 %v2948
    %v3026 = vpop.f32.mrf.mxu0
    %v3027 = vadd.f32 0.0, %v3026
    %3028 = vdwg.mxu0
    %v3029 = vadd.f32 %v1795, %v2967
    %v3030 = vadd.f32 %v1836, %v2987
    %v3031 = vadd.f32 %v1877, %v3007
    %v3032 = vadd.f32 %v1918, %v3027
    %v3033 = vxor.u32 %v3029, 2147483648
    %v3034 = vxor.u32 %v3030, 2147483648
    %v3035 = vxor.u32 %v3031, 2147483648
    %v3036 = vmul.f32 %v3033, 1.442695
    %v3037 = vpow.pop %v3036
    %v3038 = vmul.f32 %v3034, 1.442695
    %v3039 = vpow.pop %v3038
    %v3040 = vmul.f32 %v3035, 1.442695
    %v3041 = vpow.pop %v3040
    %v3042 = vadd.f32 %v3037, 1.0
    %v3043 = vadd.f32 %v3039, 1.0
    %v3044 = vadd.f32 %v3041, 1.0
    %v3045 = vrcp.pop %v3042
    %v3046 = vmul.f32 %v3042, %v3045
    %v3047 = vsub.f32 1.0, %v3046
    %v3048 = vmul.f32 %v3045, %v3047
    %v3049 = vadd.f32 %v3045, %v3048
    %vm3050 = vweird.f32 %v3042
    %vm3051 = vweird.f32 %v3045
    %vm3052 = vmor %vm3050, %vm3051
    %v3053 = vsel %vm3052, %v3045, %v3049
    %v3054 = vand.u32 2147483647, %v3042
    %vm3055 = vcmp.eq.f32.partialorder %v3054, 8.507059e+37
    %v3056 = vand.u32 %v3042, 2147483648
    %v3057 = vor.u32 1.1754944e-38, %v3056
    %v3058 = vsel %vm3055, %v3057, %v3053
    %v3059 = vmul.f32 1.0, %v3058
    %v3060 = vrcp.pop %v3043
    %v3061 = vmul.f32 %v3043, %v3060
    %v3062 = vsub.f32 1.0, %v3061
    %v3063 = vmul.f32 %v3060, %v3062
    %v3064 = vadd.f32 %v3060, %v3063
    %vm3065 = vweird.f32 %v3043
    %vm3066 = vweird.f32 %v3060
    %vm3067 = vmor %vm3065, %vm3066
    %v3068 = vsel %vm3067, %v3060, %v3064
    %v3069 = vand.u32 2147483647, %v3043
    %vm3070 = vcmp.eq.f32.partialorder %v3069, 8.507059e+37
    %v3071 = vand.u32 %v3043, 2147483648
    %v3072 = vor.u32 1.1754944e-38, %v3071
    %v3073 = vsel %vm3070, %v3072, %v3068
    %v3074 = vmul.f32 1.0, %v3073
    %v3075 = vrcp.pop %v3044
    %v3076 = vmul.f32 %v3044, %v3075
    %v3077 = vsub.f32 1.0, %v3076
    %v3078 = vmul.f32 %v3075, %v3077
    %v3079 = vadd.f32 %v3075, %v3078
    %vm3080 = vweird.f32 %v3044
    %vm3081 = vweird.f32 %v3075
    %vm3082 = vmor %vm3080, %vm3081
    %v3083 = vsel %vm3082, %v3075, %v3079
    %v3084 = vand.u32 2147483647, %v3044
    %vm3085 = vcmp.eq.f32.partialorder %v3084, 8.507059e+37
    %v3086 = vand.u32 %v3044, 2147483648
    %v3087 = vor.u32 1.1754944e-38, %v3086
    %v3088 = vsel %vm3085, %v3087, %v3083
    %v3089 = vmul.f32 1.0, %v3088
    %v3090 = vtanh.pop %v3032
    %v3091 = vmul.f32 %v3074, %v2946
    %v3092 = vmul.f32 %v3059, %v3090
    %v3093 = vadd.f32 %v3091, %v3092
    %v3094 = vtanh.pop %v3093
    %v3095 = vmul.f32 %v3089, %v3094
    %v3096 = vmax.f32 %v3095, 0.0
    %v3097 = vld [vmem:[#allocation14] sm:$0xff]
    %v3098 = vld [vmem:[#allocation14 + $0x8] sm:$0xff]
    %v3099 = vld [vmem:[#allocation14 + $0x10] sm:$0xff]
    %v3100 = vld [vmem:[#allocation14 + $0x18] sm:$0xff]
    %v3101 = vld [vmem:[#allocation14 + $0x20] sm:$0xff]
    %v3102 = vld [vmem:[#allocation14 + $0x28] sm:$0xff]
    %v3103 = vld [vmem:[#allocation14 + $0x30] sm:$0xff]
    %v3104 = vld [vmem:[#allocation14 + $0x38] sm:$0xff]
    %v3105 = vld [vmem:[#allocation14 + $0x40] sm:$0xff]
    %v3106 = vld [vmem:[#allocation14 + $0x48] sm:$0xff]
    %v3107 = vld [vmem:[#allocation14 + $0x50] sm:$0xff]
    %v3108 = vld [vmem:[#allocation14 + $0x58] sm:$0xff]
    %v3109 = vld [vmem:[#allocation14 + $0x60] sm:$0xff]
    %v3110 = vld [vmem:[#allocation14 + $0x68] sm:$0xff]
    %v3111 = vld [vmem:[#allocation14 + $0x70] sm:$0xff]
    %v3112 = vld [vmem:[#allocation14 + $0x78] sm:$0xff]
    %v3113 = vld [vmem:[%s8] sm:$0x1]
    %v3115 = vperm.slane %v3113, 0
    %3117 = vmatpush.msra.mxu0 %v3112
    %3118 = vmatpush.msra.mxu0 %v3111
    %3119 = vmatpush.msra.mxu0 %v3110
    %3120 = vmatpush.msra.mxu0 %v3109
    %3121 = vmatpush.msra.mxu0 %v3108
    %3122 = vmatpush.msra.mxu0 %v3107
    %3123 = vmatpush.msra.mxu0 %v3106
    %3124 = vmatpush.msra.mxu0 %v3105
    %3125 = vmatpush.msra.mxu0 %v3104
    %3126 = vmatpush.msra.mxu0 %v3103
    %3127 = vmatpush.msra.mxu0 %v3102
    %3128 = vmatpush.msra.mxu0 %v3101
    %3129 = vmatpush.msra.mxu0 %v3100
    %3130 = vmatpush.msra.mxu0 %v3099
    %3131 = vmatpush.msra.mxu0 %v3098
    %3132 = vmatpush.msra.mxu0 %v3097
    %3133 = vmatmul.f32.gmra.mxu0 %v3096
    %v3134 = vpop.f32.mrf.mxu0
    %v3135 = vadd.f32 %v3115, %v3134
    %3136 = vdwg.mxu0
    %3137 = vst [vmem:[#allocation15] sm:$0xff] %v3135
    // Predicated region
    $region66: #{tpu_custom_call.1} parent=1 // pred_check
      _
    $region67: #{tpu_custom_call.1} parent=1 // pred_check_branch
      %3139 = sbr.rel (0) target = $region69
    $region68: #{tpu_custom_call.1} parent=1 // pred_region
      %3141 = vsyncadd [#allocation5], 0
      %s3143 = sshll.u32 [#allocation15], 4
      %s3144 = int_to_ptr.vmem [resolvable:$true] %s3143
      %s3145 = sshll.u32 %s9, 4
      %s3146 = int_to_ptr.hbm [resolvable:$true] %s3145
      %3148 = dma.vmem_to_hbm [thread:$0]  %s3144, 128, %s3146, [#allocation5]
    $region69: #{tpu_custom_call.1} parent=1 // pred_fallthru
      _
    // Predicated region
    $region70: #{tpu_custom_call.1} parent=1 // pred_check
      _
    $region71: #{tpu_custom_call.1} parent=1 // pred_check_branch
      %3150 = sbr.rel (0) target = $region73
    $region72: #{tpu_custom_call.1} parent=1 // pred_region
      %3152 = dma.done [#allocation5], 128
    $region73: #{tpu_custom_call.1} parent=1 // pred_fallthru
      _
    %3153 = vsyncpa [#allocation4], 1
    %3154 = vsyncpa [#allocation7], 1
    %3155 = vsyncpa [#allocation10], 1
    %3156 = vsyncpa [#allocation13], 1
    %3157 = vsyncpa [#allocation5], 1

</llo_original>
